<compile_context>
chip_gen: v6e
topology: v6e:2x2x1
jax: 0.10.0
libtpu: 0.0.40
codegen_flags: <defaults>
</compile_context>

<pallas_src>
import jax
import jax.numpy as jnp
from jax import lax
from jax.experimental import pallas as pl
from jax.experimental.pallas import tpu as pltpu

_GUARD = 128  # lane guard band (must be >= W+1); 128 keeps the activation store lane-aligned


def _make_up_final_kernel(H, W, chans, cin_max):
    """Build the fused 4-layer kernel. chans: tuple of (cin, cout) per layer."""
    HW = H * W
    G = _GUARD
    n_layers = len(chans)

    def kernel(x_ref, m_ref, *rest):
        w_refs = rest[:n_layers]          # per layer: (9, cout, cin), BN scale pre-folded
        b_ref = rest[n_layers]            # (n_layers, cout_max, 1) folded bias
        o_ref = rest[n_layers + 1]        # (1, cout_last, HW)
        act_ref = rest[n_layers + 2]      # (cin_max, G + HW + G) guarded activation scratch

        # Zero only the two guard bands (lane-aligned, never written elsewhere).  Do NOT gate
        # this on program_id: scratch is per-core and under a "parallel" grid each core must
        # initialize its own copy.
        zg = jnp.zeros((cin_max, G), jnp.float32)
        act_ref[:, 0:G] = zg
        act_ref[:, G + HW:G + HW + G] = zg

        mask_l = m_ref[0:1, :]            # (1, HW) 0/1: column >= 1      (dx = -1)
        mask_r = m_ref[1:2, :]            # (1, HW) 0/1: column <= W - 2  (dx = +1)

        a = x_ref[0]                      # (cin0, HW) f32
        for li, (cin, cout) in enumerate(chans):
            # Stage activation at the lane-aligned offset G; guard lanes stay zero, so
            # vertically out-of-range taps read zeros for free.
            act_ref[0:cin, G:G + HW] = a

            w = w_refs[li]
            acc = None
            for dx in (-1, 0, 1):
                grp = None
                for dy in (-1, 0, 1):
                    k = (dy + 1) * 3 + (dx + 1)
                    start = G + dy * W + dx
                    tap = act_ref[0:cin, start:start + HW]              # (cin, HW)
                    part = jnp.dot(w[k], tap,
                                   preferred_element_type=jnp.float32)  # (cout, HW)
                    grp = part if grp is None else grp + part
                # One mask multiply per dx group; masking the product == masking the tap.
                if dx == -1:
                    grp = grp * mask_l
                elif dx == 1:
                    grp = grp * mask_r
                acc = grp if acc is None else acc + grp

            b = b_ref[li][0:cout]                                       # (cout, 1)
            a = jnp.maximum(acc + b, 0.0)                               # fused bias + ReLU

        o_ref[0] = a.astype(o_ref.dtype)

    return kernel


@jax.jit
def up_final_forward(params, x_nchw):
    """params: list of 4 dicts (w HWIO, b, gamma, beta, mean, var). x: (N, Cin, H, W)."""
    N, cin0, H, W = x_nchw.shape
    HW = H * W
    assert W + 1 <= _GUARD

    x = x_nchw.reshape(N, cin0, HW).astype(jnp.float32)   # free reshape, stays NCHW order

    # Horizontal-boundary lane masks packed into one (2, HW) input.
    col = jnp.arange(HW, dtype=jnp.int32) % W
    masks = jnp.stack([(col >= 1).astype(jnp.float32),
                       (col <= W - 2).astype(jnp.float32)], axis=0)

    chans = []
    w_inputs = []
    w_specs = []
    biases = []
    for p in params:
        w = p["w"]                                    # (3, 3, cin, cout) HWIO
        cin, cout = w.shape[2], w.shape[3]
        chans.append((cin, cout))
        scale = p["gamma"] / jnp.sqrt(p["var"] + 1e-5)
        # (ky,kx,cin,cout) -> (9, cout, cin); fold BN scale into the weights.
        w_mat = jnp.transpose(w, (0, 1, 3, 2)).reshape(9, cout, cin)
        w_mat = (w_mat * scale[None, :, None]).astype(jnp.float32)
        bias = ((p["b"] - p["mean"]) * scale + p["beta"]).astype(jnp.float32)
        w_inputs.append(w_mat)
        w_specs.append(pl.BlockSpec((9, cout, cin), lambda n: (0, 0, 0)))
        biases.append(bias)

    n_layers = len(chans)
    cin_max = max(c for c, _ in chans)
    cout_max = max(c for _, c in chans)
    cout_last = chans[-1][1]

    # Pack all per-layer biases into a single tile: one DMA / BlockSpec instead of eight.
    b_pack = jnp.zeros((n_layers, cout_max, 1), jnp.float32)
    for li, b in enumerate(biases):
        b_pack = b_pack.at[li, :b.shape[0], 0].set(b)

    out = pl.pallas_call(
        _make_up_final_kernel(H, W, tuple(chans), cin_max),
        out_shape=jax.ShapeDtypeStruct((N, cout_last, HW), jnp.float32),
        grid=(N,),
        in_specs=[pl.BlockSpec((1, cin0, HW), lambda n: (n, 0, 0)),
                  pl.BlockSpec((2, HW), lambda n: (0, 0))]
                 + w_specs
                 + [pl.BlockSpec((n_layers, cout_max, 1), lambda n: (0, 0, 0))],
        out_specs=pl.BlockSpec((1, cout_last, HW), lambda n: (n, 0, 0)),
        scratch_shapes=[
            pltpu.VMEM((cin_max, _GUARD + HW + _GUARD), jnp.float32),  # guarded activation
        ],
        compiler_params=pltpu.CompilerParams(
            dimension_semantics=("parallel",)),
    )(x, masks, *w_inputs, b_pack)

    return out.reshape(N, cout_last, H, W)


def _init_layer(key, cin, cout):
    """Deterministic synthetic params for Conv2d(cin, cout, 3, padding=1) + BatchNorm2d(cout)."""
    k1, k2, k3, k4 = jax.random.split(key, 4)
    fan_in = cin * 9
    w = jax.random.normal(k1, (3, 3, cin, cout), jnp.float32) / jnp.sqrt(fan_in)
    b = 0.01 * jax.random.normal(k2, (cout,), jnp.float32)
    gamma = 1.0 + 0.1 * jax.random.normal(k3, (cout,), jnp.float32)
    beta = 0.1 * jax.random.normal(k4, (cout,), jnp.float32)
    run_mean = jnp.zeros((cout,), jnp.float32)
    run_var = jnp.ones((cout,), jnp.float32)
    return dict(w=w, b=b, gamma=gamma, beta=beta, mean=run_mean, var=run_var)


def up_final_init(key, channel_in, channel_out):
    ks = jax.random.split(key, 4)
    chans = [(channel_in, 4 * channel_out),
             (4 * channel_out, 2 * channel_out),
             (2 * channel_out, channel_out),
             (channel_out, channel_out)]
    return [_init_layer(k, ci, co) for k, (ci, co) in zip(ks, chans)]


def _reference_forward(params, x_nchw):
    """Pure-JAX reference (lax.conv) for correctness checking."""
    x = x_nchw.astype(jnp.float32)
    for p in params:
        w_oihw = jnp.transpose(p["w"], (3, 2, 0, 1))  # (3,3,Cin,Cout) -> (Cout,Cin,3,3)
        y = lax.conv_general_dilated(
            x, w_oihw, window_strides=(1, 1), padding=((1, 1), (1, 1)),
            dimension_numbers=("NCHW", "OIHW", "NCHW"))
        y = y + p["b"][None, :, None, None]
        scale = p["gamma"] / jnp.sqrt(p["var"] + 1e-5)
        y = (y - p["mean"][None, :, None, None]) * scale[None, :, None, None] \
            + p["beta"][None, :, None, None]
        x = jnp.maximum(y, 0.0)
    return x


if __name__ == "__main__":
    key = jax.random.PRNGKey(0)
    k_param, k_x = jax.random.split(key)

    channel_in, channel_out = 4, 4
    N, H, W = 2, 16, 16

    params = up_final_init(k_param, channel_in, channel_out)
    x = jax.random.normal(k_x, (N, channel_in, H, W), jnp.float32)

    out = up_final_forward(params, x)
    out = jax.block_until_ready(out)

    ref = _reference_forward(params, x)
    assert out.shape == (N, channel_out, H, W), out.shape
    err = float(jnp.max(jnp.abs(out - ref)))
    assert jnp.allclose(out, ref, atol=1e-4, rtol=1e-4), err

    print("KERNEL_OK")
</pallas_src>

<mosaic_0001>
module attributes {stable_mosaic.version = 11 : i64} {
  func.func @kernel(%arg0: i32, %arg1: memref<1x4x256xf32, #tpu.memory_space<vmem>>, %arg2: memref<2x256xf32, #tpu.memory_space<vmem>>, %arg3: memref<9x16x4xf32, #tpu.memory_space<vmem>>, %arg4: memref<9x8x16xf32, #tpu.memory_space<vmem>>, %arg5: memref<9x4x8xf32, #tpu.memory_space<vmem>>, %arg6: memref<9x4x4xf32, #tpu.memory_space<vmem>>, %arg7: memref<4x16x1xf32, #tpu.memory_space<vmem>>, %arg8: memref<1x4x256xf32, #tpu.memory_space<vmem>>, %arg9: memref<16x512xf32, #tpu.memory_space<vmem>>) attributes {dimension_semantics = [#tpu.dimension_semantics<parallel>], iteration_bounds = array<i64: 2>, scalar_prefetch = 0 : i64, scratch_operands = 1 : i64, tpu.core_type = #tpu.core_type<tc>, window_params = [{transform_indices = @transform_0, window_bounds = array<i64: 1, 4, 256>}, {pipeline_mode = #tpu.pipeline_mode<synchronous>, transform_indices = @transform_1, window_bounds = array<i64: 2, 256>}, {pipeline_mode = #tpu.pipeline_mode<synchronous>, transform_indices = @transform_2, window_bounds = array<i64: 9, 16, 4>}, {pipeline_mode = #tpu.pipeline_mode<synchronous>, transform_indices = @transform_3, window_bounds = array<i64: 9, 8, 16>}, {pipeline_mode = #tpu.pipeline_mode<synchronous>, transform_indices = @transform_4, window_bounds = array<i64: 9, 4, 8>}, {pipeline_mode = #tpu.pipeline_mode<synchronous>, transform_indices = @transform_5, window_bounds = array<i64: 9, 4, 4>}, {pipeline_mode = #tpu.pipeline_mode<synchronous>, transform_indices = @transform_6, window_bounds = array<i64: 4, 16, 1>}, {transform_indices = @transform_7, window_bounds = array<i64: 1, 4, 256>}]} {
    %cst = arith.constant 0.000000e+00 : f32
    %0 = vector.broadcast %cst : f32 to vector<16x128xf32>
    %c0 = arith.constant 0 : index
    %c0_0 = arith.constant 0 : index
    %1 = vector.load %arg9[%c0, %c0_0] : memref<16x512xf32, #tpu.memory_space<vmem>>, vector<16x128xf32>
    tpu.vector_store %arg9[%c0, %c0_0], %0 {strides = array<i32>} : memref<16x512xf32, #tpu.memory_space<vmem>>, vector<16x128xf32>,
    %c0_1 = arith.constant 0 : index
    %c384 = arith.constant 384 : index
    %2 = vector.load %arg9[%c0_1, %c384] : memref<16x512xf32, #tpu.memory_space<vmem>>, vector<16x128xf32>
    tpu.vector_store %arg9[%c0_1, %c384], %0 {strides = array<i32>} : memref<16x512xf32, #tpu.memory_space<vmem>>, vector<16x128xf32>,
    %c0_2 = arith.constant 0 : index
    %c0_3 = arith.constant 0 : index
    %3 = vector.load %arg2[%c0_2, %c0_3] : memref<2x256xf32, #tpu.memory_space<vmem>>, vector<1x256xf32>
    %c1 = arith.constant 1 : index
    %c0_4 = arith.constant 0 : index
    %4 = vector.load %arg2[%c1, %c0_4] : memref<2x256xf32, #tpu.memory_space<vmem>>, vector<1x256xf32>
    %c0_5 = arith.constant 0 : index
    %c0_6 = arith.constant 0 : index
    %c0_7 = arith.constant 0 : index
    %5 = vector.load %arg1[%c0_5, %c0_6, %c0_7] : memref<1x4x256xf32, #tpu.memory_space<vmem>>, vector<1x4x256xf32>
    %6 = vector.shape_cast %5 : vector<1x4x256xf32> to vector<4x256xf32>
    %c0_8 = arith.constant 0 : index
    %c128 = arith.constant 128 : index
    %7 = vector.load %arg9[%c0_8, %c128] : memref<16x512xf32, #tpu.memory_space<vmem>>, vector<4x256xf32>
    tpu.vector_store %arg9[%c0_8, %c128], %6 {strides = array<i32>} : memref<16x512xf32, #tpu.memory_space<vmem>>, vector<4x256xf32>,
    %c0_9 = arith.constant 0 : index
    %c111 = arith.constant 111 : index
    %8 = vector.load %arg9[%c0_9, %c111] : memref<16x512xf32, #tpu.memory_space<vmem>>, vector<4x256xf32>
    %c0_10 = arith.constant 0 : index
    %c0_11 = arith.constant 0 : index
    %c0_12 = arith.constant 0 : index
    %9 = vector.load %arg3[%c0_10, %c0_11, %c0_12] : memref<9x16x4xf32, #tpu.memory_space<vmem>>, vector<1x16x4xf32>
    %10 = vector.shape_cast %9 : vector<1x16x4xf32> to vector<16x4xf32>
    %cst_13 = arith.constant dense<0.000000e+00> : vector<16x256xf32>
    %11 = tpu.matmul %10, %8, %cst_13 {dimension_numbers = #tpu.dot_dimension_numbers<[1], [0], [0], [1], [0, 0, 1, 1], [], []>} : vector<16x4xf32>, vector<4x256xf32>, vector<16x256xf32> -> vector<16x256xf32>
    %c0_14 = arith.constant 0 : index
    %c127 = arith.constant 127 : index
    %12 = vector.load %arg9[%c0_14, %c127] : memref<16x512xf32, #tpu.memory_space<vmem>>, vector<4x256xf32>
    %c3 = arith.constant 3 : index
    %c0_15 = arith.constant 0 : index
    %c0_16 = arith.constant 0 : index
    %13 = vector.load %arg3[%c3, %c0_15, %c0_16] : memref<9x16x4xf32, #tpu.memory_space<vmem>>, vector<1x16x4xf32>
    %14 = vector.shape_cast %13 : vector<1x16x4xf32> to vector<16x4xf32>
    %cst_17 = arith.constant dense<0.000000e+00> : vector<16x256xf32>
    %15 = tpu.matmul %14, %12, %cst_17 {dimension_numbers = #tpu.dot_dimension_numbers<[1], [0], [0], [1], [0, 0, 1, 1], [], []>} : vector<16x4xf32>, vector<4x256xf32>, vector<16x256xf32> -> vector<16x256xf32>
    %16 = arith.addf %11, %15 : vector<16x256xf32>
    %c0_18 = arith.constant 0 : index
    %c143 = arith.constant 143 : index
    %17 = vector.load %arg9[%c0_18, %c143] : memref<16x512xf32, #tpu.memory_space<vmem>>, vector<4x256xf32>
    %c6 = arith.constant 6 : index
    %c0_19 = arith.constant 0 : index
    %c0_20 = arith.constant 0 : index
    %18 = vector.load %arg3[%c6, %c0_19, %c0_20] : memref<9x16x4xf32, #tpu.memory_space<vmem>>, vector<1x16x4xf32>
    %19 = vector.shape_cast %18 : vector<1x16x4xf32> to vector<16x4xf32>
    %cst_21 = arith.constant dense<0.000000e+00> : vector<16x256xf32>
    %20 = tpu.matmul %19, %17, %cst_21 {dimension_numbers = #tpu.dot_dimension_numbers<[1], [0], [0], [1], [0, 0, 1, 1], [], []>} : vector<16x4xf32>, vector<4x256xf32>, vector<16x256xf32> -> vector<16x256xf32>
    %21 = arith.addf %16, %20 : vector<16x256xf32>
    %22 = vector.broadcast %3 : vector<1x256xf32> to vector<16x256xf32>
    %23 = arith.mulf %21, %22 : vector<16x256xf32>
    %c0_22 = arith.constant 0 : index
    %c112 = arith.constant 112 : index
    %24 = vector.load %arg9[%c0_22, %c112] : memref<16x512xf32, #tpu.memory_space<vmem>>, vector<4x256xf32>
    %c1_23 = arith.constant 1 : index
    %c0_24 = arith.constant 0 : index
    %c0_25 = arith.constant 0 : index
    %25 = vector.load %arg3[%c1_23, %c0_24, %c0_25] : memref<9x16x4xf32, #tpu.memory_space<vmem>>, vector<1x16x4xf32>
    %26 = vector.shape_cast %25 : vector<1x16x4xf32> to vector<16x4xf32>
    %cst_26 = arith.constant dense<0.000000e+00> : vector<16x256xf32>
    %27 = tpu.matmul %26, %24, %cst_26 {dimension_numbers = #tpu.dot_dimension_numbers<[1], [0], [0], [1], [0, 0, 1, 1], [], []>} : vector<16x4xf32>, vector<4x256xf32>, vector<16x256xf32> -> vector<16x256xf32>
    %c0_27 = arith.constant 0 : index
    %c128_28 = arith.constant 128 : index
    %28 = vector.load %arg9[%c0_27, %c128_28] : memref<16x512xf32, #tpu.memory_space<vmem>>, vector<4x256xf32>
    %c4 = arith.constant 4 : index
    %c0_29 = arith.constant 0 : index
    %c0_30 = arith.constant 0 : index
    %29 = vector.load %arg3[%c4, %c0_29, %c0_30] : memref<9x16x4xf32, #tpu.memory_space<vmem>>, vector<1x16x4xf32>
    %30 = vector.shape_cast %29 : vector<1x16x4xf32> to vector<16x4xf32>
    %cst_31 = arith.constant dense<0.000000e+00> : vector<16x256xf32>
    %31 = tpu.matmul %30, %28, %cst_31 {dimension_numbers = #tpu.dot_dimension_numbers<[1], [0], [0], [1], [0, 0, 1, 1], [], []>} : vector<16x4xf32>, vector<4x256xf32>, vector<16x256xf32> -> vector<16x256xf32>
    %32 = arith.addf %27, %31 : vector<16x256xf32>
    %c0_32 = arith.constant 0 : index
    %c144 = arith.constant 144 : index
    %33 = vector.load %arg9[%c0_32, %c144] : memref<16x512xf32, #tpu.memory_space<vmem>>, vector<4x256xf32>
    %c7 = arith.constant 7 : index
    %c0_33 = arith.constant 0 : index
    %c0_34 = arith.constant 0 : index
    %34 = vector.load %arg3[%c7, %c0_33, %c0_34] : memref<9x16x4xf32, #tpu.memory_space<vmem>>, vector<1x16x4xf32>
    %35 = vector.shape_cast %34 : vector<1x16x4xf32> to vector<16x4xf32>
    %cst_35 = arith.constant dense<0.000000e+00> : vector<16x256xf32>
    %36 = tpu.matmul %35, %33, %cst_35 {dimension_numbers = #tpu.dot_dimension_numbers<[1], [0], [0], [1], [0, 0, 1, 1], [], []>} : vector<16x4xf32>, vector<4x256xf32>, vector<16x256xf32> -> vector<16x256xf32>
    %37 = arith.addf %32, %36 : vector<16x256xf32>
    %38 = arith.addf %23, %37 : vector<16x256xf32>
    %c0_36 = arith.constant 0 : index
    %c113 = arith.constant 113 : index
    %39 = vector.load %arg9[%c0_36, %c113] : memref<16x512xf32, #tpu.memory_space<vmem>>, vector<4x256xf32>
    %c2 = arith.constant 2 : index
    %c0_37 = arith.constant 0 : index
    %c0_38 = arith.constant 0 : index
    %40 = vector.load %arg3[%c2, %c0_37, %c0_38] : memref<9x16x4xf32, #tpu.memory_space<vmem>>, vector<1x16x4xf32>
    %41 = vector.shape_cast %40 : vector<1x16x4xf32> to vector<16x4xf32>
    %cst_39 = arith.constant dense<0.000000e+00> : vector<16x256xf32>
    %42 = tpu.matmul %41, %39, %cst_39 {dimension_numbers = #tpu.dot_dimension_numbers<[1], [0], [0], [1], [0, 0, 1, 1], [], []>} : vector<16x4xf32>, vector<4x256xf32>, vector<16x256xf32> -> vector<16x256xf32>
    %c0_40 = arith.constant 0 : index
    %c129 = arith.constant 129 : index
    %43 = vector.load %arg9[%c0_40, %c129] : memref<16x512xf32, #tpu.memory_space<vmem>>, vector<4x256xf32>
    %c5 = arith.constant 5 : index
    %c0_41 = arith.constant 0 : index
    %c0_42 = arith.constant 0 : index
    %44 = vector.load %arg3[%c5, %c0_41, %c0_42] : memref<9x16x4xf32, #tpu.memory_space<vmem>>, vector<1x16x4xf32>
    %45 = vector.shape_cast %44 : vector<1x16x4xf32> to vector<16x4xf32>
    %cst_43 = arith.constant dense<0.000000e+00> : vector<16x256xf32>
    %46 = tpu.matmul %45, %43, %cst_43 {dimension_numbers = #tpu.dot_dimension_numbers<[1], [0], [0], [1], [0, 0, 1, 1], [], []>} : vector<16x4xf32>, vector<4x256xf32>, vector<16x256xf32> -> vector<16x256xf32>
    %47 = arith.addf %42, %46 : vector<16x256xf32>
    %c0_44 = arith.constant 0 : index
    %c145 = arith.constant 145 : index
    %48 = vector.load %arg9[%c0_44, %c145] : memref<16x512xf32, #tpu.memory_space<vmem>>, vector<4x256xf32>
    %c8 = arith.constant 8 : index
    %c0_45 = arith.constant 0 : index
    %c0_46 = arith.constant 0 : index
    %49 = vector.load %arg3[%c8, %c0_45, %c0_46] : memref<9x16x4xf32, #tpu.memory_space<vmem>>, vector<1x16x4xf32>
    %50 = vector.shape_cast %49 : vector<1x16x4xf32> to vector<16x4xf32>
    %cst_47 = arith.constant dense<0.000000e+00> : vector<16x256xf32>
    %51 = tpu.matmul %50, %48, %cst_47 {dimension_numbers = #tpu.dot_dimension_numbers<[1], [0], [0], [1], [0, 0, 1, 1], [], []>} : vector<16x4xf32>, vector<4x256xf32>, vector<16x256xf32> -> vector<16x256xf32>
    %52 = arith.addf %47, %51 : vector<16x256xf32>
    %53 = vector.broadcast %4 : vector<1x256xf32> to vector<16x256xf32>
    %54 = arith.mulf %52, %53 : vector<16x256xf32>
    %55 = arith.addf %38, %54 : vector<16x256xf32>
    %c0_48 = arith.constant 0 : index
    %c0_49 = arith.constant 0 : index
    %c0_50 = arith.constant 0 : index
    %56 = vector.load %arg7[%c0_48, %c0_49, %c0_50] : memref<4x16x1xf32, #tpu.memory_space<vmem>>, vector<1x16x1xf32>
    %57 = vector.shape_cast %56 : vector<1x16x1xf32> to vector<16x1xf32>
    %58 = vector.broadcast %57 : vector<16x1xf32> to vector<16x256xf32>
    %59 = arith.addf %55, %58 : vector<16x256xf32>
    %cst_51 = arith.constant 0.000000e+00 : f32
    %60 = vector.broadcast %cst_51 : f32 to vector<16x256xf32>
    %61 = arith.maximumf %59, %60 : vector<16x256xf32>
    %c0_52 = arith.constant 0 : index
    %c128_53 = arith.constant 128 : index
    %62 = vector.load %arg9[%c0_52, %c128_53] : memref<16x512xf32, #tpu.memory_space<vmem>>, vector<16x256xf32>
    tpu.vector_store %arg9[%c0_52, %c128_53], %61 {strides = array<i32>} : memref<16x512xf32, #tpu.memory_space<vmem>>, vector<16x256xf32>,
    %c0_54 = arith.constant 0 : index
    %c111_55 = arith.constant 111 : index
    %63 = vector.load %arg9[%c0_54, %c111_55] : memref<16x512xf32, #tpu.memory_space<vmem>>, vector<16x256xf32>
    %c0_56 = arith.constant 0 : index
    %c0_57 = arith.constant 0 : index
    %c0_58 = arith.constant 0 : index
    %64 = vector.load %arg4[%c0_56, %c0_57, %c0_58] : memref<9x8x16xf32, #tpu.memory_space<vmem>>, vector<1x8x16xf32>
    %65 = vector.shape_cast %64 : vector<1x8x16xf32> to vector<8x16xf32>
    %cst_59 = arith.constant dense<0.000000e+00> : vector<8x256xf32>
    %66 = tpu.matmul %65, %63, %cst_59 {dimension_numbers = #tpu.dot_dimension_numbers<[1], [0], [0], [1], [0, 0, 1, 1], [], []>} : vector<8x16xf32>, vector<16x256xf32>, vector<8x256xf32> -> vector<8x256xf32>
    %c0_60 = arith.constant 0 : index
    %c127_61 = arith.constant 127 : index
    %67 = vector.load %arg9[%c0_60, %c127_61] : memref<16x512xf32, #tpu.memory_space<vmem>>, vector<16x256xf32>
    %c3_62 = arith.constant 3 : index
    %c0_63 = arith.constant 0 : index
    %c0_64 = arith.constant 0 : index
    %68 = vector.load %arg4[%c3_62, %c0_63, %c0_64] : memref<9x8x16xf32, #tpu.memory_space<vmem>>, vector<1x8x16xf32>
    %69 = vector.shape_cast %68 : vector<1x8x16xf32> to vector<8x16xf32>
    %cst_65 = arith.constant dense<0.000000e+00> : vector<8x256xf32>
    %70 = tpu.matmul %69, %67, %cst_65 {dimension_numbers = #tpu.dot_dimension_numbers<[1], [0], [0], [1], [0, 0, 1, 1], [], []>} : vector<8x16xf32>, vector<16x256xf32>, vector<8x256xf32> -> vector<8x256xf32>
    %71 = arith.addf %66, %70 : vector<8x256xf32>
    %c0_66 = arith.constant 0 : index
    %c143_67 = arith.constant 143 : index
    %72 = vector.load %arg9[%c0_66, %c143_67] : memref<16x512xf32, #tpu.memory_space<vmem>>, vector<16x256xf32>
    %c6_68 = arith.constant 6 : index
    %c0_69 = arith.constant 0 : index
    %c0_70 = arith.constant 0 : index
    %73 = vector.load %arg4[%c6_68, %c0_69, %c0_70] : memref<9x8x16xf32, #tpu.memory_space<vmem>>, vector<1x8x16xf32>
    %74 = vector.shape_cast %73 : vector<1x8x16xf32> to vector<8x16xf32>
    %cst_71 = arith.constant dense<0.000000e+00> : vector<8x256xf32>
    %75 = tpu.matmul %74, %72, %cst_71 {dimension_numbers = #tpu.dot_dimension_numbers<[1], [0], [0], [1], [0, 0, 1, 1], [], []>} : vector<8x16xf32>, vector<16x256xf32>, vector<8x256xf32> -> vector<8x256xf32>
    %76 = arith.addf %71, %75 : vector<8x256xf32>
    %77 = vector.broadcast %3 : vector<1x256xf32> to vector<8x256xf32>
    %78 = arith.mulf %76, %77 : vector<8x256xf32>
    %c0_72 = arith.constant 0 : index
    %c112_73 = arith.constant 112 : index
    %79 = vector.load %arg9[%c0_72, %c112_73] : memref<16x512xf32, #tpu.memory_space<vmem>>, vector<16x256xf32>
    %c1_74 = arith.constant 1 : index
    %c0_75 = arith.constant 0 : index
    %c0_76 = arith.constant 0 : index
    %80 = vector.load %arg4[%c1_74, %c0_75, %c0_76] : memref<9x8x16xf32, #tpu.memory_space<vmem>>, vector<1x8x16xf32>
    %81 = vector.shape_cast %80 : vector<1x8x16xf32> to vector<8x16xf32>
    %cst_77 = arith.constant dense<0.000000e+00> : vector<8x256xf32>
    %82 = tpu.matmul %81, %79, %cst_77 {dimension_numbers = #tpu.dot_dimension_numbers<[1], [0], [0], [1], [0, 0, 1, 1], [], []>} : vector<8x16xf32>, vector<16x256xf32>, vector<8x256xf32> -> vector<8x256xf32>
    %c0_78 = arith.constant 0 : index
    %c128_79 = arith.constant 128 : index
    %83 = vector.load %arg9[%c0_78, %c128_79] : memref<16x512xf32, #tpu.memory_space<vmem>>, vector<16x256xf32>
    %c4_80 = arith.constant 4 : index
    %c0_81 = arith.constant 0 : index
    %c0_82 = arith.constant 0 : index
    %84 = vector.load %arg4[%c4_80, %c0_81, %c0_82] : memref<9x8x16xf32, #tpu.memory_space<vmem>>, vector<1x8x16xf32>
    %85 = vector.shape_cast %84 : vector<1x8x16xf32> to vector<8x16xf32>
    %cst_83 = arith.constant dense<0.000000e+00> : vector<8x256xf32>
    %86 = tpu.matmul %85, %83, %cst_83 {dimension_numbers = #tpu.dot_dimension_numbers<[1], [0], [0], [1], [0, 0, 1, 1], [], []>} : vector<8x16xf32>, vector<16x256xf32>, vector<8x256xf32> -> vector<8x256xf32>
    %87 = arith.addf %82, %86 : vector<8x256xf32>
    %c0_84 = arith.constant 0 : index
    %c144_85 = arith.constant 144 : index
    %88 = vector.load %arg9[%c0_84, %c144_85] : memref<16x512xf32, #tpu.memory_space<vmem>>, vector<16x256xf32>
    %c7_86 = arith.constant 7 : index
    %c0_87 = arith.constant 0 : index
    %c0_88 = arith.constant 0 : index
    %89 = vector.load %arg4[%c7_86, %c0_87, %c0_88] : memref<9x8x16xf32, #tpu.memory_space<vmem>>, vector<1x8x16xf32>
    %90 = vector.shape_cast %89 : vector<1x8x16xf32> to vector<8x16xf32>
    %cst_89 = arith.constant dense<0.000000e+00> : vector<8x256xf32>
    %91 = tpu.matmul %90, %88, %cst_89 {dimension_numbers = #tpu.dot_dimension_numbers<[1], [0], [0], [1], [0, 0, 1, 1], [], []>} : vector<8x16xf32>, vector<16x256xf32>, vector<8x256xf32> -> vector<8x256xf32>
    %92 = arith.addf %87, %91 : vector<8x256xf32>
    %93 = arith.addf %78, %92 : vector<8x256xf32>
    %c0_90 = arith.constant 0 : index
    %c113_91 = arith.constant 113 : index
    %94 = vector.load %arg9[%c0_90, %c113_91] : memref<16x512xf32, #tpu.memory_space<vmem>>, vector<16x256xf32>
    %c2_92 = arith.constant 2 : index
    %c0_93 = arith.constant 0 : index
    %c0_94 = arith.constant 0 : index
    %95 = vector.load %arg4[%c2_92, %c0_93, %c0_94] : memref<9x8x16xf32, #tpu.memory_space<vmem>>, vector<1x8x16xf32>
    %96 = vector.shape_cast %95 : vector<1x8x16xf32> to vector<8x16xf32>
    %cst_95 = arith.constant dense<0.000000e+00> : vector<8x256xf32>
    %97 = tpu.matmul %96, %94, %cst_95 {dimension_numbers = #tpu.dot_dimension_numbers<[1], [0], [0], [1], [0, 0, 1, 1], [], []>} : vector<8x16xf32>, vector<16x256xf32>, vector<8x256xf32> -> vector<8x256xf32>
    %c0_96 = arith.constant 0 : index
    %c129_97 = arith.constant 129 : index
    %98 = vector.load %arg9[%c0_96, %c129_97] : memref<16x512xf32, #tpu.memory_space<vmem>>, vector<16x256xf32>
    %c5_98 = arith.constant 5 : index
    %c0_99 = arith.constant 0 : index
    %c0_100 = arith.constant 0 : index
    %99 = vector.load %arg4[%c5_98, %c0_99, %c0_100] : memref<9x8x16xf32, #tpu.memory_space<vmem>>, vector<1x8x16xf32>
    %100 = vector.shape_cast %99 : vector<1x8x16xf32> to vector<8x16xf32>
    %cst_101 = arith.constant dense<0.000000e+00> : vector<8x256xf32>
    %101 = tpu.matmul %100, %98, %cst_101 {dimension_numbers = #tpu.dot_dimension_numbers<[1], [0], [0], [1], [0, 0, 1, 1], [], []>} : vector<8x16xf32>, vector<16x256xf32>, vector<8x256xf32> -> vector<8x256xf32>
    %102 = arith.addf %97, %101 : vector<8x256xf32>
    %c0_102 = arith.constant 0 : index
    %c145_103 = arith.constant 145 : index
    %103 = vector.load %arg9[%c0_102, %c145_103] : memref<16x512xf32, #tpu.memory_space<vmem>>, vector<16x256xf32>
    %c8_104 = arith.constant 8 : index
    %c0_105 = arith.constant 0 : index
    %c0_106 = arith.constant 0 : index
    %104 = vector.load %arg4[%c8_104, %c0_105, %c0_106] : memref<9x8x16xf32, #tpu.memory_space<vmem>>, vector<1x8x16xf32>
    %105 = vector.shape_cast %104 : vector<1x8x16xf32> to vector<8x16xf32>
    %cst_107 = arith.constant dense<0.000000e+00> : vector<8x256xf32>
    %106 = tpu.matmul %105, %103, %cst_107 {dimension_numbers = #tpu.dot_dimension_numbers<[1], [0], [0], [1], [0, 0, 1, 1], [], []>} : vector<8x16xf32>, vector<16x256xf32>, vector<8x256xf32> -> vector<8x256xf32>
    %107 = arith.addf %102, %106 : vector<8x256xf32>
    %108 = vector.broadcast %4 : vector<1x256xf32> to vector<8x256xf32>
    %109 = arith.mulf %107, %108 : vector<8x256xf32>
    %110 = arith.addf %93, %109 : vector<8x256xf32>
    %c1_108 = arith.constant 1 : index
    %c0_109 = arith.constant 0 : index
    %c0_110 = arith.constant 0 : index
    %111 = vector.load %arg7[%c1_108, %c0_109, %c0_110] : memref<4x16x1xf32, #tpu.memory_space<vmem>>, vector<1x16x1xf32>
    %112 = vector.shape_cast %111 : vector<1x16x1xf32> to vector<16x1xf32>
    %113 = vector.extract_strided_slice %112 {offsets = [0, 0], sizes = [8, 1], strides = [1, 1]} : vector<16x1xf32> to vector<8x1xf32>
    %114 = vector.broadcast %113 : vector<8x1xf32> to vector<8x256xf32>
    %115 = arith.addf %110, %114 : vector<8x256xf32>
    %cst_111 = arith.constant 0.000000e+00 : f32
    %116 = vector.broadcast %cst_111 : f32 to vector<8x256xf32>
    %117 = arith.maximumf %115, %116 : vector<8x256xf32>
    %c0_112 = arith.constant 0 : index
    %c128_113 = arith.constant 128 : index
    %118 = vector.load %arg9[%c0_112, %c128_113] : memref<16x512xf32, #tpu.memory_space<vmem>>, vector<8x256xf32>
    tpu.vector_store %arg9[%c0_112, %c128_113], %117 {strides = array<i32>} : memref<16x512xf32, #tpu.memory_space<vmem>>, vector<8x256xf32>,
    %c0_114 = arith.constant 0 : index
    %c111_115 = arith.constant 111 : index
    %119 = vector.load %arg9[%c0_114, %c111_115] : memref<16x512xf32, #tpu.memory_space<vmem>>, vector<8x256xf32>
    %c0_116 = arith.constant 0 : index
    %c0_117 = arith.constant 0 : index
    %c0_118 = arith.constant 0 : index
    %120 = vector.load %arg5[%c0_116, %c0_117, %c0_118] : memref<9x4x8xf32, #tpu.memory_space<vmem>>, vector<1x4x8xf32>
    %121 = vector.shape_cast %120 : vector<1x4x8xf32> to vector<4x8xf32>
    %cst_119 = arith.constant dense<0.000000e+00> : vector<4x256xf32>
    %122 = tpu.matmul %121, %119, %cst_119 {dimension_numbers = #tpu.dot_dimension_numbers<[1], [0], [0], [1], [0, 0, 1, 1], [], []>} : vector<4x8xf32>, vector<8x256xf32>, vector<4x256xf32> -> vector<4x256xf32>
    %c0_120 = arith.constant 0 : index
    %c127_121 = arith.constant 127 : index
    %123 = vector.load %arg9[%c0_120, %c127_121] : memref<16x512xf32, #tpu.memory_space<vmem>>, vector<8x256xf32>
    %c3_122 = arith.constant 3 : index
    %c0_123 = arith.constant 0 : index
    %c0_124 = arith.constant 0 : index
    %124 = vector.load %arg5[%c3_122, %c0_123, %c0_124] : memref<9x4x8xf32, #tpu.memory_space<vmem>>, vector<1x4x8xf32>
    %125 = vector.shape_cast %124 : vector<1x4x8xf32> to vector<4x8xf32>
    %cst_125 = arith.constant dense<0.000000e+00> : vector<4x256xf32>
    %126 = tpu.matmul %125, %123, %cst_125 {dimension_numbers = #tpu.dot_dimension_numbers<[1], [0], [0], [1], [0, 0, 1, 1], [], []>} : vector<4x8xf32>, vector<8x256xf32>, vector<4x256xf32> -> vector<4x256xf32>
    %127 = arith.addf %122, %126 : vector<4x256xf32>
    %c0_126 = arith.constant 0 : index
    %c143_127 = arith.constant 143 : index
    %128 = vector.load %arg9[%c0_126, %c143_127] : memref<16x512xf32, #tpu.memory_space<vmem>>, vector<8x256xf32>
    %c6_128 = arith.constant 6 : index
    %c0_129 = arith.constant 0 : index
    %c0_130 = arith.constant 0 : index
    %129 = vector.load %arg5[%c6_128, %c0_129, %c0_130] : memref<9x4x8xf32, #tpu.memory_space<vmem>>, vector<1x4x8xf32>
    %130 = vector.shape_cast %129 : vector<1x4x8xf32> to vector<4x8xf32>
    %cst_131 = arith.constant dense<0.000000e+00> : vector<4x256xf32>
    %131 = tpu.matmul %130, %128, %cst_131 {dimension_numbers = #tpu.dot_dimension_numbers<[1], [0], [0], [1], [0, 0, 1, 1], [], []>} : vector<4x8xf32>, vector<8x256xf32>, vector<4x256xf32> -> vector<4x256xf32>
    %132 = arith.addf %127, %131 : vector<4x256xf32>
    %133 = vector.broadcast %3 : vector<1x256xf32> to vector<4x256xf32>
    %134 = arith.mulf %132, %133 : vector<4x256xf32>
    %c0_132 = arith.constant 0 : index
    %c112_133 = arith.constant 112 : index
    %135 = vector.load %arg9[%c0_132, %c112_133] : memref<16x512xf32, #tpu.memory_space<vmem>>, vector<8x256xf32>
    %c1_134 = arith.constant 1 : index
    %c0_135 = arith.constant 0 : index
    %c0_136 = arith.constant 0 : index
    %136 = vector.load %arg5[%c1_134, %c0_135, %c0_136] : memref<9x4x8xf32, #tpu.memory_space<vmem>>, vector<1x4x8xf32>
    %137 = vector.shape_cast %136 : vector<1x4x8xf32> to vector<4x8xf32>
    %cst_137 = arith.constant dense<0.000000e+00> : vector<4x256xf32>
    %138 = tpu.matmul %137, %135, %cst_137 {dimension_numbers = #tpu.dot_dimension_numbers<[1], [0], [0], [1], [0, 0, 1, 1], [], []>} : vector<4x8xf32>, vector<8x256xf32>, vector<4x256xf32> -> vector<4x256xf32>
    %c0_138 = arith.constant 0 : index
    %c128_139 = arith.constant 128 : index
    %139 = vector.load %arg9[%c0_138, %c128_139] : memref<16x512xf32, #tpu.memory_space<vmem>>, vector<8x256xf32>
    %c4_140 = arith.constant 4 : index
    %c0_141 = arith.constant 0 : index
    %c0_142 = arith.constant 0 : index
    %140 = vector.load %arg5[%c4_140, %c0_141, %c0_142] : memref<9x4x8xf32, #tpu.memory_space<vmem>>, vector<1x4x8xf32>
    %141 = vector.shape_cast %140 : vector<1x4x8xf32> to vector<4x8xf32>
    %cst_143 = arith.constant dense<0.000000e+00> : vector<4x256xf32>
    %142 = tpu.matmul %141, %139, %cst_143 {dimension_numbers = #tpu.dot_dimension_numbers<[1], [0], [0], [1], [0, 0, 1, 1], [], []>} : vector<4x8xf32>, vector<8x256xf32>, vector<4x256xf32> -> vector<4x256xf32>
    %143 = arith.addf %138, %142 : vector<4x256xf32>
    %c0_144 = arith.constant 0 : index
    %c144_145 = arith.constant 144 : index
    %144 = vector.load %arg9[%c0_144, %c144_145] : memref<16x512xf32, #tpu.memory_space<vmem>>, vector<8x256xf32>
    %c7_146 = arith.constant 7 : index
    %c0_147 = arith.constant 0 : index
    %c0_148 = arith.constant 0 : index
    %145 = vector.load %arg5[%c7_146, %c0_147, %c0_148] : memref<9x4x8xf32, #tpu.memory_space<vmem>>, vector<1x4x8xf32>
    %146 = vector.shape_cast %145 : vector<1x4x8xf32> to vector<4x8xf32>
    %cst_149 = arith.constant dense<0.000000e+00> : vector<4x256xf32>
    %147 = tpu.matmul %146, %144, %cst_149 {dimension_numbers = #tpu.dot_dimension_numbers<[1], [0], [0], [1], [0, 0, 1, 1], [], []>} : vector<4x8xf32>, vector<8x256xf32>, vector<4x256xf32> -> vector<4x256xf32>
    %148 = arith.addf %143, %147 : vector<4x256xf32>
    %149 = arith.addf %134, %148 : vector<4x256xf32>
    %c0_150 = arith.constant 0 : index
    %c113_151 = arith.constant 113 : index
    %150 = vector.load %arg9[%c0_150, %c113_151] : memref<16x512xf32, #tpu.memory_space<vmem>>, vector<8x256xf32>
    %c2_152 = arith.constant 2 : index
    %c0_153 = arith.constant 0 : index
    %c0_154 = arith.constant 0 : index
    %151 = vector.load %arg5[%c2_152, %c0_153, %c0_154] : memref<9x4x8xf32, #tpu.memory_space<vmem>>, vector<1x4x8xf32>
    %152 = vector.shape_cast %151 : vector<1x4x8xf32> to vector<4x8xf32>
    %cst_155 = arith.constant dense<0.000000e+00> : vector<4x256xf32>
    %153 = tpu.matmul %152, %150, %cst_155 {dimension_numbers = #tpu.dot_dimension_numbers<[1], [0], [0], [1], [0, 0, 1, 1], [], []>} : vector<4x8xf32>, vector<8x256xf32>, vector<4x256xf32> -> vector<4x256xf32>
    %c0_156 = arith.constant 0 : index
    %c129_157 = arith.constant 129 : index
    %154 = vector.load %arg9[%c0_156, %c129_157] : memref<16x512xf32, #tpu.memory_space<vmem>>, vector<8x256xf32>
    %c5_158 = arith.constant 5 : index
    %c0_159 = arith.constant 0 : index
    %c0_160 = arith.constant 0 : index
    %155 = vector.load %arg5[%c5_158, %c0_159, %c0_160] : memref<9x4x8xf32, #tpu.memory_space<vmem>>, vector<1x4x8xf32>
    %156 = vector.shape_cast %155 : vector<1x4x8xf32> to vector<4x8xf32>
    %cst_161 = arith.constant dense<0.000000e+00> : vector<4x256xf32>
    %157 = tpu.matmul %156, %154, %cst_161 {dimension_numbers = #tpu.dot_dimension_numbers<[1], [0], [0], [1], [0, 0, 1, 1], [], []>} : vector<4x8xf32>, vector<8x256xf32>, vector<4x256xf32> -> vector<4x256xf32>
    %158 = arith.addf %153, %157 : vector<4x256xf32>
    %c0_162 = arith.constant 0 : index
    %c145_163 = arith.constant 145 : index
    %159 = vector.load %arg9[%c0_162, %c145_163] : memref<16x512xf32, #tpu.memory_space<vmem>>, vector<8x256xf32>
    %c8_164 = arith.constant 8 : index
    %c0_165 = arith.constant 0 : index
    %c0_166 = arith.constant 0 : index
    %160 = vector.load %arg5[%c8_164, %c0_165, %c0_166] : memref<9x4x8xf32, #tpu.memory_space<vmem>>, vector<1x4x8xf32>
    %161 = vector.shape_cast %160 : vector<1x4x8xf32> to vector<4x8xf32>
    %cst_167 = arith.constant dense<0.000000e+00> : vector<4x256xf32>
    %162 = tpu.matmul %161, %159, %cst_167 {dimension_numbers = #tpu.dot_dimension_numbers<[1], [0], [0], [1], [0, 0, 1, 1], [], []>} : vector<4x8xf32>, vector<8x256xf32>, vector<4x256xf32> -> vector<4x256xf32>
    %163 = arith.addf %158, %162 : vector<4x256xf32>
    %164 = vector.broadcast %4 : vector<1x256xf32> to vector<4x256xf32>
    %165 = arith.mulf %163, %164 : vector<4x256xf32>
    %166 = arith.addf %149, %165 : vector<4x256xf32>
    %c2_168 = arith.constant 2 : index
    %c0_169 = arith.constant 0 : index
    %c0_170 = arith.constant 0 : index
    %167 = vector.load %arg7[%c2_168, %c0_169, %c0_170] : memref<4x16x1xf32, #tpu.memory_space<vmem>>, vector<1x16x1xf32>
    %168 = vector.shape_cast %167 : vector<1x16x1xf32> to vector<16x1xf32>
    %169 = vector.extract_strided_slice %168 {offsets = [0, 0], sizes = [4, 1], strides = [1, 1]} : vector<16x1xf32> to vector<4x1xf32>
    %170 = vector.broadcast %169 : vector<4x1xf32> to vector<4x256xf32>
    %171 = arith.addf %166, %170 : vector<4x256xf32>
    %cst_171 = arith.constant 0.000000e+00 : f32
    %172 = vector.broadcast %cst_171 : f32 to vector<4x256xf32>
    %173 = arith.maximumf %171, %172 : vector<4x256xf32>
    %c0_172 = arith.constant 0 : index
    %c128_173 = arith.constant 128 : index
    %174 = vector.load %arg9[%c0_172, %c128_173] : memref<16x512xf32, #tpu.memory_space<vmem>>, vector<4x256xf32>
    tpu.vector_store %arg9[%c0_172, %c128_173], %173 {strides = array<i32>} : memref<16x512xf32, #tpu.memory_space<vmem>>, vector<4x256xf32>,
    %c0_174 = arith.constant 0 : index
    %c111_175 = arith.constant 111 : index
    %175 = vector.load %arg9[%c0_174, %c111_175] : memref<16x512xf32, #tpu.memory_space<vmem>>, vector<4x256xf32>
    %c0_176 = arith.constant 0 : index
    %c0_177 = arith.constant 0 : index
    %c0_178 = arith.constant 0 : index
    %176 = vector.load %arg6[%c0_176, %c0_177, %c0_178] : memref<9x4x4xf32, #tpu.memory_space<vmem>>, vector<1x4x4xf32>
    %177 = vector.shape_cast %176 : vector<1x4x4xf32> to vector<4x4xf32>
    %cst_179 = arith.constant dense<0.000000e+00> : vector<4x256xf32>
    %178 = tpu.matmul %177, %175, %cst_179 {dimension_numbers = #tpu.dot_dimension_numbers<[1], [0], [0], [1], [0, 0, 1, 1], [], []>} : vector<4x4xf32>, vector<4x256xf32>, vector<4x256xf32> -> vector<4x256xf32>
    %c0_180 = arith.constant 0 : index
    %c127_181 = arith.constant 127 : index
    %179 = vector.load %arg9[%c0_180, %c127_181] : memref<16x512xf32, #tpu.memory_space<vmem>>, vector<4x256xf32>
    %c3_182 = arith.constant 3 : index
    %c0_183 = arith.constant 0 : index
    %c0_184 = arith.constant 0 : index
    %180 = vector.load %arg6[%c3_182, %c0_183, %c0_184] : memref<9x4x4xf32, #tpu.memory_space<vmem>>, vector<1x4x4xf32>
    %181 = vector.shape_cast %180 : vector<1x4x4xf32> to vector<4x4xf32>
    %cst_185 = arith.constant dense<0.000000e+00> : vector<4x256xf32>
    %182 = tpu.matmul %181, %179, %cst_185 {dimension_numbers = #tpu.dot_dimension_numbers<[1], [0], [0], [1], [0, 0, 1, 1], [], []>} : vector<4x4xf32>, vector<4x256xf32>, vector<4x256xf32> -> vector<4x256xf32>
    %183 = arith.addf %178, %182 : vector<4x256xf32>
    %c0_186 = arith.constant 0 : index
    %c143_187 = arith.constant 143 : index
    %184 = vector.load %arg9[%c0_186, %c143_187] : memref<16x512xf32, #tpu.memory_space<vmem>>, vector<4x256xf32>
    %c6_188 = arith.constant 6 : index
    %c0_189 = arith.constant 0 : index
    %c0_190 = arith.constant 0 : index
    %185 = vector.load %arg6[%c6_188, %c0_189, %c0_190] : memref<9x4x4xf32, #tpu.memory_space<vmem>>, vector<1x4x4xf32>
    %186 = vector.shape_cast %185 : vector<1x4x4xf32> to vector<4x4xf32>
    %cst_191 = arith.constant dense<0.000000e+00> : vector<4x256xf32>
    %187 = tpu.matmul %186, %184, %cst_191 {dimension_numbers = #tpu.dot_dimension_numbers<[1], [0], [0], [1], [0, 0, 1, 1], [], []>} : vector<4x4xf32>, vector<4x256xf32>, vector<4x256xf32> -> vector<4x256xf32>
    %188 = arith.addf %183, %187 : vector<4x256xf32>
    %189 = vector.broadcast %3 : vector<1x256xf32> to vector<4x256xf32>
    %190 = arith.mulf %188, %189 : vector<4x256xf32>
    %c0_192 = arith.constant 0 : index
    %c112_193 = arith.constant 112 : index
    %191 = vector.load %arg9[%c0_192, %c112_193] : memref<16x512xf32, #tpu.memory_space<vmem>>, vector<4x256xf32>
    %c1_194 = arith.constant 1 : index
    %c0_195 = arith.constant 0 : index
    %c0_196 = arith.constant 0 : index
    %192 = vector.load %arg6[%c1_194, %c0_195, %c0_196] : memref<9x4x4xf32, #tpu.memory_space<vmem>>, vector<1x4x4xf32>
    %193 = vector.shape_cast %192 : vector<1x4x4xf32> to vector<4x4xf32>
    %cst_197 = arith.constant dense<0.000000e+00> : vector<4x256xf32>
    %194 = tpu.matmul %193, %191, %cst_197 {dimension_numbers = #tpu.dot_dimension_numbers<[1], [0], [0], [1], [0, 0, 1, 1], [], []>} : vector<4x4xf32>, vector<4x256xf32>, vector<4x256xf32> -> vector<4x256xf32>
    %c0_198 = arith.constant 0 : index
    %c128_199 = arith.constant 128 : index
    %195 = vector.load %arg9[%c0_198, %c128_199] : memref<16x512xf32, #tpu.memory_space<vmem>>, vector<4x256xf32>
    %c4_200 = arith.constant 4 : index
    %c0_201 = arith.constant 0 : index
    %c0_202 = arith.constant 0 : index
    %196 = vector.load %arg6[%c4_200, %c0_201, %c0_202] : memref<9x4x4xf32, #tpu.memory_space<vmem>>, vector<1x4x4xf32>
    %197 = vector.shape_cast %196 : vector<1x4x4xf32> to vector<4x4xf32>
    %cst_203 = arith.constant dense<0.000000e+00> : vector<4x256xf32>
    %198 = tpu.matmul %197, %195, %cst_203 {dimension_numbers = #tpu.dot_dimension_numbers<[1], [0], [0], [1], [0, 0, 1, 1], [], []>} : vector<4x4xf32>, vector<4x256xf32>, vector<4x256xf32> -> vector<4x256xf32>
    %199 = arith.addf %194, %198 : vector<4x256xf32>
    %c0_204 = arith.constant 0 : index
    %c144_205 = arith.constant 144 : index
    %200 = vector.load %arg9[%c0_204, %c144_205] : memref<16x512xf32, #tpu.memory_space<vmem>>, vector<4x256xf32>
    %c7_206 = arith.constant 7 : index
    %c0_207 = arith.constant 0 : index
    %c0_208 = arith.constant 0 : index
    %201 = vector.load %arg6[%c7_206, %c0_207, %c0_208] : memref<9x4x4xf32, #tpu.memory_space<vmem>>, vector<1x4x4xf32>
    %202 = vector.shape_cast %201 : vector<1x4x4xf32> to vector<4x4xf32>
    %cst_209 = arith.constant dense<0.000000e+00> : vector<4x256xf32>
    %203 = tpu.matmul %202, %200, %cst_209 {dimension_numbers = #tpu.dot_dimension_numbers<[1], [0], [0], [1], [0, 0, 1, 1], [], []>} : vector<4x4xf32>, vector<4x256xf32>, vector<4x256xf32> -> vector<4x256xf32>
    %204 = arith.addf %199, %203 : vector<4x256xf32>
    %205 = arith.addf %190, %204 : vector<4x256xf32>
    %c0_210 = arith.constant 0 : index
    %c113_211 = arith.constant 113 : index
    %206 = vector.load %arg9[%c0_210, %c113_211] : memref<16x512xf32, #tpu.memory_space<vmem>>, vector<4x256xf32>
    %c2_212 = arith.constant 2 : index
    %c0_213 = arith.constant 0 : index
    %c0_214 = arith.constant 0 : index
    %207 = vector.load %arg6[%c2_212, %c0_213, %c0_214] : memref<9x4x4xf32, #tpu.memory_space<vmem>>, vector<1x4x4xf32>
    %208 = vector.shape_cast %207 : vector<1x4x4xf32> to vector<4x4xf32>
    %cst_215 = arith.constant dense<0.000000e+00> : vector<4x256xf32>
    %209 = tpu.matmul %208, %206, %cst_215 {dimension_numbers = #tpu.dot_dimension_numbers<[1], [0], [0], [1], [0, 0, 1, 1], [], []>} : vector<4x4xf32>, vector<4x256xf32>, vector<4x256xf32> -> vector<4x256xf32>
    %c0_216 = arith.constant 0 : index
    %c129_217 = arith.constant 129 : index
    %210 = vector.load %arg9[%c0_216, %c129_217] : memref<16x512xf32, #tpu.memory_space<vmem>>, vector<4x256xf32>
    %c5_218 = arith.constant 5 : index
    %c0_219 = arith.constant 0 : index
    %c0_220 = arith.constant 0 : index
    %211 = vector.load %arg6[%c5_218, %c0_219, %c0_220] : memref<9x4x4xf32, #tpu.memory_space<vmem>>, vector<1x4x4xf32>
    %212 = vector.shape_cast %211 : vector<1x4x4xf32> to vector<4x4xf32>
    %cst_221 = arith.constant dense<0.000000e+00> : vector<4x256xf32>
    %213 = tpu.matmul %212, %210, %cst_221 {dimension_numbers = #tpu.dot_dimension_numbers<[1], [0], [0], [1], [0, 0, 1, 1], [], []>} : vector<4x4xf32>, vector<4x256xf32>, vector<4x256xf32> -> vector<4x256xf32>
    %214 = arith.addf %209, %213 : vector<4x256xf32>
    %c0_222 = arith.constant 0 : index
    %c145_223 = arith.constant 145 : index
    %215 = vector.load %arg9[%c0_222, %c145_223] : memref<16x512xf32, #tpu.memory_space<vmem>>, vector<4x256xf32>
    %c8_224 = arith.constant 8 : index
    %c0_225 = arith.constant 0 : index
    %c0_226 = arith.constant 0 : index
    %216 = vector.load %arg6[%c8_224, %c0_225, %c0_226] : memref<9x4x4xf32, #tpu.memory_space<vmem>>, vector<1x4x4xf32>
    %217 = vector.shape_cast %216 : vector<1x4x4xf32> to vector<4x4xf32>
    %cst_227 = arith.constant dense<0.000000e+00> : vector<4x256xf32>
    %218 = tpu.matmul %217, %215, %cst_227 {dimension_numbers = #tpu.dot_dimension_numbers<[1], [0], [0], [1], [0, 0, 1, 1], [], []>} : vector<4x4xf32>, vector<4x256xf32>, vector<4x256xf32> -> vector<4x256xf32>
    %219 = arith.addf %214, %218 : vector<4x256xf32>
    %220 = vector.broadcast %4 : vector<1x256xf32> to vector<4x256xf32>
    %221 = arith.mulf %219, %220 : vector<4x256xf32>
    %222 = arith.addf %205, %221 : vector<4x256xf32>
    %c3_228 = arith.constant 3 : index
    %c0_229 = arith.constant 0 : index
    %c0_230 = arith.constant 0 : index
    %223 = vector.load %arg7[%c3_228, %c0_229, %c0_230] : memref<4x16x1xf32, #tpu.memory_space<vmem>>, vector<1x16x1xf32>
    %224 = vector.shape_cast %223 : vector<1x16x1xf32> to vector<16x1xf32>
    %225 = vector.extract_strided_slice %224 {offsets = [0, 0], sizes = [4, 1], strides = [1, 1]} : vector<16x1xf32> to vector<4x1xf32>
    %226 = vector.broadcast %225 : vector<4x1xf32> to vector<4x256xf32>
    %227 = arith.addf %222, %226 : vector<4x256xf32>
    %cst_231 = arith.constant 0.000000e+00 : f32
    %228 = vector.broadcast %cst_231 : f32 to vector<4x256xf32>
    %229 = arith.maximumf %227, %228 : vector<4x256xf32>
    %c0_232 = arith.constant 0 : index
    %c0_233 = arith.constant 0 : index
    %c0_234 = arith.constant 0 : index
    %230 = vector.load %arg8[%c0_232, %c0_233, %c0_234] : memref<1x4x256xf32, #tpu.memory_space<vmem>>, vector<1x4x256xf32>
    %231 = vector.shape_cast %230 : vector<1x4x256xf32> to vector<4x256xf32>
    %232 = vector.shape_cast %229 : vector<4x256xf32> to vector<1x4x256xf32>
    tpu.vector_store %arg8[%c0_232, %c0_233, %c0_234], %232 {strides = array<i32>} : memref<1x4x256xf32, #tpu.memory_space<vmem>>, vector<1x4x256xf32>,
    return
  }
  func.func @transform_0(%arg0: i32) -> (i32, i32, i32) {
    %c0_i32 = arith.constant 0 : i32
    %c0_i32_0 = arith.constant 0 : i32
    %c0_i32_1 = arith.constant 0 : i32
    return %arg0, %c0_i32, %c0_i32_0 : i32, i32, i32
  }
  func.func @transform_1(%arg0: i32) -> (i32, i32) {
    %c0_i32 = arith.constant 0 : i32
    %c0_i32_0 = arith.constant 0 : i32
    %c0_i32_1 = arith.constant 0 : i32
    return %c0_i32, %c0_i32_0 : i32, i32
  }
  func.func @transform_2(%arg0: i32) -> (i32, i32, i32) {
    %c0_i32 = arith.constant 0 : i32
    %c0_i32_0 = arith.constant 0 : i32
    %c0_i32_1 = arith.constant 0 : i32
    %c0_i32_2 = arith.constant 0 : i32
    return %c0_i32, %c0_i32_0, %c0_i32_1 : i32, i32, i32
  }
  func.func @transform_3(%arg0: i32) -> (i32, i32, i32) {
    %c0_i32 = arith.constant 0 : i32
    %c0_i32_0 = arith.constant 0 : i32
    %c0_i32_1 = arith.constant 0 : i32
    %c0_i32_2 = arith.constant 0 : i32
    return %c0_i32, %c0_i32_0, %c0_i32_1 : i32, i32, i32
  }
  func.func @transform_4(%arg0: i32) -> (i32, i32, i32) {
    %c0_i32 = arith.constant 0 : i32
    %c0_i32_0 = arith.constant 0 : i32
    %c0_i32_1 = arith.constant 0 : i32
    %c0_i32_2 = arith.constant 0 : i32
    return %c0_i32, %c0_i32_0, %c0_i32_1 : i32, i32, i32
  }
  func.func @transform_5(%arg0: i32) -> (i32, i32, i32) {
    %c0_i32 = arith.constant 0 : i32
    %c0_i32_0 = arith.constant 0 : i32
    %c0_i32_1 = arith.constant 0 : i32
    %c0_i32_2 = arith.constant 0 : i32
    return %c0_i32, %c0_i32_0, %c0_i32_1 : i32, i32, i32
  }
  func.func @transform_6(%arg0: i32) -> (i32, i32, i32) {
    %c0_i32 = arith.constant 0 : i32
    %c0_i32_0 = arith.constant 0 : i32
    %c0_i32_1 = arith.constant 0 : i32
    %c0_i32_2 = arith.constant 0 : i32
    return %c0_i32, %c0_i32_0, %c0_i32_1 : i32, i32, i32
  }
  func.func @transform_7(%arg0: i32) -> (i32, i32, i32) {
    %c0_i32 = arith.constant 0 : i32
    %c0_i32_0 = arith.constant 0 : i32
    %c0_i32_1 = arith.constant 0 : i32
    return %arg0, %c0_i32, %c0_i32_0 : i32, i32, i32
  }
}

</mosaic_0001>

<llo_original>
// kernel: up_final_forward.1
$region0: #{up_final_forward.1}
  #allocation0 [shape = 'u32[]', space=smem, size = 0x4, offset = 0x4, fixed_abs, tag = 'smem constant byte address 0x4 - core index']
  #allocation1 [shape = 'u32[144,128]{1,0:T(1,128)}', space=vmem, size = 0x12000, scoped, tag = 'internal scratch']
  #allocation2 [shape = 'f32[16,512]{1,0:T(8,128)}', space=vmem, size = 0x8000, scoped, tag = 'scratch operand']
  %s0 = inlined_call_operand.vmem [shape: f32[2,4,256], index: 0, kind: input, shape index: {}]
  %s1 = inlined_call_operand.vmem [shape: f32[2,256], index: 1, kind: input, shape index: {}]
  %s2 = inlined_call_operand.vmem [shape: f32[9,16,4], index: 2, kind: input, shape index: {}]
  %s3 = inlined_call_operand.vmem [shape: f32[9,8,16], index: 3, kind: input, shape index: {}]
  %s4 = inlined_call_operand.vmem [shape: f32[9,4,8], index: 4, kind: input, shape index: {}]
  %s5 = inlined_call_operand.vmem [shape: f32[9,4,4], index: 5, kind: input, shape index: {}]
  %s6 = inlined_call_operand.vmem [shape: f32[4,16,1], index: 6, kind: input, shape index: {}]
  %s7 = inlined_call_operand.vmem [shape: f32[2,4,256], index: 7, kind: output, shape index: {}]
  %s8 = sld [smem:[#allocation0]]
  $region61: #{up_final_forward.1} parent=0
    _
  %s10 = ssub.s32 1, %s8
  %s11 = scalar_select 0, %s10, %s8
  loop: start=0, step=1, limit=4
  $region2: #{up_final_forward.1} parent=0 // loop_pre_header
    _
  $region3: #{up_final_forward.1} parent=0 // loop_header
    %s13 = sphi 0, %s17
    %p14 = scmp.ge.s32.totalorder %s13, 4
    %s23 = sphi 0, %s25
    %s26 = sphi 0, %s23
    %s27 = sphi 0, %s26
    %s43 = sphi 0, %s27
    %s47 = sphi 0, %s47
    %s49 = sphi 0, %s47
    %s50 = sphi 0, %s49
    %s64 = sphi 0, %s50
    %s68 = sphi 0, %s68
    %s70 = sphi 0, %s68
    %s71 = sphi 0, %s70
    %s85 = sphi 0, %s71
    %s89 = sphi 0, %s89
    %s91 = sphi 0, %s89
    %s92 = sphi 0, %s91
    %s106 = sphi 0, %s92
    %s110 = sphi 0, %s110
    %s112 = sphi 0, %s110
    %s113 = sphi 0, %s112
    %s127 = sphi 0, %s113
    %s131 = sphi 0, %s131
    %s133 = sphi 0, %s131
    %s134 = sphi 0, %s133
    %s148 = sphi 0, %s134
    %s152 = sphi 0, %s152
    %s154 = sphi 0, %s152
    %s155 = sphi 0, %s154
    %s169 = sphi 0, %s155
    %s175 = sphi 0, %s177
    %s178 = sphi 0, %s175
    %s179 = sphi 0, %s178
    %s195 = sphi 0, %s179
  $region4: #{up_final_forward.1} parent=0 // loop_header_branch
    %16 = sbr.rel (%p14) target = $region8
  $region5: #{up_final_forward.1} parent=0 // loop_body
    %s18 = ssub.s32 %s13, 1
    %s19 = ssub.s32 %s13, 2
    %s20 = sadd.s32 %s13, 1
    %s21 = ssub.s32 %s13, %s20
    %p22 = scmp.eq.s32.totalorder %s21, 0
    %s24 = sadd.s32 %s23, 1
    %s25 = scalar_select %p22, %s23, %s24
    %p28 = pneg %p22
    %p29 = scmp.eq.s32.totalorder %s13, 1
    %p30 = por %p28, %p29
    %p31 = scmp.ne.s32.totalorder %s23, %s26
    %p32 = scmp.eq.s32.totalorder %s13, 0
    %p33 = por %p31, %p32
    %p34 = scmp.ne.s32.totalorder %s23, %s26
    %p35 = scmp.eq.s32.totalorder %s18, 1
    %p36 = por %p34, %p35
    %p37 = scmp.ne.s32.totalorder %s26, %s27
    %p38 = scmp.eq.s32.totalorder %s18, 0
    %p39 = por %p37, %p38
    %p40 = scmp.ne.s32.totalorder %s26, %s27
    %p41 = scmp.eq.s32.totalorder %s19, 1
    %p42 = por %p40, %p41
    %p44 = scmp.ne.s32.totalorder %s27, %s43
    %p45 = scmp.eq.s32.totalorder %s19, 0
    %p46 = por %p44, %p45
    %s48 = sadd.s32 %s47, 1
    %p51 = scmp.eq.s32.totalorder %s13, 1
    %p52 = scmp.ne.s32.totalorder %s47, %s49
    %p53 = scmp.eq.s32.totalorder %s13, 0
    %p54 = por %p52, %p53
    %p55 = scmp.ne.s32.totalorder %s47, %s49
    %p56 = scmp.eq.s32.totalorder %s18, 1
    %p57 = por %p55, %p56
    %p58 = scmp.ne.s32.totalorder %s49, %s50
    %p59 = scmp.eq.s32.totalorder %s18, 0
    %p60 = por %p58, %p59
    %p61 = scmp.ne.s32.totalorder %s49, %s50
    %p62 = scmp.eq.s32.totalorder %s19, 1
    %p63 = por %p61, %p62
    %p65 = scmp.ne.s32.totalorder %s50, %s64
    %p66 = scmp.eq.s32.totalorder %s19, 0
    %p67 = por %p65, %p66
    %s69 = sadd.s32 %s68, 1
    %p72 = scmp.eq.s32.totalorder %s13, 1
    %p73 = scmp.ne.s32.totalorder %s68, %s70
    %p74 = scmp.eq.s32.totalorder %s13, 0
    %p75 = por %p73, %p74
    %p76 = scmp.ne.s32.totalorder %s68, %s70
    %p77 = scmp.eq.s32.totalorder %s18, 1
    %p78 = por %p76, %p77
    %p79 = scmp.ne.s32.totalorder %s70, %s71
    %p80 = scmp.eq.s32.totalorder %s18, 0
    %p81 = por %p79, %p80
    %p82 = scmp.ne.s32.totalorder %s70, %s71
    %p83 = scmp.eq.s32.totalorder %s19, 1
    %p84 = por %p82, %p83
    %p86 = scmp.ne.s32.totalorder %s71, %s85
    %p87 = scmp.eq.s32.totalorder %s19, 0
    %p88 = por %p86, %p87
    %s90 = sadd.s32 %s89, 1
    %p93 = scmp.eq.s32.totalorder %s13, 1
    %p94 = scmp.ne.s32.totalorder %s89, %s91
    %p95 = scmp.eq.s32.totalorder %s13, 0
    %p96 = por %p94, %p95
    %p97 = scmp.ne.s32.totalorder %s89, %s91
    %p98 = scmp.eq.s32.totalorder %s18, 1
    %p99 = por %p97, %p98
    %p100 = scmp.ne.s32.totalorder %s91, %s92
    %p101 = scmp.eq.s32.totalorder %s18, 0
    %p102 = por %p100, %p101
    %p103 = scmp.ne.s32.totalorder %s91, %s92
    %p104 = scmp.eq.s32.totalorder %s19, 1
    %p105 = por %p103, %p104
    %p107 = scmp.ne.s32.totalorder %s92, %s106
    %p108 = scmp.eq.s32.totalorder %s19, 0
    %p109 = por %p107, %p108
    %s111 = sadd.s32 %s110, 1
    %p114 = scmp.eq.s32.totalorder %s13, 1
    %p115 = scmp.ne.s32.totalorder %s110, %s112
    %p116 = scmp.eq.s32.totalorder %s13, 0
    %p117 = por %p115, %p116
    %p118 = scmp.ne.s32.totalorder %s110, %s112
    %p119 = scmp.eq.s32.totalorder %s18, 1
    %p120 = por %p118, %p119
    %p121 = scmp.ne.s32.totalorder %s112, %s113
    %p122 = scmp.eq.s32.totalorder %s18, 0
    %p123 = por %p121, %p122
    %p124 = scmp.ne.s32.totalorder %s112, %s113
    %p125 = scmp.eq.s32.totalorder %s19, 1
    %p126 = por %p124, %p125
    %p128 = scmp.ne.s32.totalorder %s113, %s127
    %p129 = scmp.eq.s32.totalorder %s19, 0
    %p130 = por %p128, %p129
    %s132 = sadd.s32 %s131, 1
    %p135 = scmp.eq.s32.totalorder %s13, 1
    %p136 = scmp.ne.s32.totalorder %s131, %s133
    %p137 = scmp.eq.s32.totalorder %s13, 0
    %p138 = por %p136, %p137
    %p139 = scmp.ne.s32.totalorder %s131, %s133
    %p140 = scmp.eq.s32.totalorder %s18, 1
    %p141 = por %p139, %p140
    %p142 = scmp.ne.s32.totalorder %s133, %s134
    %p143 = scmp.eq.s32.totalorder %s18, 0
    %p144 = por %p142, %p143
    %p145 = scmp.ne.s32.totalorder %s133, %s134
    %p146 = scmp.eq.s32.totalorder %s19, 1
    %p147 = por %p145, %p146
    %p149 = scmp.ne.s32.totalorder %s134, %s148
    %p150 = scmp.eq.s32.totalorder %s19, 0
    %p151 = por %p149, %p150
    %s153 = sadd.s32 %s152, 1
    %p156 = scmp.eq.s32.totalorder %s13, 1
    %p157 = scmp.ne.s32.totalorder %s152, %s154
    %p158 = scmp.eq.s32.totalorder %s13, 0
    %p159 = por %p157, %p158
    %p160 = scmp.ne.s32.totalorder %s152, %s154
    %p161 = scmp.eq.s32.totalorder %s18, 1
    %p162 = por %p160, %p161
    %p163 = scmp.ne.s32.totalorder %s154, %s155
    %p164 = scmp.eq.s32.totalorder %s18, 0
    %p165 = por %p163, %p164
    %p166 = scmp.ne.s32.totalorder %s154, %s155
    %p167 = scmp.eq.s32.totalorder %s19, 1
    %p168 = por %p166, %p167
    %p170 = scmp.ne.s32.totalorder %s155, %s169
    %p171 = scmp.eq.s32.totalorder %s19, 0
    %p172 = por %p170, %p171
    %s173 = ssub.s32 %s13, %s20
    %p174 = scmp.eq.s32.totalorder %s173, 0
    %s176 = sadd.s32 %s175, 1
    %s177 = scalar_select %p174, %s175, %s176
    %p180 = pneg %p174
    %p181 = scmp.eq.s32.totalorder %s13, 1
    %p182 = por %p180, %p181
    %p183 = scmp.ne.s32.totalorder %s175, %s178
    %p184 = scmp.eq.s32.totalorder %s13, 0
    %p185 = por %p183, %p184
    %p186 = scmp.ne.s32.totalorder %s175, %s178
    %p187 = scmp.eq.s32.totalorder %s18, 1
    %p188 = por %p186, %p187
    %p189 = scmp.ne.s32.totalorder %s178, %s179
    %p190 = scmp.eq.s32.totalorder %s18, 0
    %p191 = por %p189, %p190
    %p192 = scmp.ne.s32.totalorder %s178, %s179
    %p193 = scmp.eq.s32.totalorder %s19, 1
    %p194 = por %p192, %p193
    %p196 = scmp.ne.s32.totalorder %s179, %s195
    %p197 = scmp.eq.s32.totalorder %s19, 0
    %p198 = por %p196, %p197
    %p199 = scmp.le.s32.totalorder 1, %s13
    %p200 = scmp.lt.s32.totalorder %s13, 3
    %p201 = pnand %p199, %p200
    %p202 = pneg %p201
    // Predicated region
    $region9: #{up_final_forward.1} parent=5 // pred_check
      _
    $region10: #{up_final_forward.1} parent=5 // pred_check_branch
      %204 = sbr.rel (%p201) target = $region12
    $region11: #{up_final_forward.1} parent=5 // pred_region
      %s205 = ssub.s32 %s13, 1
      // Predicated region
      $region13: #{up_final_forward.1} parent=11 // pred_check
        %p206 = pneg %p60
      $region14: #{up_final_forward.1} parent=11 // pred_check_branch
        %208 = sbr.rel (%p206) target = $region16
      $region15: #{up_final_forward.1} parent=11 // pred_region
        _
      $region16: #{up_final_forward.1} parent=11 // pred_fallthru
        _
      // Predicated region
      $region17: #{up_final_forward.1} parent=11 // pred_check
        %p209 = pneg %p81
      $region18: #{up_final_forward.1} parent=11 // pred_check_branch
        %211 = sbr.rel (%p209) target = $region20
      $region19: #{up_final_forward.1} parent=11 // pred_region
        _
      $region20: #{up_final_forward.1} parent=11 // pred_fallthru
        _
      // Predicated region
      $region21: #{up_final_forward.1} parent=11 // pred_check
        %p212 = pneg %p102
      $region22: #{up_final_forward.1} parent=11 // pred_check_branch
        %214 = sbr.rel (%p212) target = $region24
      $region23: #{up_final_forward.1} parent=11 // pred_region
        _
      $region24: #{up_final_forward.1} parent=11 // pred_fallthru
        _
      // Predicated region
      $region25: #{up_final_forward.1} parent=11 // pred_check
        %p215 = pneg %p123
      $region26: #{up_final_forward.1} parent=11 // pred_check_branch
        %217 = sbr.rel (%p215) target = $region28
      $region27: #{up_final_forward.1} parent=11 // pred_region
        _
      $region28: #{up_final_forward.1} parent=11 // pred_fallthru
        _
      // Predicated region
      $region29: #{up_final_forward.1} parent=11 // pred_check
        %p218 = pneg %p144
      $region30: #{up_final_forward.1} parent=11 // pred_check_branch
        %220 = sbr.rel (%p218) target = $region32
      $region31: #{up_final_forward.1} parent=11 // pred_region
        _
      $region32: #{up_final_forward.1} parent=11 // pred_fallthru
        _
      // Predicated region
      $region33: #{up_final_forward.1} parent=11 // pred_check
        %p221 = pneg %p165
      $region34: #{up_final_forward.1} parent=11 // pred_check_branch
        %223 = sbr.rel (%p221) target = $region36
      $region35: #{up_final_forward.1} parent=11 // pred_region
        _
      $region36: #{up_final_forward.1} parent=11 // pred_fallthru
        _
    $region12: #{up_final_forward.1} parent=5 // pred_fallthru
      _
    %p224 = scmp.lt.s32.totalorder %s13, 2
    // Predicated region
    $region37: #{up_final_forward.1} parent=5 // pred_check
      %p225 = pneg %p224
    $region38: #{up_final_forward.1} parent=5 // pred_check_branch
      %227 = sbr.rel (%p225) target = $region40
    $region39: #{up_final_forward.1} parent=5 // pred_region
      // Predicated region
      $region41: #{up_final_forward.1} parent=39 // pred_check
        %p228 = pneg %p33
      $region42: #{up_final_forward.1} parent=39 // pred_check_branch
        %230 = sbr.rel (%p228) target = $region44
      $region43: #{up_final_forward.1} parent=39 // pred_region
        %p231 = scmp.lt.s32.totalorder %s13, 1
        %s232 = scalar_select %p231, %s13, 1
        %s233 = smul.addr %s232, 2
        %s234 = smul.addr %s233, 4
        %s235 = scalar_lea.vmem %s0, %s234
      $region44: #{up_final_forward.1} parent=39 // pred_fallthru
        _
    $region40: #{up_final_forward.1} parent=5 // pred_fallthru
      _
    %p236 = scmp.le.s32.totalorder 1, %s13
    %p237 = scmp.lt.s32.totalorder %s13, 3
    %p238 = pnand %p236, %p237
    %p239 = pneg %p238
    // Predicated region
    $region45: #{up_final_forward.1} parent=5 // pred_check
      _
    $region46: #{up_final_forward.1} parent=5 // pred_check_branch
      %241 = sbr.rel (%p238) target = $region48
    $region47: #{up_final_forward.1} parent=5 // pred_region
      %s242 = ssub.s32 %s13, 1
      %p243 = scmp.lt.s32.totalorder %s18, 1
      %s244 = scalar_select %p243, %s18, 1
      %s245 = smul.addr %s244, 2
      %s246 = smul.addr %s245, 4
      %s247 = scalar_lea.vmem %s0, %s246
      %p248 = pneg %p39
      %p249 = pneg %p36
      %p250 = pneg %p60
      %p251 = pneg %p57
      %p252 = pneg %p81
      %p253 = pneg %p78
      %p254 = pneg %p102
      %p255 = pneg %p99
      %p256 = pneg %p123
      %p257 = pneg %p120
      %p258 = pneg %p144
      %p259 = pneg %p141
      %p260 = pneg %p165
      %p261 = pneg %p162
      %p262 = pneg %p191
      %p263 = pneg %p188
      %p264 = scmp.lt.s32.totalorder %s18, 1
      %s265 = scalar_select %p264, %s18, 1
      %s266 = smul.addr %s265, 2
      %s267 = smul.addr %s266, 4
      %s268 = scalar_lea.vmem %s7, %s267
      %p269 = scmp.lt.s32.totalorder %s18, 1
      %s270 = scalar_select %p269, %s18, 1
      %s271 = smul.addr %s270, 2
      %s272 = smul.addr %s271, 4
      %s273 = scalar_lea.vmem %s0, %s272
      %p274 = scmp.lt.s32.totalorder %s18, 1
      %s275 = scalar_select %p274, %s18, 1
      %s276 = smul.addr %s275, 2
      %s277 = smul.addr %s276, 4
      %s278 = scalar_lea.vmem %s7, %s277
      %279 = vst [vmem:[#allocation2] sm:$0xff] 0.0
      %280 = vst [vmem:[#allocation2 + $0x20] sm:$0xff] 0.0
      %281 = vst [vmem:[#allocation2 + $0x18] sm:$0xff] 0.0
      %282 = vst [vmem:[#allocation2 + $0x38] sm:$0xff] 0.0
      %v283 = vld [vmem:[%s1] ss:$2 sm:$0x3]
      %s284 = scalar_lea.vmem %s1, 1
      %v285 = vld [vmem:[%s284] ss:$2 sm:$0x3]
      %v286 = vld [vmem:[%s273] sm:$0xff]
      %v288 = vcombine.high %v286, %v286
      %290 = vst [vmem:[#allocation2 + $0x8] sm:$0xf] %v286
      %291 = vst [vmem:[#allocation2 + $0x10] sm:$0xf] %v288
      %v292 = vld [vmem:[#allocation2] sm:$0xf]
      %v293 = vld [vmem:[#allocation2 + $0x8] sm:$0xf]
      %v294 = vld [vmem:[#allocation2 + $0x10] sm:$0xf]
      %v295 = vld [vmem:[%s2] sm:$0xff]
      %v296 = vld [vmem:[%s2 + $0x8] sm:$0xff]
      %s297 = scalar_lea.vmem %s2, 48
      %v298 = vld [vmem:[%s297] sm:$0xff]
      %v299 = vld [vmem:[%s297 + $0x8] sm:$0xff]
      %303 = vrot.lane.b32.xlu0 %v292, 1
      %v304 = vpop.permute.xlu0 %303
      %305 = vrot.lane.b32.xlu0 %v293, 1
      %v306 = vpop.permute.xlu0 %305
      %307 = vrot.lane.b32.xlu0 %v294, 1
      %v308 = vpop.permute.xlu0 %307
      %vm309 = vcmask 7168
      %v310 = vsel %vm309, %v304, %v306
      %v311 = vsel %vm309, %v306, %v308
      %vm312 = vcmask 31744
      %v314 = vsel %vm312, %v298, 0
      %v317 = vsel %vm312, %v299, 0
      %vm319 = vcmask 1043456
      %v320 = vsel %vm319, %v310, 0
      %v322 = vsel %vm319, %v311, 0
      %324 = vmatprep.subr.mxu0 0.0
      %325 = vmatpush1.msra.mxu0 0.0
      %326 = vmatprep.subr.mxu0 0.0
      %327 = vmatpush1.msra.mxu0 0.0
      %328 = vmatprep.subr.mxu0 0.0
      %329 = vmatpush1.msra.mxu0 0.0
      %330 = vmatprep.subr.mxu0 0.0
      %331 = vmatpush1.msra.mxu0 0.0
      %332 = vmatprep.subr.mxu0 0.0
      %333 = vmatpush1.msra.mxu0 0.0
      %334 = vmatprep.subr.mxu0 0.0
      %335 = vmatpush1.msra.mxu0 0.0
      %336 = vmatprep.subr.mxu0 0.0
      %337 = vmatpush1.msra.mxu0 0.0
      %338 = vmatprep.subr.mxu0 0.0
      %339 = vmatpush1.msra.mxu0 0.0
      %340 = vmatprep.subr.mxu0 0.0
      %341 = vmatpush1.msra.mxu0 0.0
      %342 = vmatprep.subr.mxu0 0.0
      %343 = vmatpush1.msra.mxu0 0.0
      %344 = vmatprep.subr.mxu0 0.0
      %345 = vmatpush1.msra.mxu0 0.0
      %346 = vmatprep.subr.mxu0 0.0
      %347 = vmatpush1.msra.mxu0 0.0
      %348 = vmatprep.subr.mxu0 0.0
      %349 = vmatpush1.msra.mxu0 0.0
      %350 = vmatprep.subr.mxu0 0.0
      %351 = vmatpush1.msra.mxu0 0.0
      %352 = vmatprep.subr.mxu0 0.0
      %353 = vmatpush1.msra.mxu0 0.0
      %354 = vmatprep.subr.mxu0 %v322
      %355 = vmatpush1.msra.mxu0 %v320
      %356 = vmatprep.subr.mxu0 0.0
      %357 = vmatpush2.msra.mxu0 0.0
      %358 = vmatprep.subr.mxu0 0.0
      %359 = vmatpush2.msra.mxu0 0.0
      %360 = vmatprep.subr.mxu0 0.0
      %361 = vmatpush2.msra.mxu0 0.0
      %362 = vmatprep.subr.mxu0 0.0
      %363 = vmatpush2.msra.mxu0 0.0
      %364 = vmatprep.subr.mxu0 0.0
      %365 = vmatpush2.msra.mxu0 0.0
      %366 = vmatprep.subr.mxu0 0.0
      %367 = vmatpush2.msra.mxu0 0.0
      %368 = vmatprep.subr.mxu0 0.0
      %369 = vmatpush2.msra.mxu0 0.0
      %370 = vmatprep.subr.mxu0 0.0
      %371 = vmatpush2.msra.mxu0 0.0
      %372 = vmatprep.subr.mxu0 0.0
      %373 = vmatpush2.msra.mxu0 0.0
      %374 = vmatprep.subr.mxu0 0.0
      %375 = vmatpush2.msra.mxu0 0.0
      %376 = vmatprep.subr.mxu0 0.0
      %377 = vmatpush2.msra.mxu0 0.0
      %378 = vmatprep.subr.mxu0 0.0
      %379 = vmatpush2.msra.mxu0 0.0
      %380 = vmatprep.subr.mxu0 0.0
      %381 = vmatpush2.msra.mxu0 0.0
      %382 = vmatprep.subr.mxu0 0.0
      %383 = vmatpush2.msra.mxu0 0.0
      %384 = vmatprep.subr.mxu0 0.0
      %385 = vmatpush2.msra.mxu0 0.0
      %386 = vmatprep.subr.mxu0 0.0
      %387 = vmatpush2.msra.mxu0 0.0
      %388 = vmatprep.mubr.f32.mxu0 0.0
      %389 = vmatmul.mubr.f32.gmra.mxu0 %v314
      %v390 = vpop.f32.mrf.mxu0
      %v391 = vadd.f32 0.0, %v390
      %v392 = vpop.f32.mrf.mxu0
      %v393 = vadd.f32 0.0, %v392
      %394 = vmatprep.mubr.f32.mxu0 0.0
      %395 = vmatmul.mubr.f32.gmra.mxu0 %v317
      %v396 = vpop.f32.mrf.mxu0
      %v397 = vadd.f32 0.0, %v396
      %v398 = vpop.f32.mrf.mxu0
      %v399 = vadd.f32 0.0, %v398
      %400 = vdwg.mxu0
      %401 = vrot.lane.b32.xlu0 %v292, 17
      %v402 = vpop.permute.xlu0 %401
      %403 = vrot.lane.b32.xlu0 %v293, 17
      %v404 = vpop.permute.xlu0 %403
      %405 = vrot.lane.b32.xlu0 %v294, 17
      %v406 = vpop.permute.xlu0 %405
      %vm407 = vcmask 138240
      %v408 = vsel %vm407, %v402, %v404
      %v409 = vsel %vm407, %v404, %v406
      %v411 = vsel %vm312, %v295, 0
      %v414 = vsel %vm312, %v296, 0
      %v416 = vsel %vm319, %v408, 0
      %v418 = vsel %vm319, %v409, 0
      %420 = vmatprep.subr.mxu0 0.0
      %421 = vmatpush1.msra.mxu0 0.0
      %422 = vmatprep.subr.mxu0 0.0
      %423 = vmatpush1.msra.mxu0 0.0
      %424 = vmatprep.subr.mxu0 0.0
      %425 = vmatpush1.msra.mxu0 0.0
      %426 = vmatprep.subr.mxu0 0.0
      %427 = vmatpush1.msra.mxu0 0.0
      %428 = vmatprep.subr.mxu0 0.0
      %429 = vmatpush1.msra.mxu0 0.0
      %430 = vmatprep.subr.mxu0 0.0
      %431 = vmatpush1.msra.mxu0 0.0
      %432 = vmatprep.subr.mxu0 0.0
      %433 = vmatpush1.msra.mxu0 0.0
      %434 = vmatprep.subr.mxu0 0.0
      %435 = vmatpush1.msra.mxu0 0.0
      %436 = vmatprep.subr.mxu0 0.0
      %437 = vmatpush1.msra.mxu0 0.0
      %438 = vmatprep.subr.mxu0 0.0
      %439 = vmatpush1.msra.mxu0 0.0
      %440 = vmatprep.subr.mxu0 0.0
      %441 = vmatpush1.msra.mxu0 0.0
      %442 = vmatprep.subr.mxu0 0.0
      %443 = vmatpush1.msra.mxu0 0.0
      %444 = vmatprep.subr.mxu0 0.0
      %445 = vmatpush1.msra.mxu0 0.0
      %446 = vmatprep.subr.mxu0 0.0
      %447 = vmatpush1.msra.mxu0 0.0
      %448 = vmatprep.subr.mxu0 0.0
      %449 = vmatpush1.msra.mxu0 0.0
      %450 = vmatprep.subr.mxu0 %v418
      %451 = vmatpush1.msra.mxu0 %v416
      %452 = vmatprep.subr.mxu0 0.0
      %453 = vmatpush2.msra.mxu0 0.0
      %454 = vmatprep.subr.mxu0 0.0
      %455 = vmatpush2.msra.mxu0 0.0
      %456 = vmatprep.subr.mxu0 0.0
      %457 = vmatpush2.msra.mxu0 0.0
      %458 = vmatprep.subr.mxu0 0.0
      %459 = vmatpush2.msra.mxu0 0.0
      %460 = vmatprep.subr.mxu0 0.0
      %461 = vmatpush2.msra.mxu0 0.0
      %462 = vmatprep.subr.mxu0 0.0
      %463 = vmatpush2.msra.mxu0 0.0
      %464 = vmatprep.subr.mxu0 0.0
      %465 = vmatpush2.msra.mxu0 0.0
      %466 = vmatprep.subr.mxu0 0.0
      %467 = vmatpush2.msra.mxu0 0.0
      %468 = vmatprep.subr.mxu0 0.0
      %469 = vmatpush2.msra.mxu0 0.0
      %470 = vmatprep.subr.mxu0 0.0
      %471 = vmatpush2.msra.mxu0 0.0
      %472 = vmatprep.subr.mxu0 0.0
      %473 = vmatpush2.msra.mxu0 0.0
      %474 = vmatprep.subr.mxu0 0.0
      %475 = vmatpush2.msra.mxu0 0.0
      %476 = vmatprep.subr.mxu0 0.0
      %477 = vmatpush2.msra.mxu0 0.0
      %478 = vmatprep.subr.mxu0 0.0
      %479 = vmatpush2.msra.mxu0 0.0
      %480 = vmatprep.subr.mxu0 0.0
      %481 = vmatpush2.msra.mxu0 0.0
      %482 = vmatprep.subr.mxu0 0.0
      %483 = vmatpush2.msra.mxu0 0.0
      %484 = vmatprep.mubr.f32.mxu0 0.0
      %485 = vmatmul.mubr.f32.gmra.mxu0 %v411
      %v486 = vpop.f32.mrf.mxu0
      %v487 = vadd.f32 %v391, %v486
      %v488 = vpop.f32.mrf.mxu0
      %v489 = vadd.f32 %v393, %v488
      %490 = vmatprep.mubr.f32.mxu0 0.0
      %491 = vmatmul.mubr.f32.gmra.mxu0 %v414
      %v492 = vpop.f32.mrf.mxu0
      %v493 = vadd.f32 %v397, %v492
      %v494 = vpop.f32.mrf.mxu0
      %v495 = vadd.f32 %v399, %v494
      %496 = vdwg.mxu0
      %v497 = vld [vmem:[#allocation2 + $0x8] sm:$0xf]
      %v498 = vld [vmem:[#allocation2 + $0x10] sm:$0xf]
      %v499 = vld [vmem:[#allocation2 + $0x18] sm:$0xf]
      %s500 = scalar_lea.vmem %s2, 96
      %v501 = vld [vmem:[%s500] sm:$0xff]
      %v502 = vld [vmem:[%s500 + $0x8] sm:$0xff]
      %506 = vrot.lane.b32.xlu0 %v497, 113
      %v507 = vpop.permute.xlu0 %506
      %508 = vrot.lane.b32.xlu0 %v498, 113
      %v509 = vpop.permute.xlu0 %508
      %510 = vrot.lane.b32.xlu0 %v499, 113
      %v511 = vpop.permute.xlu0 %510
      %vm512 = vcmask 924672
      %v513 = vsel %vm512, %v507, %v509
      %v514 = vsel %vm512, %v509, %v511
      %v516 = vsel %vm312, %v501, 0
      %v519 = vsel %vm312, %v502, 0
      %v521 = vsel %vm319, %v513, 0
      %v523 = vsel %vm319, %v514, 0
      %525 = vmatprep.subr.mxu0 0.0
      %526 = vmatpush1.msra.mxu0 0.0
      %527 = vmatprep.subr.mxu0 0.0
      %528 = vmatpush1.msra.mxu0 0.0
      %529 = vmatprep.subr.mxu0 0.0
      %530 = vmatpush1.msra.mxu0 0.0
      %531 = vmatprep.subr.mxu0 0.0
      %532 = vmatpush1.msra.mxu0 0.0
      %533 = vmatprep.subr.mxu0 0.0
      %534 = vmatpush1.msra.mxu0 0.0
      %535 = vmatprep.subr.mxu0 0.0
      %536 = vmatpush1.msra.mxu0 0.0
      %537 = vmatprep.subr.mxu0 0.0
      %538 = vmatpush1.msra.mxu0 0.0
      %539 = vmatprep.subr.mxu0 0.0
      %540 = vmatpush1.msra.mxu0 0.0
      %541 = vmatprep.subr.mxu0 0.0
      %542 = vmatpush1.msra.mxu0 0.0
      %543 = vmatprep.subr.mxu0 0.0
      %544 = vmatpush1.msra.mxu0 0.0
      %545 = vmatprep.subr.mxu0 0.0
      %546 = vmatpush1.msra.mxu0 0.0
      %547 = vmatprep.subr.mxu0 0.0
      %548 = vmatpush1.msra.mxu0 0.0
      %549 = vmatprep.subr.mxu0 0.0
      %550 = vmatpush1.msra.mxu0 0.0
      %551 = vmatprep.subr.mxu0 0.0
      %552 = vmatpush1.msra.mxu0 0.0
      %553 = vmatprep.subr.mxu0 0.0
      %554 = vmatpush1.msra.mxu0 0.0
      %555 = vmatprep.subr.mxu0 %v523
      %556 = vmatpush1.msra.mxu0 %v521
      %557 = vmatprep.subr.mxu0 0.0
      %558 = vmatpush2.msra.mxu0 0.0
      %559 = vmatprep.subr.mxu0 0.0
      %560 = vmatpush2.msra.mxu0 0.0
      %561 = vmatprep.subr.mxu0 0.0
      %562 = vmatpush2.msra.mxu0 0.0
      %563 = vmatprep.subr.mxu0 0.0
      %564 = vmatpush2.msra.mxu0 0.0
      %565 = vmatprep.subr.mxu0 0.0
      %566 = vmatpush2.msra.mxu0 0.0
      %567 = vmatprep.subr.mxu0 0.0
      %568 = vmatpush2.msra.mxu0 0.0
      %569 = vmatprep.subr.mxu0 0.0
      %570 = vmatpush2.msra.mxu0 0.0
      %571 = vmatprep.subr.mxu0 0.0
      %572 = vmatpush2.msra.mxu0 0.0
      %573 = vmatprep.subr.mxu0 0.0
      %574 = vmatpush2.msra.mxu0 0.0
      %575 = vmatprep.subr.mxu0 0.0
      %576 = vmatpush2.msra.mxu0 0.0
      %577 = vmatprep.subr.mxu0 0.0
      %578 = vmatpush2.msra.mxu0 0.0
      %579 = vmatprep.subr.mxu0 0.0
      %580 = vmatpush2.msra.mxu0 0.0
      %581 = vmatprep.subr.mxu0 0.0
      %582 = vmatpush2.msra.mxu0 0.0
      %583 = vmatprep.subr.mxu0 0.0
      %584 = vmatpush2.msra.mxu0 0.0
      %585 = vmatprep.subr.mxu0 0.0
      %586 = vmatpush2.msra.mxu0 0.0
      %587 = vmatprep.subr.mxu0 0.0
      %588 = vmatpush2.msra.mxu0 0.0
      %589 = vmatprep.mubr.f32.mxu0 0.0
      %590 = vmatmul.mubr.f32.gmra.mxu0 %v516
      %v591 = vpop.f32.mrf.mxu0
      %v592 = vadd.f32 0.0, %v591
      %v593 = vpop.f32.mrf.mxu0
      %v594 = vadd.f32 0.0, %v593
      %595 = vmatprep.mubr.f32.mxu0 0.0
      %596 = vmatmul.mubr.f32.gmra.mxu0 %v519
      %v597 = vpop.f32.mrf.mxu0
      %v598 = vadd.f32 0.0, %v597
      %v599 = vpop.f32.mrf.mxu0
      %v600 = vadd.f32 0.0, %v599
      %601 = vdwg.mxu0
      %v602 = vadd.f32 %v487, %v592
      %v603 = vadd.f32 %v489, %v594
      %v604 = vadd.f32 %v493, %v598
      %v605 = vadd.f32 %v495, %v600
      %v607 = vlaneseq
      %v608 = vshrl.u32 %v607, 7
      %v609 = vsub.s32 0, %v608
      %v610 = vrot.slane %v283, %v609
      %v611 = vlaneseq
      %v612 = vshrl.u32 %v611, 7
      %v613 = vsub.s32 1, %v612
      %v614 = vrot.slane %v283, %v613
      %v617 = vmul.f32 %v602, %v610
      %v618 = vmul.f32 %v603, %v614
      %v619 = vmul.f32 %v604, %v610
      %v620 = vmul.f32 %v605, %v614
      %s621 = scalar_lea.vmem %s2, 16
      %v622 = vld [vmem:[%s621] sm:$0xff]
      %v623 = vld [vmem:[%s621 + $0x8] sm:$0xff]
      %s624 = scalar_lea.vmem %s2, 64
      %v625 = vld [vmem:[%s624] sm:$0xff]
      %v626 = vld [vmem:[%s624 + $0x8] sm:$0xff]
      %v628 = vsel %vm312, %v625, 0
      %v631 = vsel %vm312, %v626, 0
      %v633 = vsel %vm319, %v293, 0
      %v635 = vsel %vm319, %v294, 0
      %637 = vmatprep.subr.mxu0 0.0
      %638 = vmatpush1.msra.mxu0 0.0
      %639 = vmatprep.subr.mxu0 0.0
      %640 = vmatpush1.msra.mxu0 0.0
      %641 = vmatprep.subr.mxu0 0.0
      %642 = vmatpush1.msra.mxu0 0.0
      %643 = vmatprep.subr.mxu0 0.0
      %644 = vmatpush1.msra.mxu0 0.0
      %645 = vmatprep.subr.mxu0 0.0
      %646 = vmatpush1.msra.mxu0 0.0
      %647 = vmatprep.subr.mxu0 0.0
      %648 = vmatpush1.msra.mxu0 0.0
      %649 = vmatprep.subr.mxu0 0.0
      %650 = vmatpush1.msra.mxu0 0.0
      %651 = vmatprep.subr.mxu0 0.0
      %652 = vmatpush1.msra.mxu0 0.0
      %653 = vmatprep.subr.mxu0 0.0
      %654 = vmatpush1.msra.mxu0 0.0
      %655 = vmatprep.subr.mxu0 0.0
      %656 = vmatpush1.msra.mxu0 0.0
      %657 = vmatprep.subr.mxu0 0.0
      %658 = vmatpush1.msra.mxu0 0.0
      %659 = vmatprep.subr.mxu0 0.0
      %660 = vmatpush1.msra.mxu0 0.0
      %661 = vmatprep.subr.mxu0 0.0
      %662 = vmatpush1.msra.mxu0 0.0
      %663 = vmatprep.subr.mxu0 0.0
      %664 = vmatpush1.msra.mxu0 0.0
      %665 = vmatprep.subr.mxu0 0.0
      %666 = vmatpush1.msra.mxu0 0.0
      %667 = vmatprep.subr.mxu0 %v635
      %668 = vmatpush1.msra.mxu0 %v633
      %669 = vmatprep.subr.mxu0 0.0
      %670 = vmatpush2.msra.mxu0 0.0
      %671 = vmatprep.subr.mxu0 0.0
      %672 = vmatpush2.msra.mxu0 0.0
      %673 = vmatprep.subr.mxu0 0.0
      %674 = vmatpush2.msra.mxu0 0.0
      %675 = vmatprep.subr.mxu0 0.0
      %676 = vmatpush2.msra.mxu0 0.0
      %677 = vmatprep.subr.mxu0 0.0
      %678 = vmatpush2.msra.mxu0 0.0
      %679 = vmatprep.subr.mxu0 0.0
      %680 = vmatpush2.msra.mxu0 0.0
      %681 = vmatprep.subr.mxu0 0.0
      %682 = vmatpush2.msra.mxu0 0.0
      %683 = vmatprep.subr.mxu0 0.0
      %684 = vmatpush2.msra.mxu0 0.0
      %685 = vmatprep.subr.mxu0 0.0
      %686 = vmatpush2.msra.mxu0 0.0
      %687 = vmatprep.subr.mxu0 0.0
      %688 = vmatpush2.msra.mxu0 0.0
      %689 = vmatprep.subr.mxu0 0.0
      %690 = vmatpush2.msra.mxu0 0.0
      %691 = vmatprep.subr.mxu0 0.0
      %692 = vmatpush2.msra.mxu0 0.0
      %693 = vmatprep.subr.mxu0 0.0
      %694 = vmatpush2.msra.mxu0 0.0
      %695 = vmatprep.subr.mxu0 0.0
      %696 = vmatpush2.msra.mxu0 0.0
      %697 = vmatprep.subr.mxu0 0.0
      %698 = vmatpush2.msra.mxu0 0.0
      %699 = vmatprep.subr.mxu0 0.0
      %700 = vmatpush2.msra.mxu0 0.0
      %701 = vmatprep.mubr.f32.mxu0 0.0
      %702 = vmatmul.mubr.f32.gmra.mxu0 %v628
      %v703 = vpop.f32.mrf.mxu0
      %v704 = vadd.f32 0.0, %v703
      %v705 = vpop.f32.mrf.mxu0
      %v706 = vadd.f32 0.0, %v705
      %707 = vmatprep.mubr.f32.mxu0 0.0
      %708 = vmatmul.mubr.f32.gmra.mxu0 %v631
      %v709 = vpop.f32.mrf.mxu0
      %v710 = vadd.f32 0.0, %v709
      %v711 = vpop.f32.mrf.mxu0
      %v712 = vadd.f32 0.0, %v711
      %713 = vdwg.mxu0
      %714 = vrot.lane.b32.xlu0 %v292, 16
      %v715 = vpop.permute.xlu0 %714
      %716 = vrot.lane.b32.xlu0 %v293, 16
      %v717 = vpop.permute.xlu0 %716
      %718 = vrot.lane.b32.xlu0 %v294, 16
      %v719 = vpop.permute.xlu0 %718
      %vm720 = vcmask 130048
      %v721 = vsel %vm720, %v715, %v717
      %v722 = vsel %vm720, %v717, %v719
      %v724 = vsel %vm312, %v622, 0
      %v727 = vsel %vm312, %v623, 0
      %v729 = vsel %vm319, %v721, 0
      %v731 = vsel %vm319, %v722, 0
      %733 = vmatprep.subr.mxu0 0.0
      %734 = vmatpush1.msra.mxu0 0.0
      %735 = vmatprep.subr.mxu0 0.0
      %736 = vmatpush1.msra.mxu0 0.0
      %737 = vmatprep.subr.mxu0 0.0
      %738 = vmatpush1.msra.mxu0 0.0
      %739 = vmatprep.subr.mxu0 0.0
      %740 = vmatpush1.msra.mxu0 0.0
      %741 = vmatprep.subr.mxu0 0.0
      %742 = vmatpush1.msra.mxu0 0.0
      %743 = vmatprep.subr.mxu0 0.0
      %744 = vmatpush1.msra.mxu0 0.0
      %745 = vmatprep.subr.mxu0 0.0
      %746 = vmatpush1.msra.mxu0 0.0
      %747 = vmatprep.subr.mxu0 0.0
      %748 = vmatpush1.msra.mxu0 0.0
      %749 = vmatprep.subr.mxu0 0.0
      %750 = vmatpush1.msra.mxu0 0.0
      %751 = vmatprep.subr.mxu0 0.0
      %752 = vmatpush1.msra.mxu0 0.0
      %753 = vmatprep.subr.mxu0 0.0
      %754 = vmatpush1.msra.mxu0 0.0
      %755 = vmatprep.subr.mxu0 0.0
      %756 = vmatpush1.msra.mxu0 0.0
      %757 = vmatprep.subr.mxu0 0.0
      %758 = vmatpush1.msra.mxu0 0.0
      %759 = vmatprep.subr.mxu0 0.0
      %760 = vmatpush1.msra.mxu0 0.0
      %761 = vmatprep.subr.mxu0 0.0
      %762 = vmatpush1.msra.mxu0 0.0
      %763 = vmatprep.subr.mxu0 %v731
      %764 = vmatpush1.msra.mxu0 %v729
      %765 = vmatprep.subr.mxu0 0.0
      %766 = vmatpush2.msra.mxu0 0.0
      %767 = vmatprep.subr.mxu0 0.0
      %768 = vmatpush2.msra.mxu0 0.0
      %769 = vmatprep.subr.mxu0 0.0
      %770 = vmatpush2.msra.mxu0 0.0
      %771 = vmatprep.subr.mxu0 0.0
      %772 = vmatpush2.msra.mxu0 0.0
      %773 = vmatprep.subr.mxu0 0.0
      %774 = vmatpush2.msra.mxu0 0.0
      %775 = vmatprep.subr.mxu0 0.0
      %776 = vmatpush2.msra.mxu0 0.0
      %777 = vmatprep.subr.mxu0 0.0
      %778 = vmatpush2.msra.mxu0 0.0
      %779 = vmatprep.subr.mxu0 0.0
      %780 = vmatpush2.msra.mxu0 0.0
      %781 = vmatprep.subr.mxu0 0.0
      %782 = vmatpush2.msra.mxu0 0.0
      %783 = vmatprep.subr.mxu0 0.0
      %784 = vmatpush2.msra.mxu0 0.0
      %785 = vmatprep.subr.mxu0 0.0
      %786 = vmatpush2.msra.mxu0 0.0
      %787 = vmatprep.subr.mxu0 0.0
      %788 = vmatpush2.msra.mxu0 0.0
      %789 = vmatprep.subr.mxu0 0.0
      %790 = vmatpush2.msra.mxu0 0.0
      %791 = vmatprep.subr.mxu0 0.0
      %792 = vmatpush2.msra.mxu0 0.0
      %793 = vmatprep.subr.mxu0 0.0
      %794 = vmatpush2.msra.mxu0 0.0
      %795 = vmatprep.subr.mxu0 0.0
      %796 = vmatpush2.msra.mxu0 0.0
      %797 = vmatprep.mubr.f32.mxu0 0.0
      %798 = vmatmul.mubr.f32.gmra.mxu0 %v724
      %v799 = vpop.f32.mrf.mxu0
      %v800 = vadd.f32 %v704, %v799
      %v801 = vpop.f32.mrf.mxu0
      %v802 = vadd.f32 %v706, %v801
      %803 = vmatprep.mubr.f32.mxu0 0.0
      %804 = vmatmul.mubr.f32.gmra.mxu0 %v727
      %v805 = vpop.f32.mrf.mxu0
      %v806 = vadd.f32 %v710, %v805
      %v807 = vpop.f32.mrf.mxu0
      %v808 = vadd.f32 %v712, %v807
      %809 = vdwg.mxu0
      %s810 = scalar_lea.vmem %s2, 112
      %v811 = vld [vmem:[%s810] sm:$0xff]
      %v812 = vld [vmem:[%s810 + $0x8] sm:$0xff]
      %813 = vrot.lane.b32.xlu0 %v497, 112
      %v814 = vpop.permute.xlu0 %813
      %815 = vrot.lane.b32.xlu0 %v498, 112
      %v816 = vpop.permute.xlu0 %815
      %817 = vrot.lane.b32.xlu0 %v499, 112
      %v818 = vpop.permute.xlu0 %817
      %vm819 = vcmask 916480
      %v820 = vsel %vm819, %v814, %v816
      %v821 = vsel %vm819, %v816, %v818
      %v823 = vsel %vm312, %v811, 0
      %v826 = vsel %vm312, %v812, 0
      %v828 = vsel %vm319, %v820, 0
      %v830 = vsel %vm319, %v821, 0
      %832 = vmatprep.subr.mxu0 0.0
      %833 = vmatpush1.msra.mxu0 0.0
      %834 = vmatprep.subr.mxu0 0.0
      %835 = vmatpush1.msra.mxu0 0.0
      %836 = vmatprep.subr.mxu0 0.0
      %837 = vmatpush1.msra.mxu0 0.0
      %838 = vmatprep.subr.mxu0 0.0
      %839 = vmatpush1.msra.mxu0 0.0
      %840 = vmatprep.subr.mxu0 0.0
      %841 = vmatpush1.msra.mxu0 0.0
      %842 = vmatprep.subr.mxu0 0.0
      %843 = vmatpush1.msra.mxu0 0.0
      %844 = vmatprep.subr.mxu0 0.0
      %845 = vmatpush1.msra.mxu0 0.0
      %846 = vmatprep.subr.mxu0 0.0
      %847 = vmatpush1.msra.mxu0 0.0
      %848 = vmatprep.subr.mxu0 0.0
      %849 = vmatpush1.msra.mxu0 0.0
      %850 = vmatprep.subr.mxu0 0.0
      %851 = vmatpush1.msra.mxu0 0.0
      %852 = vmatprep.subr.mxu0 0.0
      %853 = vmatpush1.msra.mxu0 0.0
      %854 = vmatprep.subr.mxu0 0.0
      %855 = vmatpush1.msra.mxu0 0.0
      %856 = vmatprep.subr.mxu0 0.0
      %857 = vmatpush1.msra.mxu0 0.0
      %858 = vmatprep.subr.mxu0 0.0
      %859 = vmatpush1.msra.mxu0 0.0
      %860 = vmatprep.subr.mxu0 0.0
      %861 = vmatpush1.msra.mxu0 0.0
      %862 = vmatprep.subr.mxu0 %v830
      %863 = vmatpush1.msra.mxu0 %v828
      %864 = vmatprep.subr.mxu0 0.0
      %865 = vmatpush2.msra.mxu0 0.0
      %866 = vmatprep.subr.mxu0 0.0
      %867 = vmatpush2.msra.mxu0 0.0
      %868 = vmatprep.subr.mxu0 0.0
      %869 = vmatpush2.msra.mxu0 0.0
      %870 = vmatprep.subr.mxu0 0.0
      %871 = vmatpush2.msra.mxu0 0.0
      %872 = vmatprep.subr.mxu0 0.0
      %873 = vmatpush2.msra.mxu0 0.0
      %874 = vmatprep.subr.mxu0 0.0
      %875 = vmatpush2.msra.mxu0 0.0
      %876 = vmatprep.subr.mxu0 0.0
      %877 = vmatpush2.msra.mxu0 0.0
      %878 = vmatprep.subr.mxu0 0.0
      %879 = vmatpush2.msra.mxu0 0.0
      %880 = vmatprep.subr.mxu0 0.0
      %881 = vmatpush2.msra.mxu0 0.0
      %882 = vmatprep.subr.mxu0 0.0
      %883 = vmatpush2.msra.mxu0 0.0
      %884 = vmatprep.subr.mxu0 0.0
      %885 = vmatpush2.msra.mxu0 0.0
      %886 = vmatprep.subr.mxu0 0.0
      %887 = vmatpush2.msra.mxu0 0.0
      %888 = vmatprep.subr.mxu0 0.0
      %889 = vmatpush2.msra.mxu0 0.0
      %890 = vmatprep.subr.mxu0 0.0
      %891 = vmatpush2.msra.mxu0 0.0
      %892 = vmatprep.subr.mxu0 0.0
      %893 = vmatpush2.msra.mxu0 0.0
      %894 = vmatprep.subr.mxu0 0.0
      %895 = vmatpush2.msra.mxu0 0.0
      %896 = vmatprep.mubr.f32.mxu0 0.0
      %897 = vmatmul.mubr.f32.gmra.mxu0 %v823
      %v898 = vpop.f32.mrf.mxu0
      %v899 = vadd.f32 0.0, %v898
      %v900 = vpop.f32.mrf.mxu0
      %v901 = vadd.f32 0.0, %v900
      %902 = vmatprep.mubr.f32.mxu0 0.0
      %903 = vmatmul.mubr.f32.gmra.mxu0 %v826
      %v904 = vpop.f32.mrf.mxu0
      %v905 = vadd.f32 0.0, %v904
      %v906 = vpop.f32.mrf.mxu0
      %v907 = vadd.f32 0.0, %v906
      %908 = vdwg.mxu0
      %v909 = vadd.f32 %v800, %v899
      %v910 = vadd.f32 %v802, %v901
      %v911 = vadd.f32 %v806, %v905
      %v912 = vadd.f32 %v808, %v907
      %v913 = vadd.f32 %v617, %v909
      %v914 = vadd.f32 %v618, %v910
      %v915 = vadd.f32 %v619, %v911
      %v916 = vadd.f32 %v620, %v912
      %s917 = scalar_lea.vmem %s2, 32
      %v918 = vld [vmem:[%s917] sm:$0xff]
      %v919 = vld [vmem:[%s917 + $0x8] sm:$0xff]
      %s920 = scalar_lea.vmem %s2, 80
      %v921 = vld [vmem:[%s920] sm:$0xff]
      %v922 = vld [vmem:[%s920 + $0x8] sm:$0xff]
      %923 = vrot.lane.b32.xlu0 %v497, 127
      %v924 = vpop.permute.xlu0 %923
      %925 = vrot.lane.b32.xlu0 %v498, 127
      %v926 = vpop.permute.xlu0 %925
      %927 = vrot.lane.b32.xlu0 %v499, 127
      %v928 = vpop.permute.xlu0 %927
      %vm929 = vcmask 1039360
      %v930 = vsel %vm929, %v924, %v926
      %v931 = vsel %vm929, %v926, %v928
      %v933 = vsel %vm312, %v921, 0
      %v936 = vsel %vm312, %v922, 0
      %v938 = vsel %vm319, %v930, 0
      %v940 = vsel %vm319, %v931, 0
      %942 = vmatprep.subr.mxu0 0.0
      %943 = vmatpush1.msra.mxu0 0.0
      %944 = vmatprep.subr.mxu0 0.0
      %945 = vmatpush1.msra.mxu0 0.0
      %946 = vmatprep.subr.mxu0 0.0
      %947 = vmatpush1.msra.mxu0 0.0
      %948 = vmatprep.subr.mxu0 0.0
      %949 = vmatpush1.msra.mxu0 0.0
      %950 = vmatprep.subr.mxu0 0.0
      %951 = vmatpush1.msra.mxu0 0.0
      %952 = vmatprep.subr.mxu0 0.0
      %953 = vmatpush1.msra.mxu0 0.0
      %954 = vmatprep.subr.mxu0 0.0
      %955 = vmatpush1.msra.mxu0 0.0
      %956 = vmatprep.subr.mxu0 0.0
      %957 = vmatpush1.msra.mxu0 0.0
      %958 = vmatprep.subr.mxu0 0.0
      %959 = vmatpush1.msra.mxu0 0.0
      %960 = vmatprep.subr.mxu0 0.0
      %961 = vmatpush1.msra.mxu0 0.0
      %962 = vmatprep.subr.mxu0 0.0
      %963 = vmatpush1.msra.mxu0 0.0
      %964 = vmatprep.subr.mxu0 0.0
      %965 = vmatpush1.msra.mxu0 0.0
      %966 = vmatprep.subr.mxu0 0.0
      %967 = vmatpush1.msra.mxu0 0.0
      %968 = vmatprep.subr.mxu0 0.0
      %969 = vmatpush1.msra.mxu0 0.0
      %970 = vmatprep.subr.mxu0 0.0
      %971 = vmatpush1.msra.mxu0 0.0
      %972 = vmatprep.subr.mxu0 %v940
      %973 = vmatpush1.msra.mxu0 %v938
      %974 = vmatprep.subr.mxu0 0.0
      %975 = vmatpush2.msra.mxu0 0.0
      %976 = vmatprep.subr.mxu0 0.0
      %977 = vmatpush2.msra.mxu0 0.0
      %978 = vmatprep.subr.mxu0 0.0
      %979 = vmatpush2.msra.mxu0 0.0
      %980 = vmatprep.subr.mxu0 0.0
      %981 = vmatpush2.msra.mxu0 0.0
      %982 = vmatprep.subr.mxu0 0.0
      %983 = vmatpush2.msra.mxu0 0.0
      %984 = vmatprep.subr.mxu0 0.0
      %985 = vmatpush2.msra.mxu0 0.0
      %986 = vmatprep.subr.mxu0 0.0
      %987 = vmatpush2.msra.mxu0 0.0
      %988 = vmatprep.subr.mxu0 0.0
      %989 = vmatpush2.msra.mxu0 0.0
      %990 = vmatprep.subr.mxu0 0.0
      %991 = vmatpush2.msra.mxu0 0.0
      %992 = vmatprep.subr.mxu0 0.0
      %993 = vmatpush2.msra.mxu0 0.0
      %994 = vmatprep.subr.mxu0 0.0
      %995 = vmatpush2.msra.mxu0 0.0
      %996 = vmatprep.subr.mxu0 0.0
      %997 = vmatpush2.msra.mxu0 0.0
      %998 = vmatprep.subr.mxu0 0.0
      %999 = vmatpush2.msra.mxu0 0.0
      %1000 = vmatprep.subr.mxu0 0.0
      %1001 = vmatpush2.msra.mxu0 0.0
      %1002 = vmatprep.subr.mxu0 0.0
      %1003 = vmatpush2.msra.mxu0 0.0
      %1004 = vmatprep.subr.mxu0 0.0
      %1005 = vmatpush2.msra.mxu0 0.0
      %1006 = vmatprep.mubr.f32.mxu0 0.0
      %1007 = vmatmul.mubr.f32.gmra.mxu0 %v933
      %v1008 = vpop.f32.mrf.mxu0
      %v1009 = vadd.f32 0.0, %v1008
      %v1010 = vpop.f32.mrf.mxu0
      %v1011 = vadd.f32 0.0, %v1010
      %1012 = vmatprep.mubr.f32.mxu0 0.0
      %1013 = vmatmul.mubr.f32.gmra.mxu0 %v936
      %v1014 = vpop.f32.mrf.mxu0
      %v1015 = vadd.f32 0.0, %v1014
      %v1016 = vpop.f32.mrf.mxu0
      %v1017 = vadd.f32 0.0, %v1016
      %1018 = vdwg.mxu0
      %1019 = vrot.lane.b32.xlu0 %v292, 15
      %v1020 = vpop.permute.xlu0 %1019
      %1021 = vrot.lane.b32.xlu0 %v293, 15
      %v1022 = vpop.permute.xlu0 %1021
      %1023 = vrot.lane.b32.xlu0 %v294, 15
      %v1024 = vpop.permute.xlu0 %1023
      %vm1025 = vcmask 121856
      %v1026 = vsel %vm1025, %v1020, %v1022
      %v1027 = vsel %vm1025, %v1022, %v1024
      %v1029 = vsel %vm312, %v918, 0
      %v1032 = vsel %vm312, %v919, 0
      %v1034 = vsel %vm319, %v1026, 0
      %v1036 = vsel %vm319, %v1027, 0
      %1038 = vmatprep.subr.mxu0 0.0
      %1039 = vmatpush1.msra.mxu0 0.0
      %1040 = vmatprep.subr.mxu0 0.0
      %1041 = vmatpush1.msra.mxu0 0.0
      %1042 = vmatprep.subr.mxu0 0.0
      %1043 = vmatpush1.msra.mxu0 0.0
      %1044 = vmatprep.subr.mxu0 0.0
      %1045 = vmatpush1.msra.mxu0 0.0
      %1046 = vmatprep.subr.mxu0 0.0
      %1047 = vmatpush1.msra.mxu0 0.0
      %1048 = vmatprep.subr.mxu0 0.0
      %1049 = vmatpush1.msra.mxu0 0.0
      %1050 = vmatprep.subr.mxu0 0.0
      %1051 = vmatpush1.msra.mxu0 0.0
      %1052 = vmatprep.subr.mxu0 0.0
      %1053 = vmatpush1.msra.mxu0 0.0
      %1054 = vmatprep.subr.mxu0 0.0
      %1055 = vmatpush1.msra.mxu0 0.0
      %1056 = vmatprep.subr.mxu0 0.0
      %1057 = vmatpush1.msra.mxu0 0.0
      %1058 = vmatprep.subr.mxu0 0.0
      %1059 = vmatpush1.msra.mxu0 0.0
      %1060 = vmatprep.subr.mxu0 0.0
      %1061 = vmatpush1.msra.mxu0 0.0
      %1062 = vmatprep.subr.mxu0 0.0
      %1063 = vmatpush1.msra.mxu0 0.0
      %1064 = vmatprep.subr.mxu0 0.0
      %1065 = vmatpush1.msra.mxu0 0.0
      %1066 = vmatprep.subr.mxu0 0.0
      %1067 = vmatpush1.msra.mxu0 0.0
      %1068 = vmatprep.subr.mxu0 %v1036
      %1069 = vmatpush1.msra.mxu0 %v1034
      %1070 = vmatprep.subr.mxu0 0.0
      %1071 = vmatpush2.msra.mxu0 0.0
      %1072 = vmatprep.subr.mxu0 0.0
      %1073 = vmatpush2.msra.mxu0 0.0
      %1074 = vmatprep.subr.mxu0 0.0
      %1075 = vmatpush2.msra.mxu0 0.0
      %1076 = vmatprep.subr.mxu0 0.0
      %1077 = vmatpush2.msra.mxu0 0.0
      %1078 = vmatprep.subr.mxu0 0.0
      %1079 = vmatpush2.msra.mxu0 0.0
      %1080 = vmatprep.subr.mxu0 0.0
      %1081 = vmatpush2.msra.mxu0 0.0
      %1082 = vmatprep.subr.mxu0 0.0
      %1083 = vmatpush2.msra.mxu0 0.0
      %1084 = vmatprep.subr.mxu0 0.0
      %1085 = vmatpush2.msra.mxu0 0.0
      %1086 = vmatprep.subr.mxu0 0.0
      %1087 = vmatpush2.msra.mxu0 0.0
      %1088 = vmatprep.subr.mxu0 0.0
      %1089 = vmatpush2.msra.mxu0 0.0
      %1090 = vmatprep.subr.mxu0 0.0
      %1091 = vmatpush2.msra.mxu0 0.0
      %1092 = vmatprep.subr.mxu0 0.0
      %1093 = vmatpush2.msra.mxu0 0.0
      %1094 = vmatprep.subr.mxu0 0.0
      %1095 = vmatpush2.msra.mxu0 0.0
      %1096 = vmatprep.subr.mxu0 0.0
      %1097 = vmatpush2.msra.mxu0 0.0
      %1098 = vmatprep.subr.mxu0 0.0
      %1099 = vmatpush2.msra.mxu0 0.0
      %1100 = vmatprep.subr.mxu0 0.0
      %1101 = vmatpush2.msra.mxu0 0.0
      %1102 = vmatprep.mubr.f32.mxu0 0.0
      %1103 = vmatmul.mubr.f32.gmra.mxu0 %v1029
      %v1104 = vpop.f32.mrf.mxu0
      %v1105 = vadd.f32 %v1009, %v1104
      %v1106 = vpop.f32.mrf.mxu0
      %v1107 = vadd.f32 %v1011, %v1106
      %1108 = vmatprep.mubr.f32.mxu0 0.0
      %1109 = vmatmul.mubr.f32.gmra.mxu0 %v1032
      %v1110 = vpop.f32.mrf.mxu0
      %v1111 = vadd.f32 %v1015, %v1110
      %v1112 = vpop.f32.mrf.mxu0
      %v1113 = vadd.f32 %v1017, %v1112
      %1114 = vdwg.mxu0
      %s1115 = scalar_lea.vmem %s2, 128
      %v1116 = vld [vmem:[%s1115] sm:$0xff]
      %v1117 = vld [vmem:[%s1115 + $0x8] sm:$0xff]
      %1118 = vrot.lane.b32.xlu0 %v497, 111
      %v1119 = vpop.permute.xlu0 %1118
      %1120 = vrot.lane.b32.xlu0 %v498, 111
      %v1121 = vpop.permute.xlu0 %1120
      %1122 = vrot.lane.b32.xlu0 %v499, 111
      %v1123 = vpop.permute.xlu0 %1122
      %vm1124 = vcmask 908288
      %v1125 = vsel %vm1124, %v1119, %v1121
      %v1126 = vsel %vm1124, %v1121, %v1123
      %v1128 = vsel %vm312, %v1116, 0
      %v1131 = vsel %vm312, %v1117, 0
      %v1133 = vsel %vm319, %v1125, 0
      %v1135 = vsel %vm319, %v1126, 0
      %1137 = vmatprep.subr.mxu0 0.0
      %1138 = vmatpush1.msra.mxu0 0.0
      %1139 = vmatprep.subr.mxu0 0.0
      %1140 = vmatpush1.msra.mxu0 0.0
      %1141 = vmatprep.subr.mxu0 0.0
      %1142 = vmatpush1.msra.mxu0 0.0
      %1143 = vmatprep.subr.mxu0 0.0
      %1144 = vmatpush1.msra.mxu0 0.0
      %1145 = vmatprep.subr.mxu0 0.0
      %1146 = vmatpush1.msra.mxu0 0.0
      %1147 = vmatprep.subr.mxu0 0.0
      %1148 = vmatpush1.msra.mxu0 0.0
      %1149 = vmatprep.subr.mxu0 0.0
      %1150 = vmatpush1.msra.mxu0 0.0
      %1151 = vmatprep.subr.mxu0 0.0
      %1152 = vmatpush1.msra.mxu0 0.0
      %1153 = vmatprep.subr.mxu0 0.0
      %1154 = vmatpush1.msra.mxu0 0.0
      %1155 = vmatprep.subr.mxu0 0.0
      %1156 = vmatpush1.msra.mxu0 0.0
      %1157 = vmatprep.subr.mxu0 0.0
      %1158 = vmatpush1.msra.mxu0 0.0
      %1159 = vmatprep.subr.mxu0 0.0
      %1160 = vmatpush1.msra.mxu0 0.0
      %1161 = vmatprep.subr.mxu0 0.0
      %1162 = vmatpush1.msra.mxu0 0.0
      %1163 = vmatprep.subr.mxu0 0.0
      %1164 = vmatpush1.msra.mxu0 0.0
      %1165 = vmatprep.subr.mxu0 0.0
      %1166 = vmatpush1.msra.mxu0 0.0
      %1167 = vmatprep.subr.mxu0 %v1135
      %1168 = vmatpush1.msra.mxu0 %v1133
      %1169 = vmatprep.subr.mxu0 0.0
      %1170 = vmatpush2.msra.mxu0 0.0
      %1171 = vmatprep.subr.mxu0 0.0
      %1172 = vmatpush2.msra.mxu0 0.0
      %1173 = vmatprep.subr.mxu0 0.0
      %1174 = vmatpush2.msra.mxu0 0.0
      %1175 = vmatprep.subr.mxu0 0.0
      %1176 = vmatpush2.msra.mxu0 0.0
      %1177 = vmatprep.subr.mxu0 0.0
      %1178 = vmatpush2.msra.mxu0 0.0
      %1179 = vmatprep.subr.mxu0 0.0
      %1180 = vmatpush2.msra.mxu0 0.0
      %1181 = vmatprep.subr.mxu0 0.0
      %1182 = vmatpush2.msra.mxu0 0.0
      %1183 = vmatprep.subr.mxu0 0.0
      %1184 = vmatpush2.msra.mxu0 0.0
      %1185 = vmatprep.subr.mxu0 0.0
      %1186 = vmatpush2.msra.mxu0 0.0
      %1187 = vmatprep.subr.mxu0 0.0
      %1188 = vmatpush2.msra.mxu0 0.0
      %1189 = vmatprep.subr.mxu0 0.0
      %1190 = vmatpush2.msra.mxu0 0.0
      %1191 = vmatprep.subr.mxu0 0.0
      %1192 = vmatpush2.msra.mxu0 0.0
      %1193 = vmatprep.subr.mxu0 0.0
      %1194 = vmatpush2.msra.mxu0 0.0
      %1195 = vmatprep.subr.mxu0 0.0
      %1196 = vmatpush2.msra.mxu0 0.0
      %1197 = vmatprep.subr.mxu0 0.0
      %1198 = vmatpush2.msra.mxu0 0.0
      %1199 = vmatprep.subr.mxu0 0.0
      %1200 = vmatpush2.msra.mxu0 0.0
      %1201 = vmatprep.mubr.f32.mxu0 0.0
      %1202 = vmatmul.mubr.f32.gmra.mxu0 %v1128
      %v1203 = vpop.f32.mrf.mxu0
      %v1204 = vadd.f32 0.0, %v1203
      %v1205 = vpop.f32.mrf.mxu0
      %v1206 = vadd.f32 0.0, %v1205
      %1207 = vmatprep.mubr.f32.mxu0 0.0
      %1208 = vmatmul.mubr.f32.gmra.mxu0 %v1131
      %v1209 = vpop.f32.mrf.mxu0
      %v1210 = vadd.f32 0.0, %v1209
      %v1211 = vpop.f32.mrf.mxu0
      %v1212 = vadd.f32 0.0, %v1211
      %1213 = vdwg.mxu0
      %v1214 = vadd.f32 %v1105, %v1204
      %v1215 = vadd.f32 %v1107, %v1206
      %v1216 = vadd.f32 %v1111, %v1210
      %v1217 = vadd.f32 %v1113, %v1212
      %v1219 = vlaneseq
      %v1220 = vshrl.u32 %v1219, 7
      %v1221 = vsub.s32 0, %v1220
      %v1222 = vrot.slane %v285, %v1221
      %v1223 = vlaneseq
      %v1224 = vshrl.u32 %v1223, 7
      %v1225 = vsub.s32 1, %v1224
      %v1226 = vrot.slane %v285, %v1225
      %v1229 = vmul.f32 %v1214, %v1222
      %v1230 = vmul.f32 %v1215, %v1226
      %v1231 = vmul.f32 %v1216, %v1222
      %v1232 = vmul.f32 %v1217, %v1226
      %v1233 = vadd.f32 %v913, %v1229
      %v1234 = vadd.f32 %v914, %v1230
      %v1235 = vadd.f32 %v915, %v1231
      %v1236 = vadd.f32 %v916, %v1232
      %v1237 = vld [vmem:[%s6] sm:$0xff]
      %v1238 = vld [vmem:[%s6 + $0x8] sm:$0xff]
      %1240 = vset.pattern.permute.xlu0 0
      %1241 = vperm.xlu0 %1240, %v1237
      %v1242 = vpop.permute.xlu0 %1241
      %1245 = vset.pattern.permute.xlu0 0
      %1246 = vperm.xlu0 %1245, %v1238
      %v1247 = vpop.permute.xlu0 %1246
      %v1249 = vadd.f32 %v1233, %v1242
      %v1250 = vadd.f32 %v1234, %v1242
      %v1251 = vadd.f32 %v1235, %v1247
      %v1252 = vadd.f32 %v1236, %v1247
      %v1253 = vmax.f32 %v1249, 0.0
      %v1254 = vmax.f32 %v1250, 0.0
      %v1255 = vmax.f32 %v1251, 0.0
      %v1256 = vmax.f32 %v1252, 0.0
      %1257 = vst [vmem:[#allocation2 + $0x8] sm:$0xff] %v1253
      %1258 = vst [vmem:[#allocation2 + $0x10] sm:$0xff] %v1254
      %1259 = vst [vmem:[#allocation2 + $0x28] sm:$0xff] %v1255
      %1260 = vst [vmem:[#allocation2 + $0x30] sm:$0xff] %v1256
      %v1261 = vld [vmem:[#allocation2] sm:$0xff]
      %v1262 = vld [vmem:[#allocation2 + $0x8] sm:$0xff]
      %v1263 = vld [vmem:[#allocation2 + $0x10] sm:$0xff]
      %v1264 = vld [vmem:[#allocation2 + $0x20] sm:$0xff]
      %v1265 = vld [vmem:[#allocation2 + $0x28] sm:$0xff]
      %v1266 = vld [vmem:[#allocation2 + $0x30] sm:$0xff]
      %v1267 = vld [vmem:[%s3] sm:$0xff]
      %s1268 = scalar_lea.vmem %s3, 24
      %v1269 = vld [vmem:[%s1268] sm:$0xff]
      %1276 = vrot.lane.b32.xlu0 %v1261, 1
      %v1277 = vpop.permute.xlu0 %1276
      %1278 = vrot.lane.b32.xlu0 %v1262, 1
      %v1279 = vpop.permute.xlu0 %1278
      %1280 = vrot.lane.b32.xlu0 %v1263, 1
      %v1281 = vpop.permute.xlu0 %1280
      %1282 = vrot.lane.b32.xlu0 %v1264, 1
      %v1283 = vpop.permute.xlu0 %1282
      %1284 = vrot.lane.b32.xlu0 %v1265, 1
      %v1285 = vpop.permute.xlu0 %1284
      %1286 = vrot.lane.b32.xlu0 %v1266, 1
      %v1287 = vpop.permute.xlu0 %1286
      %v1288 = vsel %vm309, %v1277, %v1279
      %v1289 = vsel %vm309, %v1279, %v1281
      %v1290 = vsel %vm309, %v1283, %v1285
      %v1291 = vsel %vm309, %v1285, %v1287
      %v1297 = vsel %vm720, %v1269, 0
      %1299 = vmatprep.subr.mxu0 0.0
      %1300 = vmatpush1.msra.mxu0 0.0
      %1301 = vmatprep.subr.mxu0 0.0
      %1302 = vmatpush1.msra.mxu0 0.0
      %1303 = vmatprep.subr.mxu0 0.0
      %1304 = vmatpush1.msra.mxu0 0.0
      %1305 = vmatprep.subr.mxu0 0.0
      %1306 = vmatpush1.msra.mxu0 0.0
      %1307 = vmatprep.subr.mxu0 0.0
      %1308 = vmatpush1.msra.mxu0 0.0
      %1309 = vmatprep.subr.mxu0 0.0
      %1310 = vmatpush1.msra.mxu0 0.0
      %1311 = vmatprep.subr.mxu0 0.0
      %1312 = vmatpush1.msra.mxu0 0.0
      %1313 = vmatprep.subr.mxu0 0.0
      %1314 = vmatpush1.msra.mxu0 0.0
      %1315 = vmatprep.subr.mxu0 0.0
      %1316 = vmatpush1.msra.mxu0 0.0
      %1317 = vmatprep.subr.mxu0 0.0
      %1318 = vmatpush1.msra.mxu0 0.0
      %1319 = vmatprep.subr.mxu0 0.0
      %1320 = vmatpush1.msra.mxu0 0.0
      %1321 = vmatprep.subr.mxu0 0.0
      %1322 = vmatpush1.msra.mxu0 0.0
      %1323 = vmatprep.subr.mxu0 0.0
      %1324 = vmatpush1.msra.mxu0 0.0
      %1325 = vmatprep.subr.mxu0 0.0
      %1326 = vmatpush1.msra.mxu0 0.0
      %1327 = vmatprep.subr.mxu0 %v1291
      %1328 = vmatpush1.msra.mxu0 %v1290
      %1329 = vmatprep.subr.mxu0 %v1289
      %1330 = vmatpush1.msra.mxu0 %v1288
      %1331 = vmatprep.subr.mxu0 0.0
      %1332 = vmatpush2.msra.mxu0 0.0
      %1333 = vmatprep.subr.mxu0 0.0
      %1334 = vmatpush2.msra.mxu0 0.0
      %1335 = vmatprep.subr.mxu0 0.0
      %1336 = vmatpush2.msra.mxu0 0.0
      %1337 = vmatprep.subr.mxu0 0.0
      %1338 = vmatpush2.msra.mxu0 0.0
      %1339 = vmatprep.subr.mxu0 0.0
      %1340 = vmatpush2.msra.mxu0 0.0
      %1341 = vmatprep.subr.mxu0 0.0
      %1342 = vmatpush2.msra.mxu0 0.0
      %1343 = vmatprep.subr.mxu0 0.0
      %1344 = vmatpush2.msra.mxu0 0.0
      %1345 = vmatprep.subr.mxu0 0.0
      %1346 = vmatpush2.msra.mxu0 0.0
      %1347 = vmatprep.subr.mxu0 0.0
      %1348 = vmatpush2.msra.mxu0 0.0
      %1349 = vmatprep.subr.mxu0 0.0
      %1350 = vmatpush2.msra.mxu0 0.0
      %1351 = vmatprep.subr.mxu0 0.0
      %1352 = vmatpush2.msra.mxu0 0.0
      %1353 = vmatprep.subr.mxu0 0.0
      %1354 = vmatpush2.msra.mxu0 0.0
      %1355 = vmatprep.subr.mxu0 0.0
      %1356 = vmatpush2.msra.mxu0 0.0
      %1357 = vmatprep.subr.mxu0 0.0
      %1358 = vmatpush2.msra.mxu0 0.0
      %1359 = vmatprep.subr.mxu0 0.0
      %1360 = vmatpush2.msra.mxu0 0.0
      %1361 = vmatprep.subr.mxu0 0.0
      %1362 = vmatpush2.msra.mxu0 0.0
      %1363 = vmatprep.mubr.f32.mxu0 0.0
      %1364 = vmatmul.mubr.f32.gmra.mxu0 %v1297
      %v1365 = vpop.f32.mrf.mxu0
      %v1366 = vadd.f32 0.0, %v1365
      %v1367 = vpop.f32.mrf.mxu0
      %v1368 = vadd.f32 0.0, %v1367
      %1369 = vdwg.mxu0
      %1370 = vrot.lane.b32.xlu0 %v1261, 17
      %v1371 = vpop.permute.xlu0 %1370
      %1372 = vrot.lane.b32.xlu0 %v1262, 17
      %v1373 = vpop.permute.xlu0 %1372
      %1374 = vrot.lane.b32.xlu0 %v1263, 17
      %v1375 = vpop.permute.xlu0 %1374
      %1376 = vrot.lane.b32.xlu0 %v1264, 17
      %v1377 = vpop.permute.xlu0 %1376
      %1378 = vrot.lane.b32.xlu0 %v1265, 17
      %v1379 = vpop.permute.xlu0 %1378
      %1380 = vrot.lane.b32.xlu0 %v1266, 17
      %v1381 = vpop.permute.xlu0 %1380
      %v1382 = vsel %vm407, %v1371, %v1373
      %v1383 = vsel %vm407, %v1373, %v1375
      %v1384 = vsel %vm407, %v1377, %v1379
      %v1385 = vsel %vm407, %v1379, %v1381
      %v1391 = vsel %vm720, %v1267, 0
      %1393 = vmatprep.subr.mxu0 0.0
      %1394 = vmatpush1.msra.mxu0 0.0
      %1395 = vmatprep.subr.mxu0 0.0
      %1396 = vmatpush1.msra.mxu0 0.0
      %1397 = vmatprep.subr.mxu0 0.0
      %1398 = vmatpush1.msra.mxu0 0.0
      %1399 = vmatprep.subr.mxu0 0.0
      %1400 = vmatpush1.msra.mxu0 0.0
      %1401 = vmatprep.subr.mxu0 0.0
      %1402 = vmatpush1.msra.mxu0 0.0
      %1403 = vmatprep.subr.mxu0 0.0
      %1404 = vmatpush1.msra.mxu0 0.0
      %1405 = vmatprep.subr.mxu0 0.0
      %1406 = vmatpush1.msra.mxu0 0.0
      %1407 = vmatprep.subr.mxu0 0.0
      %1408 = vmatpush1.msra.mxu0 0.0
      %1409 = vmatprep.subr.mxu0 0.0
      %1410 = vmatpush1.msra.mxu0 0.0
      %1411 = vmatprep.subr.mxu0 0.0
      %1412 = vmatpush1.msra.mxu0 0.0
      %1413 = vmatprep.subr.mxu0 0.0
      %1414 = vmatpush1.msra.mxu0 0.0
      %1415 = vmatprep.subr.mxu0 0.0
      %1416 = vmatpush1.msra.mxu0 0.0
      %1417 = vmatprep.subr.mxu0 0.0
      %1418 = vmatpush1.msra.mxu0 0.0
      %1419 = vmatprep.subr.mxu0 0.0
      %1420 = vmatpush1.msra.mxu0 0.0
      %1421 = vmatprep.subr.mxu0 %v1385
      %1422 = vmatpush1.msra.mxu0 %v1384
      %1423 = vmatprep.subr.mxu0 %v1383
      %1424 = vmatpush1.msra.mxu0 %v1382
      %1425 = vmatprep.subr.mxu0 0.0
      %1426 = vmatpush2.msra.mxu0 0.0
      %1427 = vmatprep.subr.mxu0 0.0
      %1428 = vmatpush2.msra.mxu0 0.0
      %1429 = vmatprep.subr.mxu0 0.0
      %1430 = vmatpush2.msra.mxu0 0.0
      %1431 = vmatprep.subr.mxu0 0.0
      %1432 = vmatpush2.msra.mxu0 0.0
      %1433 = vmatprep.subr.mxu0 0.0
      %1434 = vmatpush2.msra.mxu0 0.0
      %1435 = vmatprep.subr.mxu0 0.0
      %1436 = vmatpush2.msra.mxu0 0.0
      %1437 = vmatprep.subr.mxu0 0.0
      %1438 = vmatpush2.msra.mxu0 0.0
      %1439 = vmatprep.subr.mxu0 0.0
      %1440 = vmatpush2.msra.mxu0 0.0
      %1441 = vmatprep.subr.mxu0 0.0
      %1442 = vmatpush2.msra.mxu0 0.0
      %1443 = vmatprep.subr.mxu0 0.0
      %1444 = vmatpush2.msra.mxu0 0.0
      %1445 = vmatprep.subr.mxu0 0.0
      %1446 = vmatpush2.msra.mxu0 0.0
      %1447 = vmatprep.subr.mxu0 0.0
      %1448 = vmatpush2.msra.mxu0 0.0
      %1449 = vmatprep.subr.mxu0 0.0
      %1450 = vmatpush2.msra.mxu0 0.0
      %1451 = vmatprep.subr.mxu0 0.0
      %1452 = vmatpush2.msra.mxu0 0.0
      %1453 = vmatprep.subr.mxu0 0.0
      %1454 = vmatpush2.msra.mxu0 0.0
      %1455 = vmatprep.subr.mxu0 0.0
      %1456 = vmatpush2.msra.mxu0 0.0
      %1457 = vmatprep.mubr.f32.mxu0 0.0
      %1458 = vmatmul.mubr.f32.gmra.mxu0 %v1391
      %v1459 = vpop.f32.mrf.mxu0
      %v1460 = vadd.f32 %v1366, %v1459
      %v1461 = vpop.f32.mrf.mxu0
      %v1462 = vadd.f32 %v1368, %v1461
      %1463 = vdwg.mxu0
      %v1464 = vld [vmem:[#allocation2 + $0x8] sm:$0xff]
      %v1465 = vld [vmem:[#allocation2 + $0x10] sm:$0xff]
      %v1466 = vld [vmem:[#allocation2 + $0x18] sm:$0xff]
      %v1467 = vld [vmem:[#allocation2 + $0x28] sm:$0xff]
      %v1468 = vld [vmem:[#allocation2 + $0x30] sm:$0xff]
      %v1469 = vld [vmem:[#allocation2 + $0x38] sm:$0xff]
      %s1470 = scalar_lea.vmem %s3, 48
      %v1471 = vld [vmem:[%s1470] sm:$0xff]
      %1478 = vrot.lane.b32.xlu0 %v1464, 113
      %v1479 = vpop.permute.xlu0 %1478
      %1480 = vrot.lane.b32.xlu0 %v1465, 113
      %v1481 = vpop.permute.xlu0 %1480
      %1482 = vrot.lane.b32.xlu0 %v1466, 113
      %v1483 = vpop.permute.xlu0 %1482
      %1484 = vrot.lane.b32.xlu0 %v1467, 113
      %v1485 = vpop.permute.xlu0 %1484
      %1486 = vrot.lane.b32.xlu0 %v1468, 113
      %v1487 = vpop.permute.xlu0 %1486
      %1488 = vrot.lane.b32.xlu0 %v1469, 113
      %v1489 = vpop.permute.xlu0 %1488
      %v1490 = vsel %vm512, %v1479, %v1481
      %v1491 = vsel %vm512, %v1481, %v1483
      %v1492 = vsel %vm512, %v1485, %v1487
      %v1493 = vsel %vm512, %v1487, %v1489
      %v1499 = vsel %vm720, %v1471, 0
      %1501 = vmatprep.subr.mxu0 0.0
      %1502 = vmatpush1.msra.mxu0 0.0
      %1503 = vmatprep.subr.mxu0 0.0
      %1504 = vmatpush1.msra.mxu0 0.0
      %1505 = vmatprep.subr.mxu0 0.0
      %1506 = vmatpush1.msra.mxu0 0.0
      %1507 = vmatprep.subr.mxu0 0.0
      %1508 = vmatpush1.msra.mxu0 0.0
      %1509 = vmatprep.subr.mxu0 0.0
      %1510 = vmatpush1.msra.mxu0 0.0
      %1511 = vmatprep.subr.mxu0 0.0
      %1512 = vmatpush1.msra.mxu0 0.0
      %1513 = vmatprep.subr.mxu0 0.0
      %1514 = vmatpush1.msra.mxu0 0.0
      %1515 = vmatprep.subr.mxu0 0.0
      %1516 = vmatpush1.msra.mxu0 0.0
      %1517 = vmatprep.subr.mxu0 0.0
      %1518 = vmatpush1.msra.mxu0 0.0
      %1519 = vmatprep.subr.mxu0 0.0
      %1520 = vmatpush1.msra.mxu0 0.0
      %1521 = vmatprep.subr.mxu0 0.0
      %1522 = vmatpush1.msra.mxu0 0.0
      %1523 = vmatprep.subr.mxu0 0.0
      %1524 = vmatpush1.msra.mxu0 0.0
      %1525 = vmatprep.subr.mxu0 0.0
      %1526 = vmatpush1.msra.mxu0 0.0
      %1527 = vmatprep.subr.mxu0 0.0
      %1528 = vmatpush1.msra.mxu0 0.0
      %1529 = vmatprep.subr.mxu0 %v1493
      %1530 = vmatpush1.msra.mxu0 %v1492
      %1531 = vmatprep.subr.mxu0 %v1491
      %1532 = vmatpush1.msra.mxu0 %v1490
      %1533 = vmatprep.subr.mxu0 0.0
      %1534 = vmatpush2.msra.mxu0 0.0
      %1535 = vmatprep.subr.mxu0 0.0
      %1536 = vmatpush2.msra.mxu0 0.0
      %1537 = vmatprep.subr.mxu0 0.0
      %1538 = vmatpush2.msra.mxu0 0.0
      %1539 = vmatprep.subr.mxu0 0.0
      %1540 = vmatpush2.msra.mxu0 0.0
      %1541 = vmatprep.subr.mxu0 0.0
      %1542 = vmatpush2.msra.mxu0 0.0
      %1543 = vmatprep.subr.mxu0 0.0
      %1544 = vmatpush2.msra.mxu0 0.0
      %1545 = vmatprep.subr.mxu0 0.0
      %1546 = vmatpush2.msra.mxu0 0.0
      %1547 = vmatprep.subr.mxu0 0.0
      %1548 = vmatpush2.msra.mxu0 0.0
      %1549 = vmatprep.subr.mxu0 0.0
      %1550 = vmatpush2.msra.mxu0 0.0
      %1551 = vmatprep.subr.mxu0 0.0
      %1552 = vmatpush2.msra.mxu0 0.0
      %1553 = vmatprep.subr.mxu0 0.0
      %1554 = vmatpush2.msra.mxu0 0.0
      %1555 = vmatprep.subr.mxu0 0.0
      %1556 = vmatpush2.msra.mxu0 0.0
      %1557 = vmatprep.subr.mxu0 0.0
      %1558 = vmatpush2.msra.mxu0 0.0
      %1559 = vmatprep.subr.mxu0 0.0
      %1560 = vmatpush2.msra.mxu0 0.0
      %1561 = vmatprep.subr.mxu0 0.0
      %1562 = vmatpush2.msra.mxu0 0.0
      %1563 = vmatprep.subr.mxu0 0.0
      %1564 = vmatpush2.msra.mxu0 0.0
      %1565 = vmatprep.mubr.f32.mxu0 0.0
      %1566 = vmatmul.mubr.f32.gmra.mxu0 %v1499
      %v1567 = vpop.f32.mrf.mxu0
      %v1568 = vadd.f32 0.0, %v1567
      %v1569 = vpop.f32.mrf.mxu0
      %v1570 = vadd.f32 0.0, %v1569
      %1571 = vdwg.mxu0
      %v1572 = vadd.f32 %v1460, %v1568
      %v1573 = vadd.f32 %v1462, %v1570
      %v1574 = vmul.f32 %v1572, %v610
      %v1575 = vmul.f32 %v1573, %v614
      %s1576 = scalar_lea.vmem %s3, 8
      %v1577 = vld [vmem:[%s1576] sm:$0xff]
      %s1578 = scalar_lea.vmem %s3, 32
      %v1579 = vld [vmem:[%s1578] sm:$0xff]
      %v1581 = vsel %vm720, %v1579, 0
      %1583 = vmatprep.subr.mxu0 0.0
      %1584 = vmatpush1.msra.mxu0 0.0
      %1585 = vmatprep.subr.mxu0 0.0
      %1586 = vmatpush1.msra.mxu0 0.0
      %1587 = vmatprep.subr.mxu0 0.0
      %1588 = vmatpush1.msra.mxu0 0.0
      %1589 = vmatprep.subr.mxu0 0.0
      %1590 = vmatpush1.msra.mxu0 0.0
      %1591 = vmatprep.subr.mxu0 0.0
      %1592 = vmatpush1.msra.mxu0 0.0
      %1593 = vmatprep.subr.mxu0 0.0
      %1594 = vmatpush1.msra.mxu0 0.0
      %1595 = vmatprep.subr.mxu0 0.0
      %1596 = vmatpush1.msra.mxu0 0.0
      %1597 = vmatprep.subr.mxu0 0.0
      %1598 = vmatpush1.msra.mxu0 0.0
      %1599 = vmatprep.subr.mxu0 0.0
      %1600 = vmatpush1.msra.mxu0 0.0
      %1601 = vmatprep.subr.mxu0 0.0
      %1602 = vmatpush1.msra.mxu0 0.0
      %1603 = vmatprep.subr.mxu0 0.0
      %1604 = vmatpush1.msra.mxu0 0.0
      %1605 = vmatprep.subr.mxu0 0.0
      %1606 = vmatpush1.msra.mxu0 0.0
      %1607 = vmatprep.subr.mxu0 0.0
      %1608 = vmatpush1.msra.mxu0 0.0
      %1609 = vmatprep.subr.mxu0 0.0
      %1610 = vmatpush1.msra.mxu0 0.0
      %1611 = vmatprep.subr.mxu0 %v1266
      %1612 = vmatpush1.msra.mxu0 %v1265
      %1613 = vmatprep.subr.mxu0 %v1263
      %1614 = vmatpush1.msra.mxu0 %v1262
      %1615 = vmatprep.subr.mxu0 0.0
      %1616 = vmatpush2.msra.mxu0 0.0
      %1617 = vmatprep.subr.mxu0 0.0
      %1618 = vmatpush2.msra.mxu0 0.0
      %1619 = vmatprep.subr.mxu0 0.0
      %1620 = vmatpush2.msra.mxu0 0.0
      %1621 = vmatprep.subr.mxu0 0.0
      %1622 = vmatpush2.msra.mxu0 0.0
      %1623 = vmatprep.subr.mxu0 0.0
      %1624 = vmatpush2.msra.mxu0 0.0
      %1625 = vmatprep.subr.mxu0 0.0
      %1626 = vmatpush2.msra.mxu0 0.0
      %1627 = vmatprep.subr.mxu0 0.0
      %1628 = vmatpush2.msra.mxu0 0.0
      %1629 = vmatprep.subr.mxu0 0.0
      %1630 = vmatpush2.msra.mxu0 0.0
      %1631 = vmatprep.subr.mxu0 0.0
      %1632 = vmatpush2.msra.mxu0 0.0
      %1633 = vmatprep.subr.mxu0 0.0
      %1634 = vmatpush2.msra.mxu0 0.0
      %1635 = vmatprep.subr.mxu0 0.0
      %1636 = vmatpush2.msra.mxu0 0.0
      %1637 = vmatprep.subr.mxu0 0.0
      %1638 = vmatpush2.msra.mxu0 0.0
      %1639 = vmatprep.subr.mxu0 0.0
      %1640 = vmatpush2.msra.mxu0 0.0
      %1641 = vmatprep.subr.mxu0 0.0
      %1642 = vmatpush2.msra.mxu0 0.0
      %1643 = vmatprep.subr.mxu0 0.0
      %1644 = vmatpush2.msra.mxu0 0.0
      %1645 = vmatprep.subr.mxu0 0.0
      %1646 = vmatpush2.msra.mxu0 0.0
      %1647 = vmatprep.mubr.f32.mxu0 0.0
      %1648 = vmatmul.mubr.f32.gmra.mxu0 %v1581
      %v1649 = vpop.f32.mrf.mxu0
      %v1650 = vadd.f32 0.0, %v1649
      %v1651 = vpop.f32.mrf.mxu0
      %v1652 = vadd.f32 0.0, %v1651
      %1653 = vdwg.mxu0
      %1654 = vrot.lane.b32.xlu0 %v1261, 16
      %v1655 = vpop.permute.xlu0 %1654
      %1656 = vrot.lane.b32.xlu0 %v1262, 16
      %v1657 = vpop.permute.xlu0 %1656
      %1658 = vrot.lane.b32.xlu0 %v1263, 16
      %v1659 = vpop.permute.xlu0 %1658
      %1660 = vrot.lane.b32.xlu0 %v1264, 16
      %v1661 = vpop.permute.xlu0 %1660
      %1662 = vrot.lane.b32.xlu0 %v1265, 16
      %v1663 = vpop.permute.xlu0 %1662
      %1664 = vrot.lane.b32.xlu0 %v1266, 16
      %v1665 = vpop.permute.xlu0 %1664
      %v1666 = vsel %vm720, %v1655, %v1657
      %v1667 = vsel %vm720, %v1657, %v1659
      %v1668 = vsel %vm720, %v1661, %v1663
      %v1669 = vsel %vm720, %v1663, %v1665
      %v1675 = vsel %vm720, %v1577, 0
      %1677 = vmatprep.subr.mxu0 0.0
      %1678 = vmatpush1.msra.mxu0 0.0
      %1679 = vmatprep.subr.mxu0 0.0
      %1680 = vmatpush1.msra.mxu0 0.0
      %1681 = vmatprep.subr.mxu0 0.0
      %1682 = vmatpush1.msra.mxu0 0.0
      %1683 = vmatprep.subr.mxu0 0.0
      %1684 = vmatpush1.msra.mxu0 0.0
      %1685 = vmatprep.subr.mxu0 0.0
      %1686 = vmatpush1.msra.mxu0 0.0
      %1687 = vmatprep.subr.mxu0 0.0
      %1688 = vmatpush1.msra.mxu0 0.0
      %1689 = vmatprep.subr.mxu0 0.0
      %1690 = vmatpush1.msra.mxu0 0.0
      %1691 = vmatprep.subr.mxu0 0.0
      %1692 = vmatpush1.msra.mxu0 0.0
      %1693 = vmatprep.subr.mxu0 0.0
      %1694 = vmatpush1.msra.mxu0 0.0
      %1695 = vmatprep.subr.mxu0 0.0
      %1696 = vmatpush1.msra.mxu0 0.0
      %1697 = vmatprep.subr.mxu0 0.0
      %1698 = vmatpush1.msra.mxu0 0.0
      %1699 = vmatprep.subr.mxu0 0.0
      %1700 = vmatpush1.msra.mxu0 0.0
      %1701 = vmatprep.subr.mxu0 0.0
      %1702 = vmatpush1.msra.mxu0 0.0
      %1703 = vmatprep.subr.mxu0 0.0
      %1704 = vmatpush1.msra.mxu0 0.0
      %1705 = vmatprep.subr.mxu0 %v1669
      %1706 = vmatpush1.msra.mxu0 %v1668
      %1707 = vmatprep.subr.mxu0 %v1667
      %1708 = vmatpush1.msra.mxu0 %v1666
      %1709 = vmatprep.subr.mxu0 0.0
      %1710 = vmatpush2.msra.mxu0 0.0
      %1711 = vmatprep.subr.mxu0 0.0
      %1712 = vmatpush2.msra.mxu0 0.0
      %1713 = vmatprep.subr.mxu0 0.0
      %1714 = vmatpush2.msra.mxu0 0.0
      %1715 = vmatprep.subr.mxu0 0.0
      %1716 = vmatpush2.msra.mxu0 0.0
      %1717 = vmatprep.subr.mxu0 0.0
      %1718 = vmatpush2.msra.mxu0 0.0
      %1719 = vmatprep.subr.mxu0 0.0
      %1720 = vmatpush2.msra.mxu0 0.0
      %1721 = vmatprep.subr.mxu0 0.0
      %1722 = vmatpush2.msra.mxu0 0.0
      %1723 = vmatprep.subr.mxu0 0.0
      %1724 = vmatpush2.msra.mxu0 0.0
      %1725 = vmatprep.subr.mxu0 0.0
      %1726 = vmatpush2.msra.mxu0 0.0
      %1727 = vmatprep.subr.mxu0 0.0
      %1728 = vmatpush2.msra.mxu0 0.0
      %1729 = vmatprep.subr.mxu0 0.0
      %1730 = vmatpush2.msra.mxu0 0.0
      %1731 = vmatprep.subr.mxu0 0.0
      %1732 = vmatpush2.msra.mxu0 0.0
      %1733 = vmatprep.subr.mxu0 0.0
      %1734 = vmatpush2.msra.mxu0 0.0
      %1735 = vmatprep.subr.mxu0 0.0
      %1736 = vmatpush2.msra.mxu0 0.0
      %1737 = vmatprep.subr.mxu0 0.0
      %1738 = vmatpush2.msra.mxu0 0.0
      %1739 = vmatprep.subr.mxu0 0.0
      %1740 = vmatpush2.msra.mxu0 0.0
      %1741 = vmatprep.mubr.f32.mxu0 0.0
      %1742 = vmatmul.mubr.f32.gmra.mxu0 %v1675
      %v1743 = vpop.f32.mrf.mxu0
      %v1744 = vadd.f32 %v1650, %v1743
      %v1745 = vpop.f32.mrf.mxu0
      %v1746 = vadd.f32 %v1652, %v1745
      %1747 = vdwg.mxu0
      %s1748 = scalar_lea.vmem %s3, 56
      %v1749 = vld [vmem:[%s1748] sm:$0xff]
      %1750 = vrot.lane.b32.xlu0 %v1464, 112
      %v1751 = vpop.permute.xlu0 %1750
      %1752 = vrot.lane.b32.xlu0 %v1465, 112
      %v1753 = vpop.permute.xlu0 %1752
      %1754 = vrot.lane.b32.xlu0 %v1466, 112
      %v1755 = vpop.permute.xlu0 %1754
      %1756 = vrot.lane.b32.xlu0 %v1467, 112
      %v1757 = vpop.permute.xlu0 %1756
      %1758 = vrot.lane.b32.xlu0 %v1468, 112
      %v1759 = vpop.permute.xlu0 %1758
      %1760 = vrot.lane.b32.xlu0 %v1469, 112
      %v1761 = vpop.permute.xlu0 %1760
      %v1762 = vsel %vm819, %v1751, %v1753
      %v1763 = vsel %vm819, %v1753, %v1755
      %v1764 = vsel %vm819, %v1757, %v1759
      %v1765 = vsel %vm819, %v1759, %v1761
      %v1771 = vsel %vm720, %v1749, 0
      %1773 = vmatprep.subr.mxu0 0.0
      %1774 = vmatpush1.msra.mxu0 0.0
      %1775 = vmatprep.subr.mxu0 0.0
      %1776 = vmatpush1.msra.mxu0 0.0
      %1777 = vmatprep.subr.mxu0 0.0
      %1778 = vmatpush1.msra.mxu0 0.0
      %1779 = vmatprep.subr.mxu0 0.0
      %1780 = vmatpush1.msra.mxu0 0.0
      %1781 = vmatprep.subr.mxu0 0.0
      %1782 = vmatpush1.msra.mxu0 0.0
      %1783 = vmatprep.subr.mxu0 0.0
      %1784 = vmatpush1.msra.mxu0 0.0
      %1785 = vmatprep.subr.mxu0 0.0
      %1786 = vmatpush1.msra.mxu0 0.0
      %1787 = vmatprep.subr.mxu0 0.0
      %1788 = vmatpush1.msra.mxu0 0.0
      %1789 = vmatprep.subr.mxu0 0.0
      %1790 = vmatpush1.msra.mxu0 0.0
      %1791 = vmatprep.subr.mxu0 0.0
      %1792 = vmatpush1.msra.mxu0 0.0
      %1793 = vmatprep.subr.mxu0 0.0
      %1794 = vmatpush1.msra.mxu0 0.0
      %1795 = vmatprep.subr.mxu0 0.0
      %1796 = vmatpush1.msra.mxu0 0.0
      %1797 = vmatprep.subr.mxu0 0.0
      %1798 = vmatpush1.msra.mxu0 0.0
      %1799 = vmatprep.subr.mxu0 0.0
      %1800 = vmatpush1.msra.mxu0 0.0
      %1801 = vmatprep.subr.mxu0 %v1765
      %1802 = vmatpush1.msra.mxu0 %v1764
      %1803 = vmatprep.subr.mxu0 %v1763
      %1804 = vmatpush1.msra.mxu0 %v1762
      %1805 = vmatprep.subr.mxu0 0.0
      %1806 = vmatpush2.msra.mxu0 0.0
      %1807 = vmatprep.subr.mxu0 0.0
      %1808 = vmatpush2.msra.mxu0 0.0
      %1809 = vmatprep.subr.mxu0 0.0
      %1810 = vmatpush2.msra.mxu0 0.0
      %1811 = vmatprep.subr.mxu0 0.0
      %1812 = vmatpush2.msra.mxu0 0.0
      %1813 = vmatprep.subr.mxu0 0.0
      %1814 = vmatpush2.msra.mxu0 0.0
      %1815 = vmatprep.subr.mxu0 0.0
      %1816 = vmatpush2.msra.mxu0 0.0
      %1817 = vmatprep.subr.mxu0 0.0
      %1818 = vmatpush2.msra.mxu0 0.0
      %1819 = vmatprep.subr.mxu0 0.0
      %1820 = vmatpush2.msra.mxu0 0.0
      %1821 = vmatprep.subr.mxu0 0.0
      %1822 = vmatpush2.msra.mxu0 0.0
      %1823 = vmatprep.subr.mxu0 0.0
      %1824 = vmatpush2.msra.mxu0 0.0
      %1825 = vmatprep.subr.mxu0 0.0
      %1826 = vmatpush2.msra.mxu0 0.0
      %1827 = vmatprep.subr.mxu0 0.0
      %1828 = vmatpush2.msra.mxu0 0.0
      %1829 = vmatprep.subr.mxu0 0.0
      %1830 = vmatpush2.msra.mxu0 0.0
      %1831 = vmatprep.subr.mxu0 0.0
      %1832 = vmatpush2.msra.mxu0 0.0
      %1833 = vmatprep.subr.mxu0 0.0
      %1834 = vmatpush2.msra.mxu0 0.0
      %1835 = vmatprep.subr.mxu0 0.0
      %1836 = vmatpush2.msra.mxu0 0.0
      %1837 = vmatprep.mubr.f32.mxu0 0.0
      %1838 = vmatmul.mubr.f32.gmra.mxu0 %v1771
      %v1839 = vpop.f32.mrf.mxu0
      %v1840 = vadd.f32 0.0, %v1839
      %v1841 = vpop.f32.mrf.mxu0
      %v1842 = vadd.f32 0.0, %v1841
      %1843 = vdwg.mxu0
      %v1844 = vadd.f32 %v1744, %v1840
      %v1845 = vadd.f32 %v1746, %v1842
      %v1846 = vadd.f32 %v1574, %v1844
      %v1847 = vadd.f32 %v1575, %v1845
      %s1848 = scalar_lea.vmem %s3, 16
      %v1849 = vld [vmem:[%s1848] sm:$0xff]
      %s1850 = scalar_lea.vmem %s3, 40
      %v1851 = vld [vmem:[%s1850] sm:$0xff]
      %1852 = vrot.lane.b32.xlu0 %v1464, 127
      %v1853 = vpop.permute.xlu0 %1852
      %1854 = vrot.lane.b32.xlu0 %v1465, 127
      %v1855 = vpop.permute.xlu0 %1854
      %1856 = vrot.lane.b32.xlu0 %v1466, 127
      %v1857 = vpop.permute.xlu0 %1856
      %1858 = vrot.lane.b32.xlu0 %v1467, 127
      %v1859 = vpop.permute.xlu0 %1858
      %1860 = vrot.lane.b32.xlu0 %v1468, 127
      %v1861 = vpop.permute.xlu0 %1860
      %1862 = vrot.lane.b32.xlu0 %v1469, 127
      %v1863 = vpop.permute.xlu0 %1862
      %v1864 = vsel %vm929, %v1853, %v1855
      %v1865 = vsel %vm929, %v1855, %v1857
      %v1866 = vsel %vm929, %v1859, %v1861
      %v1867 = vsel %vm929, %v1861, %v1863
      %v1873 = vsel %vm720, %v1851, 0
      %1875 = vmatprep.subr.mxu0 0.0
      %1876 = vmatpush1.msra.mxu0 0.0
      %1877 = vmatprep.subr.mxu0 0.0
      %1878 = vmatpush1.msra.mxu0 0.0
      %1879 = vmatprep.subr.mxu0 0.0
      %1880 = vmatpush1.msra.mxu0 0.0
      %1881 = vmatprep.subr.mxu0 0.0
      %1882 = vmatpush1.msra.mxu0 0.0
      %1883 = vmatprep.subr.mxu0 0.0
      %1884 = vmatpush1.msra.mxu0 0.0
      %1885 = vmatprep.subr.mxu0 0.0
      %1886 = vmatpush1.msra.mxu0 0.0
      %1887 = vmatprep.subr.mxu0 0.0
      %1888 = vmatpush1.msra.mxu0 0.0
      %1889 = vmatprep.subr.mxu0 0.0
      %1890 = vmatpush1.msra.mxu0 0.0
      %1891 = vmatprep.subr.mxu0 0.0
      %1892 = vmatpush1.msra.mxu0 0.0
      %1893 = vmatprep.subr.mxu0 0.0
      %1894 = vmatpush1.msra.mxu0 0.0
      %1895 = vmatprep.subr.mxu0 0.0
      %1896 = vmatpush1.msra.mxu0 0.0
      %1897 = vmatprep.subr.mxu0 0.0
      %1898 = vmatpush1.msra.mxu0 0.0
      %1899 = vmatprep.subr.mxu0 0.0
      %1900 = vmatpush1.msra.mxu0 0.0
      %1901 = vmatprep.subr.mxu0 0.0
      %1902 = vmatpush1.msra.mxu0 0.0
      %1903 = vmatprep.subr.mxu0 %v1867
      %1904 = vmatpush1.msra.mxu0 %v1866
      %1905 = vmatprep.subr.mxu0 %v1865
      %1906 = vmatpush1.msra.mxu0 %v1864
      %1907 = vmatprep.subr.mxu0 0.0
      %1908 = vmatpush2.msra.mxu0 0.0
      %1909 = vmatprep.subr.mxu0 0.0
      %1910 = vmatpush2.msra.mxu0 0.0
      %1911 = vmatprep.subr.mxu0 0.0
      %1912 = vmatpush2.msra.mxu0 0.0
      %1913 = vmatprep.subr.mxu0 0.0
      %1914 = vmatpush2.msra.mxu0 0.0
      %1915 = vmatprep.subr.mxu0 0.0
      %1916 = vmatpush2.msra.mxu0 0.0
      %1917 = vmatprep.subr.mxu0 0.0
      %1918 = vmatpush2.msra.mxu0 0.0
      %1919 = vmatprep.subr.mxu0 0.0
      %1920 = vmatpush2.msra.mxu0 0.0
      %1921 = vmatprep.subr.mxu0 0.0
      %1922 = vmatpush2.msra.mxu0 0.0
      %1923 = vmatprep.subr.mxu0 0.0
      %1924 = vmatpush2.msra.mxu0 0.0
      %1925 = vmatprep.subr.mxu0 0.0
      %1926 = vmatpush2.msra.mxu0 0.0
      %1927 = vmatprep.subr.mxu0 0.0
      %1928 = vmatpush2.msra.mxu0 0.0
      %1929 = vmatprep.subr.mxu0 0.0
      %1930 = vmatpush2.msra.mxu0 0.0
      %1931 = vmatprep.subr.mxu0 0.0
      %1932 = vmatpush2.msra.mxu0 0.0
      %1933 = vmatprep.subr.mxu0 0.0
      %1934 = vmatpush2.msra.mxu0 0.0
      %1935 = vmatprep.subr.mxu0 0.0
      %1936 = vmatpush2.msra.mxu0 0.0
      %1937 = vmatprep.subr.mxu0 0.0
      %1938 = vmatpush2.msra.mxu0 0.0
      %1939 = vmatprep.mubr.f32.mxu0 0.0
      %1940 = vmatmul.mubr.f32.gmra.mxu0 %v1873
      %v1941 = vpop.f32.mrf.mxu0
      %v1942 = vadd.f32 0.0, %v1941
      %v1943 = vpop.f32.mrf.mxu0
      %v1944 = vadd.f32 0.0, %v1943
      %1945 = vdwg.mxu0
      %1946 = vrot.lane.b32.xlu0 %v1261, 15
      %v1947 = vpop.permute.xlu0 %1946
      %1948 = vrot.lane.b32.xlu0 %v1262, 15
      %v1949 = vpop.permute.xlu0 %1948
      %1950 = vrot.lane.b32.xlu0 %v1263, 15
      %v1951 = vpop.permute.xlu0 %1950
      %1952 = vrot.lane.b32.xlu0 %v1264, 15
      %v1953 = vpop.permute.xlu0 %1952
      %1954 = vrot.lane.b32.xlu0 %v1265, 15
      %v1955 = vpop.permute.xlu0 %1954
      %1956 = vrot.lane.b32.xlu0 %v1266, 15
      %v1957 = vpop.permute.xlu0 %1956
      %v1958 = vsel %vm1025, %v1947, %v1949
      %v1959 = vsel %vm1025, %v1949, %v1951
      %v1960 = vsel %vm1025, %v1953, %v1955
      %v1961 = vsel %vm1025, %v1955, %v1957
      %v1967 = vsel %vm720, %v1849, 0
      %1969 = vmatprep.subr.mxu0 0.0
      %1970 = vmatpush1.msra.mxu0 0.0
      %1971 = vmatprep.subr.mxu0 0.0
      %1972 = vmatpush1.msra.mxu0 0.0
      %1973 = vmatprep.subr.mxu0 0.0
      %1974 = vmatpush1.msra.mxu0 0.0
      %1975 = vmatprep.subr.mxu0 0.0
      %1976 = vmatpush1.msra.mxu0 0.0
      %1977 = vmatprep.subr.mxu0 0.0
      %1978 = vmatpush1.msra.mxu0 0.0
      %1979 = vmatprep.subr.mxu0 0.0
      %1980 = vmatpush1.msra.mxu0 0.0
      %1981 = vmatprep.subr.mxu0 0.0
      %1982 = vmatpush1.msra.mxu0 0.0
      %1983 = vmatprep.subr.mxu0 0.0
      %1984 = vmatpush1.msra.mxu0 0.0
      %1985 = vmatprep.subr.mxu0 0.0
      %1986 = vmatpush1.msra.mxu0 0.0
      %1987 = vmatprep.subr.mxu0 0.0
      %1988 = vmatpush1.msra.mxu0 0.0
      %1989 = vmatprep.subr.mxu0 0.0
      %1990 = vmatpush1.msra.mxu0 0.0
      %1991 = vmatprep.subr.mxu0 0.0
      %1992 = vmatpush1.msra.mxu0 0.0
      %1993 = vmatprep.subr.mxu0 0.0
      %1994 = vmatpush1.msra.mxu0 0.0
      %1995 = vmatprep.subr.mxu0 0.0
      %1996 = vmatpush1.msra.mxu0 0.0
      %1997 = vmatprep.subr.mxu0 %v1961
      %1998 = vmatpush1.msra.mxu0 %v1960
      %1999 = vmatprep.subr.mxu0 %v1959
      %2000 = vmatpush1.msra.mxu0 %v1958
      %2001 = vmatprep.subr.mxu0 0.0
      %2002 = vmatpush2.msra.mxu0 0.0
      %2003 = vmatprep.subr.mxu0 0.0
      %2004 = vmatpush2.msra.mxu0 0.0
      %2005 = vmatprep.subr.mxu0 0.0
      %2006 = vmatpush2.msra.mxu0 0.0
      %2007 = vmatprep.subr.mxu0 0.0
      %2008 = vmatpush2.msra.mxu0 0.0
      %2009 = vmatprep.subr.mxu0 0.0
      %2010 = vmatpush2.msra.mxu0 0.0
      %2011 = vmatprep.subr.mxu0 0.0
      %2012 = vmatpush2.msra.mxu0 0.0
      %2013 = vmatprep.subr.mxu0 0.0
      %2014 = vmatpush2.msra.mxu0 0.0
      %2015 = vmatprep.subr.mxu0 0.0
      %2016 = vmatpush2.msra.mxu0 0.0
      %2017 = vmatprep.subr.mxu0 0.0
      %2018 = vmatpush2.msra.mxu0 0.0
      %2019 = vmatprep.subr.mxu0 0.0
      %2020 = vmatpush2.msra.mxu0 0.0
      %2021 = vmatprep.subr.mxu0 0.0
      %2022 = vmatpush2.msra.mxu0 0.0
      %2023 = vmatprep.subr.mxu0 0.0
      %2024 = vmatpush2.msra.mxu0 0.0
      %2025 = vmatprep.subr.mxu0 0.0
      %2026 = vmatpush2.msra.mxu0 0.0
      %2027 = vmatprep.subr.mxu0 0.0
      %2028 = vmatpush2.msra.mxu0 0.0
      %2029 = vmatprep.subr.mxu0 0.0
      %2030 = vmatpush2.msra.mxu0 0.0
      %2031 = vmatprep.subr.mxu0 0.0
      %2032 = vmatpush2.msra.mxu0 0.0
      %2033 = vmatprep.mubr.f32.mxu0 0.0
      %2034 = vmatmul.mubr.f32.gmra.mxu0 %v1967
      %v2035 = vpop.f32.mrf.mxu0
      %v2036 = vadd.f32 %v1942, %v2035
      %v2037 = vpop.f32.mrf.mxu0
      %v2038 = vadd.f32 %v1944, %v2037
      %2039 = vdwg.mxu0
      %s2040 = scalar_lea.vmem %s3, 64
      %v2041 = vld [vmem:[%s2040] sm:$0xff]
      %2042 = vrot.lane.b32.xlu0 %v1464, 111
      %v2043 = vpop.permute.xlu0 %2042
      %2044 = vrot.lane.b32.xlu0 %v1465, 111
      %v2045 = vpop.permute.xlu0 %2044
      %2046 = vrot.lane.b32.xlu0 %v1466, 111
      %v2047 = vpop.permute.xlu0 %2046
      %2048 = vrot.lane.b32.xlu0 %v1467, 111
      %v2049 = vpop.permute.xlu0 %2048
      %2050 = vrot.lane.b32.xlu0 %v1468, 111
      %v2051 = vpop.permute.xlu0 %2050
      %2052 = vrot.lane.b32.xlu0 %v1469, 111
      %v2053 = vpop.permute.xlu0 %2052
      %v2054 = vsel %vm1124, %v2043, %v2045
      %v2055 = vsel %vm1124, %v2045, %v2047
      %v2056 = vsel %vm1124, %v2049, %v2051
      %v2057 = vsel %vm1124, %v2051, %v2053
      %v2063 = vsel %vm720, %v2041, 0
      %2065 = vmatprep.subr.mxu0 0.0
      %2066 = vmatpush1.msra.mxu0 0.0
      %2067 = vmatprep.subr.mxu0 0.0
      %2068 = vmatpush1.msra.mxu0 0.0
      %2069 = vmatprep.subr.mxu0 0.0
      %2070 = vmatpush1.msra.mxu0 0.0
      %2071 = vmatprep.subr.mxu0 0.0
      %2072 = vmatpush1.msra.mxu0 0.0
      %2073 = vmatprep.subr.mxu0 0.0
      %2074 = vmatpush1.msra.mxu0 0.0
      %2075 = vmatprep.subr.mxu0 0.0
      %2076 = vmatpush1.msra.mxu0 0.0
      %2077 = vmatprep.subr.mxu0 0.0
      %2078 = vmatpush1.msra.mxu0 0.0
      %2079 = vmatprep.subr.mxu0 0.0
      %2080 = vmatpush1.msra.mxu0 0.0
      %2081 = vmatprep.subr.mxu0 0.0
      %2082 = vmatpush1.msra.mxu0 0.0
      %2083 = vmatprep.subr.mxu0 0.0
      %2084 = vmatpush1.msra.mxu0 0.0
      %2085 = vmatprep.subr.mxu0 0.0
      %2086 = vmatpush1.msra.mxu0 0.0
      %2087 = vmatprep.subr.mxu0 0.0
      %2088 = vmatpush1.msra.mxu0 0.0
      %2089 = vmatprep.subr.mxu0 0.0
      %2090 = vmatpush1.msra.mxu0 0.0
      %2091 = vmatprep.subr.mxu0 0.0
      %2092 = vmatpush1.msra.mxu0 0.0
      %2093 = vmatprep.subr.mxu0 %v2057
      %2094 = vmatpush1.msra.mxu0 %v2056
      %2095 = vmatprep.subr.mxu0 %v2055
      %2096 = vmatpush1.msra.mxu0 %v2054
      %2097 = vmatprep.subr.mxu0 0.0
      %2098 = vmatpush2.msra.mxu0 0.0
      %2099 = vmatprep.subr.mxu0 0.0
      %2100 = vmatpush2.msra.mxu0 0.0
      %2101 = vmatprep.subr.mxu0 0.0
      %2102 = vmatpush2.msra.mxu0 0.0
      %2103 = vmatprep.subr.mxu0 0.0
      %2104 = vmatpush2.msra.mxu0 0.0
      %2105 = vmatprep.subr.mxu0 0.0
      %2106 = vmatpush2.msra.mxu0 0.0
      %2107 = vmatprep.subr.mxu0 0.0
      %2108 = vmatpush2.msra.mxu0 0.0
      %2109 = vmatprep.subr.mxu0 0.0
      %2110 = vmatpush2.msra.mxu0 0.0
      %2111 = vmatprep.subr.mxu0 0.0
      %2112 = vmatpush2.msra.mxu0 0.0
      %2113 = vmatprep.subr.mxu0 0.0
      %2114 = vmatpush2.msra.mxu0 0.0
      %2115 = vmatprep.subr.mxu0 0.0
      %2116 = vmatpush2.msra.mxu0 0.0
      %2117 = vmatprep.subr.mxu0 0.0
      %2118 = vmatpush2.msra.mxu0 0.0
      %2119 = vmatprep.subr.mxu0 0.0
      %2120 = vmatpush2.msra.mxu0 0.0
      %2121 = vmatprep.subr.mxu0 0.0
      %2122 = vmatpush2.msra.mxu0 0.0
      %2123 = vmatprep.subr.mxu0 0.0
      %2124 = vmatpush2.msra.mxu0 0.0
      %2125 = vmatprep.subr.mxu0 0.0
      %2126 = vmatpush2.msra.mxu0 0.0
      %2127 = vmatprep.subr.mxu0 0.0
      %2128 = vmatpush2.msra.mxu0 0.0
      %2129 = vmatprep.mubr.f32.mxu0 0.0
      %2130 = vmatmul.mubr.f32.gmra.mxu0 %v2063
      %v2131 = vpop.f32.mrf.mxu0
      %v2132 = vadd.f32 0.0, %v2131
      %v2133 = vpop.f32.mrf.mxu0
      %v2134 = vadd.f32 0.0, %v2133
      %2135 = vdwg.mxu0
      %v2136 = vadd.f32 %v2036, %v2132
      %v2137 = vadd.f32 %v2038, %v2134
      %v2138 = vmul.f32 %v2136, %v1222
      %v2139 = vmul.f32 %v2137, %v1226
      %v2140 = vadd.f32 %v1846, %v2138
      %v2141 = vadd.f32 %v1847, %v2139
      %s2142 = scalar_lea.vmem %s6, 16
      %v2143 = vld [vmem:[%s2142] sm:$0xff]
      %2145 = vset.pattern.permute.xlu0 0
      %2146 = vperm.xlu0 %2145, %v2143
      %v2147 = vpop.permute.xlu0 %2146
      %v2149 = vadd.f32 %v2140, %v2147
      %v2150 = vadd.f32 %v2141, %v2147
      %v2151 = vmax.f32 %v2149, 0.0
      %v2152 = vmax.f32 %v2150, 0.0
      %2153 = vst [vmem:[#allocation2 + $0x8] sm:$0xff] %v2151
      %2154 = vst [vmem:[#allocation2 + $0x10] sm:$0xff] %v2152
      %v2155 = vld [vmem:[#allocation2] sm:$0xff]
      %v2156 = vld [vmem:[#allocation2 + $0x8] sm:$0xff]
      %v2157 = vld [vmem:[#allocation2 + $0x10] sm:$0xff]
      %v2158 = vld [vmem:[%s4] sm:$0xf]
      %s2159 = scalar_lea.vmem %s4, 12
      %v2160 = vld [vmem:[%s2159] sm:$0xf]
      %2164 = vrot.lane.b32.xlu0 %v2155, 1
      %v2165 = vpop.permute.xlu0 %2164
      %2166 = vrot.lane.b32.xlu0 %v2156, 1
      %v2167 = vpop.permute.xlu0 %2166
      %2168 = vrot.lane.b32.xlu0 %v2157, 1
      %v2169 = vpop.permute.xlu0 %2168
      %v2170 = vsel %vm309, %v2165, %v2167
      %v2171 = vsel %vm309, %v2167, %v2169
      %vm2174 = vcmask 64512
      %v2176 = vsel %vm2174, %v2160, 0
      %2178 = vmatprep.subr.mxu0 0.0
      %2179 = vmatpush1.msra.mxu0 0.0
      %2180 = vmatprep.subr.mxu0 0.0
      %2181 = vmatpush1.msra.mxu0 0.0
      %2182 = vmatprep.subr.mxu0 0.0
      %2183 = vmatpush1.msra.mxu0 0.0
      %2184 = vmatprep.subr.mxu0 0.0
      %2185 = vmatpush1.msra.mxu0 0.0
      %2186 = vmatprep.subr.mxu0 0.0
      %2187 = vmatpush1.msra.mxu0 0.0
      %2188 = vmatprep.subr.mxu0 0.0
      %2189 = vmatpush1.msra.mxu0 0.0
      %2190 = vmatprep.subr.mxu0 0.0
      %2191 = vmatpush1.msra.mxu0 0.0
      %2192 = vmatprep.subr.mxu0 0.0
      %2193 = vmatpush1.msra.mxu0 0.0
      %2194 = vmatprep.subr.mxu0 0.0
      %2195 = vmatpush1.msra.mxu0 0.0
      %2196 = vmatprep.subr.mxu0 0.0
      %2197 = vmatpush1.msra.mxu0 0.0
      %2198 = vmatprep.subr.mxu0 0.0
      %2199 = vmatpush1.msra.mxu0 0.0
      %2200 = vmatprep.subr.mxu0 0.0
      %2201 = vmatpush1.msra.mxu0 0.0
      %2202 = vmatprep.subr.mxu0 0.0
      %2203 = vmatpush1.msra.mxu0 0.0
      %2204 = vmatprep.subr.mxu0 0.0
      %2205 = vmatpush1.msra.mxu0 0.0
      %2206 = vmatprep.subr.mxu0 0.0
      %2207 = vmatpush1.msra.mxu0 0.0
      %2208 = vmatprep.subr.mxu0 %v2171
      %2209 = vmatpush1.msra.mxu0 %v2170
      %2210 = vmatprep.subr.mxu0 0.0
      %2211 = vmatpush2.msra.mxu0 0.0
      %2212 = vmatprep.subr.mxu0 0.0
      %2213 = vmatpush2.msra.mxu0 0.0
      %2214 = vmatprep.subr.mxu0 0.0
      %2215 = vmatpush2.msra.mxu0 0.0
      %2216 = vmatprep.subr.mxu0 0.0
      %2217 = vmatpush2.msra.mxu0 0.0
      %2218 = vmatprep.subr.mxu0 0.0
      %2219 = vmatpush2.msra.mxu0 0.0
      %2220 = vmatprep.subr.mxu0 0.0
      %2221 = vmatpush2.msra.mxu0 0.0
      %2222 = vmatprep.subr.mxu0 0.0
      %2223 = vmatpush2.msra.mxu0 0.0
      %2224 = vmatprep.subr.mxu0 0.0
      %2225 = vmatpush2.msra.mxu0 0.0
      %2226 = vmatprep.subr.mxu0 0.0
      %2227 = vmatpush2.msra.mxu0 0.0
      %2228 = vmatprep.subr.mxu0 0.0
      %2229 = vmatpush2.msra.mxu0 0.0
      %2230 = vmatprep.subr.mxu0 0.0
      %2231 = vmatpush2.msra.mxu0 0.0
      %2232 = vmatprep.subr.mxu0 0.0
      %2233 = vmatpush2.msra.mxu0 0.0
      %2234 = vmatprep.subr.mxu0 0.0
      %2235 = vmatpush2.msra.mxu0 0.0
      %2236 = vmatprep.subr.mxu0 0.0
      %2237 = vmatpush2.msra.mxu0 0.0
      %2238 = vmatprep.subr.mxu0 0.0
      %2239 = vmatpush2.msra.mxu0 0.0
      %2240 = vmatprep.subr.mxu0 0.0
      %2241 = vmatpush2.msra.mxu0 0.0
      %2242 = vmatprep.mubr.f32.mxu0 0.0
      %2243 = vmatmul.mubr.f32.gmra.mxu0 %v2176
      %v2244 = vpop.f32.mrf.mxu0
      %v2245 = vadd.f32 0.0, %v2244
      %v2246 = vpop.f32.mrf.mxu0
      %v2247 = vadd.f32 0.0, %v2246
      %2248 = vdwg.mxu0
      %2249 = vrot.lane.b32.xlu0 %v2155, 17
      %v2250 = vpop.permute.xlu0 %2249
      %2251 = vrot.lane.b32.xlu0 %v2156, 17
      %v2252 = vpop.permute.xlu0 %2251
      %2253 = vrot.lane.b32.xlu0 %v2157, 17
      %v2254 = vpop.permute.xlu0 %2253
      %v2255 = vsel %vm407, %v2250, %v2252
      %v2256 = vsel %vm407, %v2252, %v2254
      %v2260 = vsel %vm2174, %v2158, 0
      %2262 = vmatprep.subr.mxu0 0.0
      %2263 = vmatpush1.msra.mxu0 0.0
      %2264 = vmatprep.subr.mxu0 0.0
      %2265 = vmatpush1.msra.mxu0 0.0
      %2266 = vmatprep.subr.mxu0 0.0
      %2267 = vmatpush1.msra.mxu0 0.0
      %2268 = vmatprep.subr.mxu0 0.0
      %2269 = vmatpush1.msra.mxu0 0.0
      %2270 = vmatprep.subr.mxu0 0.0
      %2271 = vmatpush1.msra.mxu0 0.0
      %2272 = vmatprep.subr.mxu0 0.0
      %2273 = vmatpush1.msra.mxu0 0.0
      %2274 = vmatprep.subr.mxu0 0.0
      %2275 = vmatpush1.msra.mxu0 0.0
      %2276 = vmatprep.subr.mxu0 0.0
      %2277 = vmatpush1.msra.mxu0 0.0
      %2278 = vmatprep.subr.mxu0 0.0
      %2279 = vmatpush1.msra.mxu0 0.0
      %2280 = vmatprep.subr.mxu0 0.0
      %2281 = vmatpush1.msra.mxu0 0.0
      %2282 = vmatprep.subr.mxu0 0.0
      %2283 = vmatpush1.msra.mxu0 0.0
      %2284 = vmatprep.subr.mxu0 0.0
      %2285 = vmatpush1.msra.mxu0 0.0
      %2286 = vmatprep.subr.mxu0 0.0
      %2287 = vmatpush1.msra.mxu0 0.0
      %2288 = vmatprep.subr.mxu0 0.0
      %2289 = vmatpush1.msra.mxu0 0.0
      %2290 = vmatprep.subr.mxu0 0.0
      %2291 = vmatpush1.msra.mxu0 0.0
      %2292 = vmatprep.subr.mxu0 %v2256
      %2293 = vmatpush1.msra.mxu0 %v2255
      %2294 = vmatprep.subr.mxu0 0.0
      %2295 = vmatpush2.msra.mxu0 0.0
      %2296 = vmatprep.subr.mxu0 0.0
      %2297 = vmatpush2.msra.mxu0 0.0
      %2298 = vmatprep.subr.mxu0 0.0
      %2299 = vmatpush2.msra.mxu0 0.0
      %2300 = vmatprep.subr.mxu0 0.0
      %2301 = vmatpush2.msra.mxu0 0.0
      %2302 = vmatprep.subr.mxu0 0.0
      %2303 = vmatpush2.msra.mxu0 0.0
      %2304 = vmatprep.subr.mxu0 0.0
      %2305 = vmatpush2.msra.mxu0 0.0
      %2306 = vmatprep.subr.mxu0 0.0
      %2307 = vmatpush2.msra.mxu0 0.0
      %2308 = vmatprep.subr.mxu0 0.0
      %2309 = vmatpush2.msra.mxu0 0.0
      %2310 = vmatprep.subr.mxu0 0.0
      %2311 = vmatpush2.msra.mxu0 0.0
      %2312 = vmatprep.subr.mxu0 0.0
      %2313 = vmatpush2.msra.mxu0 0.0
      %2314 = vmatprep.subr.mxu0 0.0
      %2315 = vmatpush2.msra.mxu0 0.0
      %2316 = vmatprep.subr.mxu0 0.0
      %2317 = vmatpush2.msra.mxu0 0.0
      %2318 = vmatprep.subr.mxu0 0.0
      %2319 = vmatpush2.msra.mxu0 0.0
      %2320 = vmatprep.subr.mxu0 0.0
      %2321 = vmatpush2.msra.mxu0 0.0
      %2322 = vmatprep.subr.mxu0 0.0
      %2323 = vmatpush2.msra.mxu0 0.0
      %2324 = vmatprep.subr.mxu0 0.0
      %2325 = vmatpush2.msra.mxu0 0.0
      %2326 = vmatprep.mubr.f32.mxu0 0.0
      %2327 = vmatmul.mubr.f32.gmra.mxu0 %v2260
      %v2328 = vpop.f32.mrf.mxu0
      %v2329 = vadd.f32 %v2245, %v2328
      %v2330 = vpop.f32.mrf.mxu0
      %v2331 = vadd.f32 %v2247, %v2330
      %2332 = vdwg.mxu0
      %v2333 = vld [vmem:[#allocation2 + $0x8] sm:$0xff]
      %v2334 = vld [vmem:[#allocation2 + $0x10] sm:$0xff]
      %v2335 = vld [vmem:[#allocation2 + $0x18] sm:$0xff]
      %s2336 = scalar_lea.vmem %s4, 24
      %v2337 = vld [vmem:[%s2336] sm:$0xf]
      %2341 = vrot.lane.b32.xlu0 %v2333, 113
      %v2342 = vpop.permute.xlu0 %2341
      %2343 = vrot.lane.b32.xlu0 %v2334, 113
      %v2344 = vpop.permute.xlu0 %2343
      %2345 = vrot.lane.b32.xlu0 %v2335, 113
      %v2346 = vpop.permute.xlu0 %2345
      %v2347 = vsel %vm512, %v2342, %v2344
      %v2348 = vsel %vm512, %v2344, %v2346
      %v2352 = vsel %vm2174, %v2337, 0
      %2354 = vmatprep.subr.mxu0 0.0
      %2355 = vmatpush1.msra.mxu0 0.0
      %2356 = vmatprep.subr.mxu0 0.0
      %2357 = vmatpush1.msra.mxu0 0.0
      %2358 = vmatprep.subr.mxu0 0.0
      %2359 = vmatpush1.msra.mxu0 0.0
      %2360 = vmatprep.subr.mxu0 0.0
      %2361 = vmatpush1.msra.mxu0 0.0
      %2362 = vmatprep.subr.mxu0 0.0
      %2363 = vmatpush1.msra.mxu0 0.0
      %2364 = vmatprep.subr.mxu0 0.0
      %2365 = vmatpush1.msra.mxu0 0.0
      %2366 = vmatprep.subr.mxu0 0.0
      %2367 = vmatpush1.msra.mxu0 0.0
      %2368 = vmatprep.subr.mxu0 0.0
      %2369 = vmatpush1.msra.mxu0 0.0
      %2370 = vmatprep.subr.mxu0 0.0
      %2371 = vmatpush1.msra.mxu0 0.0
      %2372 = vmatprep.subr.mxu0 0.0
      %2373 = vmatpush1.msra.mxu0 0.0
      %2374 = vmatprep.subr.mxu0 0.0
      %2375 = vmatpush1.msra.mxu0 0.0
      %2376 = vmatprep.subr.mxu0 0.0
      %2377 = vmatpush1.msra.mxu0 0.0
      %2378 = vmatprep.subr.mxu0 0.0
      %2379 = vmatpush1.msra.mxu0 0.0
      %2380 = vmatprep.subr.mxu0 0.0
      %2381 = vmatpush1.msra.mxu0 0.0
      %2382 = vmatprep.subr.mxu0 0.0
      %2383 = vmatpush1.msra.mxu0 0.0
      %2384 = vmatprep.subr.mxu0 %v2348
      %2385 = vmatpush1.msra.mxu0 %v2347
      %2386 = vmatprep.subr.mxu0 0.0
      %2387 = vmatpush2.msra.mxu0 0.0
      %2388 = vmatprep.subr.mxu0 0.0
      %2389 = vmatpush2.msra.mxu0 0.0
      %2390 = vmatprep.subr.mxu0 0.0
      %2391 = vmatpush2.msra.mxu0 0.0
      %2392 = vmatprep.subr.mxu0 0.0
      %2393 = vmatpush2.msra.mxu0 0.0
      %2394 = vmatprep.subr.mxu0 0.0
      %2395 = vmatpush2.msra.mxu0 0.0
      %2396 = vmatprep.subr.mxu0 0.0
      %2397 = vmatpush2.msra.mxu0 0.0
      %2398 = vmatprep.subr.mxu0 0.0
      %2399 = vmatpush2.msra.mxu0 0.0
      %2400 = vmatprep.subr.mxu0 0.0
      %2401 = vmatpush2.msra.mxu0 0.0
      %2402 = vmatprep.subr.mxu0 0.0
      %2403 = vmatpush2.msra.mxu0 0.0
      %2404 = vmatprep.subr.mxu0 0.0
      %2405 = vmatpush2.msra.mxu0 0.0
      %2406 = vmatprep.subr.mxu0 0.0
      %2407 = vmatpush2.msra.mxu0 0.0
      %2408 = vmatprep.subr.mxu0 0.0
      %2409 = vmatpush2.msra.mxu0 0.0
      %2410 = vmatprep.subr.mxu0 0.0
      %2411 = vmatpush2.msra.mxu0 0.0
      %2412 = vmatprep.subr.mxu0 0.0
      %2413 = vmatpush2.msra.mxu0 0.0
      %2414 = vmatprep.subr.mxu0 0.0
      %2415 = vmatpush2.msra.mxu0 0.0
      %2416 = vmatprep.subr.mxu0 0.0
      %2417 = vmatpush2.msra.mxu0 0.0
      %2418 = vmatprep.mubr.f32.mxu0 0.0
      %2419 = vmatmul.mubr.f32.gmra.mxu0 %v2352
      %v2420 = vpop.f32.mrf.mxu0
      %v2421 = vadd.f32 0.0, %v2420
      %v2422 = vpop.f32.mrf.mxu0
      %v2423 = vadd.f32 0.0, %v2422
      %2424 = vdwg.mxu0
      %v2425 = vadd.f32 %v2329, %v2421
      %v2426 = vadd.f32 %v2331, %v2423
      %v2427 = vmul.f32 %v2425, %v610
      %v2428 = vmul.f32 %v2426, %v614
      %s2429 = scalar_lea.vmem %s4, 4
      %v2430 = vld [vmem:[%s2429] sm:$0xf]
      %s2431 = scalar_lea.vmem %s4, 16
      %v2432 = vld [vmem:[%s2431] sm:$0xf]
      %v2434 = vsel %vm2174, %v2432, 0
      %2436 = vmatprep.subr.mxu0 0.0
      %2437 = vmatpush1.msra.mxu0 0.0
      %2438 = vmatprep.subr.mxu0 0.0
      %2439 = vmatpush1.msra.mxu0 0.0
      %2440 = vmatprep.subr.mxu0 0.0
      %2441 = vmatpush1.msra.mxu0 0.0
      %2442 = vmatprep.subr.mxu0 0.0
      %2443 = vmatpush1.msra.mxu0 0.0
      %2444 = vmatprep.subr.mxu0 0.0
      %2445 = vmatpush1.msra.mxu0 0.0
      %2446 = vmatprep.subr.mxu0 0.0
      %2447 = vmatpush1.msra.mxu0 0.0
      %2448 = vmatprep.subr.mxu0 0.0
      %2449 = vmatpush1.msra.mxu0 0.0
      %2450 = vmatprep.subr.mxu0 0.0
      %2451 = vmatpush1.msra.mxu0 0.0
      %2452 = vmatprep.subr.mxu0 0.0
      %2453 = vmatpush1.msra.mxu0 0.0
      %2454 = vmatprep.subr.mxu0 0.0
      %2455 = vmatpush1.msra.mxu0 0.0
      %2456 = vmatprep.subr.mxu0 0.0
      %2457 = vmatpush1.msra.mxu0 0.0
      %2458 = vmatprep.subr.mxu0 0.0
      %2459 = vmatpush1.msra.mxu0 0.0
      %2460 = vmatprep.subr.mxu0 0.0
      %2461 = vmatpush1.msra.mxu0 0.0
      %2462 = vmatprep.subr.mxu0 0.0
      %2463 = vmatpush1.msra.mxu0 0.0
      %2464 = vmatprep.subr.mxu0 0.0
      %2465 = vmatpush1.msra.mxu0 0.0
      %2466 = vmatprep.subr.mxu0 %v2157
      %2467 = vmatpush1.msra.mxu0 %v2156
      %2468 = vmatprep.subr.mxu0 0.0
      %2469 = vmatpush2.msra.mxu0 0.0
      %2470 = vmatprep.subr.mxu0 0.0
      %2471 = vmatpush2.msra.mxu0 0.0
      %2472 = vmatprep.subr.mxu0 0.0
      %2473 = vmatpush2.msra.mxu0 0.0
      %2474 = vmatprep.subr.mxu0 0.0
      %2475 = vmatpush2.msra.mxu0 0.0
      %2476 = vmatprep.subr.mxu0 0.0
      %2477 = vmatpush2.msra.mxu0 0.0
      %2478 = vmatprep.subr.mxu0 0.0
      %2479 = vmatpush2.msra.mxu0 0.0
      %2480 = vmatprep.subr.mxu0 0.0
      %2481 = vmatpush2.msra.mxu0 0.0
      %2482 = vmatprep.subr.mxu0 0.0
      %2483 = vmatpush2.msra.mxu0 0.0
      %2484 = vmatprep.subr.mxu0 0.0
      %2485 = vmatpush2.msra.mxu0 0.0
      %2486 = vmatprep.subr.mxu0 0.0
      %2487 = vmatpush2.msra.mxu0 0.0
      %2488 = vmatprep.subr.mxu0 0.0
      %2489 = vmatpush2.msra.mxu0 0.0
      %2490 = vmatprep.subr.mxu0 0.0
      %2491 = vmatpush2.msra.mxu0 0.0
      %2492 = vmatprep.subr.mxu0 0.0
      %2493 = vmatpush2.msra.mxu0 0.0
      %2494 = vmatprep.subr.mxu0 0.0
      %2495 = vmatpush2.msra.mxu0 0.0
      %2496 = vmatprep.subr.mxu0 0.0
      %2497 = vmatpush2.msra.mxu0 0.0
      %2498 = vmatprep.subr.mxu0 0.0
      %2499 = vmatpush2.msra.mxu0 0.0
      %2500 = vmatprep.mubr.f32.mxu0 0.0
      %2501 = vmatmul.mubr.f32.gmra.mxu0 %v2434
      %v2502 = vpop.f32.mrf.mxu0
      %v2503 = vadd.f32 0.0, %v2502
      %v2504 = vpop.f32.mrf.mxu0
      %v2505 = vadd.f32 0.0, %v2504
      %2506 = vdwg.mxu0
      %2507 = vrot.lane.b32.xlu0 %v2155, 16
      %v2508 = vpop.permute.xlu0 %2507
      %2509 = vrot.lane.b32.xlu0 %v2156, 16
      %v2510 = vpop.permute.xlu0 %2509
      %2511 = vrot.lane.b32.xlu0 %v2157, 16
      %v2512 = vpop.permute.xlu0 %2511
      %v2513 = vsel %vm720, %v2508, %v2510
      %v2514 = vsel %vm720, %v2510, %v2512
      %v2518 = vsel %vm2174, %v2430, 0
      %2520 = vmatprep.subr.mxu0 0.0
      %2521 = vmatpush1.msra.mxu0 0.0
      %2522 = vmatprep.subr.mxu0 0.0
      %2523 = vmatpush1.msra.mxu0 0.0
      %2524 = vmatprep.subr.mxu0 0.0
      %2525 = vmatpush1.msra.mxu0 0.0
      %2526 = vmatprep.subr.mxu0 0.0
      %2527 = vmatpush1.msra.mxu0 0.0
      %2528 = vmatprep.subr.mxu0 0.0
      %2529 = vmatpush1.msra.mxu0 0.0
      %2530 = vmatprep.subr.mxu0 0.0
      %2531 = vmatpush1.msra.mxu0 0.0
      %2532 = vmatprep.subr.mxu0 0.0
      %2533 = vmatpush1.msra.mxu0 0.0
      %2534 = vmatprep.subr.mxu0 0.0
      %2535 = vmatpush1.msra.mxu0 0.0
      %2536 = vmatprep.subr.mxu0 0.0
      %2537 = vmatpush1.msra.mxu0 0.0
      %2538 = vmatprep.subr.mxu0 0.0
      %2539 = vmatpush1.msra.mxu0 0.0
      %2540 = vmatprep.subr.mxu0 0.0
      %2541 = vmatpush1.msra.mxu0 0.0
      %2542 = vmatprep.subr.mxu0 0.0
      %2543 = vmatpush1.msra.mxu0 0.0
      %2544 = vmatprep.subr.mxu0 0.0
      %2545 = vmatpush1.msra.mxu0 0.0
      %2546 = vmatprep.subr.mxu0 0.0
      %2547 = vmatpush1.msra.mxu0 0.0
      %2548 = vmatprep.subr.mxu0 0.0
      %2549 = vmatpush1.msra.mxu0 0.0
      %2550 = vmatprep.subr.mxu0 %v2514
      %2551 = vmatpush1.msra.mxu0 %v2513
      %2552 = vmatprep.subr.mxu0 0.0
      %2553 = vmatpush2.msra.mxu0 0.0
      %2554 = vmatprep.subr.mxu0 0.0
      %2555 = vmatpush2.msra.mxu0 0.0
      %2556 = vmatprep.subr.mxu0 0.0
      %2557 = vmatpush2.msra.mxu0 0.0
      %2558 = vmatprep.subr.mxu0 0.0
      %2559 = vmatpush2.msra.mxu0 0.0
      %2560 = vmatprep.subr.mxu0 0.0
      %2561 = vmatpush2.msra.mxu0 0.0
      %2562 = vmatprep.subr.mxu0 0.0
      %2563 = vmatpush2.msra.mxu0 0.0
      %2564 = vmatprep.subr.mxu0 0.0
      %2565 = vmatpush2.msra.mxu0 0.0
      %2566 = vmatprep.subr.mxu0 0.0
      %2567 = vmatpush2.msra.mxu0 0.0
      %2568 = vmatprep.subr.mxu0 0.0
      %2569 = vmatpush2.msra.mxu0 0.0
      %2570 = vmatprep.subr.mxu0 0.0
      %2571 = vmatpush2.msra.mxu0 0.0
      %2572 = vmatprep.subr.mxu0 0.0
      %2573 = vmatpush2.msra.mxu0 0.0
      %2574 = vmatprep.subr.mxu0 0.0
      %2575 = vmatpush2.msra.mxu0 0.0
      %2576 = vmatprep.subr.mxu0 0.0
      %2577 = vmatpush2.msra.mxu0 0.0
      %2578 = vmatprep.subr.mxu0 0.0
      %2579 = vmatpush2.msra.mxu0 0.0
      %2580 = vmatprep.subr.mxu0 0.0
      %2581 = vmatpush2.msra.mxu0 0.0
      %2582 = vmatprep.subr.mxu0 0.0
      %2583 = vmatpush2.msra.mxu0 0.0
      %2584 = vmatprep.mubr.f32.mxu0 0.0
      %2585 = vmatmul.mubr.f32.gmra.mxu0 %v2518
      %v2586 = vpop.f32.mrf.mxu0
      %v2587 = vadd.f32 %v2503, %v2586
      %v2588 = vpop.f32.mrf.mxu0
      %v2589 = vadd.f32 %v2505, %v2588
      %2590 = vdwg.mxu0
      %s2591 = scalar_lea.vmem %s4, 28
      %v2592 = vld [vmem:[%s2591] sm:$0xf]
      %2593 = vrot.lane.b32.xlu0 %v2333, 112
      %v2594 = vpop.permute.xlu0 %2593
      %2595 = vrot.lane.b32.xlu0 %v2334, 112
      %v2596 = vpop.permute.xlu0 %2595
      %2597 = vrot.lane.b32.xlu0 %v2335, 112
      %v2598 = vpop.permute.xlu0 %2597
      %v2599 = vsel %vm819, %v2594, %v2596
      %v2600 = vsel %vm819, %v2596, %v2598
      %v2604 = vsel %vm2174, %v2592, 0
      %2606 = vmatprep.subr.mxu0 0.0
      %2607 = vmatpush1.msra.mxu0 0.0
      %2608 = vmatprep.subr.mxu0 0.0
      %2609 = vmatpush1.msra.mxu0 0.0
      %2610 = vmatprep.subr.mxu0 0.0
      %2611 = vmatpush1.msra.mxu0 0.0
      %2612 = vmatprep.subr.mxu0 0.0
      %2613 = vmatpush1.msra.mxu0 0.0
      %2614 = vmatprep.subr.mxu0 0.0
      %2615 = vmatpush1.msra.mxu0 0.0
      %2616 = vmatprep.subr.mxu0 0.0
      %2617 = vmatpush1.msra.mxu0 0.0
      %2618 = vmatprep.subr.mxu0 0.0
      %2619 = vmatpush1.msra.mxu0 0.0
      %2620 = vmatprep.subr.mxu0 0.0
      %2621 = vmatpush1.msra.mxu0 0.0
      %2622 = vmatprep.subr.mxu0 0.0
      %2623 = vmatpush1.msra.mxu0 0.0
      %2624 = vmatprep.subr.mxu0 0.0
      %2625 = vmatpush1.msra.mxu0 0.0
      %2626 = vmatprep.subr.mxu0 0.0
      %2627 = vmatpush1.msra.mxu0 0.0
      %2628 = vmatprep.subr.mxu0 0.0
      %2629 = vmatpush1.msra.mxu0 0.0
      %2630 = vmatprep.subr.mxu0 0.0
      %2631 = vmatpush1.msra.mxu0 0.0
      %2632 = vmatprep.subr.mxu0 0.0
      %2633 = vmatpush1.msra.mxu0 0.0
      %2634 = vmatprep.subr.mxu0 0.0
      %2635 = vmatpush1.msra.mxu0 0.0
      %2636 = vmatprep.subr.mxu0 %v2600
      %2637 = vmatpush1.msra.mxu0 %v2599
      %2638 = vmatprep.subr.mxu0 0.0
      %2639 = vmatpush2.msra.mxu0 0.0
      %2640 = vmatprep.subr.mxu0 0.0
      %2641 = vmatpush2.msra.mxu0 0.0
      %2642 = vmatprep.subr.mxu0 0.0
      %2643 = vmatpush2.msra.mxu0 0.0
      %2644 = vmatprep.subr.mxu0 0.0
      %2645 = vmatpush2.msra.mxu0 0.0
      %2646 = vmatprep.subr.mxu0 0.0
      %2647 = vmatpush2.msra.mxu0 0.0
      %2648 = vmatprep.subr.mxu0 0.0
      %2649 = vmatpush2.msra.mxu0 0.0
      %2650 = vmatprep.subr.mxu0 0.0
      %2651 = vmatpush2.msra.mxu0 0.0
      %2652 = vmatprep.subr.mxu0 0.0
      %2653 = vmatpush2.msra.mxu0 0.0
      %2654 = vmatprep.subr.mxu0 0.0
      %2655 = vmatpush2.msra.mxu0 0.0
      %2656 = vmatprep.subr.mxu0 0.0
      %2657 = vmatpush2.msra.mxu0 0.0
      %2658 = vmatprep.subr.mxu0 0.0
      %2659 = vmatpush2.msra.mxu0 0.0
      %2660 = vmatprep.subr.mxu0 0.0
      %2661 = vmatpush2.msra.mxu0 0.0
      %2662 = vmatprep.subr.mxu0 0.0
      %2663 = vmatpush2.msra.mxu0 0.0
      %2664 = vmatprep.subr.mxu0 0.0
      %2665 = vmatpush2.msra.mxu0 0.0
      %2666 = vmatprep.subr.mxu0 0.0
      %2667 = vmatpush2.msra.mxu0 0.0
      %2668 = vmatprep.subr.mxu0 0.0
      %2669 = vmatpush2.msra.mxu0 0.0
      %2670 = vmatprep.mubr.f32.mxu0 0.0
      %2671 = vmatmul.mubr.f32.gmra.mxu0 %v2604
      %v2672 = vpop.f32.mrf.mxu0
      %v2673 = vadd.f32 0.0, %v2672
      %v2674 = vpop.f32.mrf.mxu0
      %v2675 = vadd.f32 0.0, %v2674
      %2676 = vdwg.mxu0
      %v2677 = vadd.f32 %v2587, %v2673
      %v2678 = vadd.f32 %v2589, %v2675
      %v2679 = vadd.f32 %v2427, %v2677
      %v2680 = vadd.f32 %v2428, %v2678
      %s2681 = scalar_lea.vmem %s4, 8
      %v2682 = vld [vmem:[%s2681] sm:$0xf]
      %s2683 = scalar_lea.vmem %s4, 20
      %v2684 = vld [vmem:[%s2683] sm:$0xf]
      %2685 = vrot.lane.b32.xlu0 %v2333, 127
      %v2686 = vpop.permute.xlu0 %2685
      %2687 = vrot.lane.b32.xlu0 %v2334, 127
      %v2688 = vpop.permute.xlu0 %2687
      %2689 = vrot.lane.b32.xlu0 %v2335, 127
      %v2690 = vpop.permute.xlu0 %2689
      %v2691 = vsel %vm929, %v2686, %v2688
      %v2692 = vsel %vm929, %v2688, %v2690
      %v2696 = vsel %vm2174, %v2684, 0
      %2698 = vmatprep.subr.mxu0 0.0
      %2699 = vmatpush1.msra.mxu0 0.0
      %2700 = vmatprep.subr.mxu0 0.0
      %2701 = vmatpush1.msra.mxu0 0.0
      %2702 = vmatprep.subr.mxu0 0.0
      %2703 = vmatpush1.msra.mxu0 0.0
      %2704 = vmatprep.subr.mxu0 0.0
      %2705 = vmatpush1.msra.mxu0 0.0
      %2706 = vmatprep.subr.mxu0 0.0
      %2707 = vmatpush1.msra.mxu0 0.0
      %2708 = vmatprep.subr.mxu0 0.0
      %2709 = vmatpush1.msra.mxu0 0.0
      %2710 = vmatprep.subr.mxu0 0.0
      %2711 = vmatpush1.msra.mxu0 0.0
      %2712 = vmatprep.subr.mxu0 0.0
      %2713 = vmatpush1.msra.mxu0 0.0
      %2714 = vmatprep.subr.mxu0 0.0
      %2715 = vmatpush1.msra.mxu0 0.0
      %2716 = vmatprep.subr.mxu0 0.0
      %2717 = vmatpush1.msra.mxu0 0.0
      %2718 = vmatprep.subr.mxu0 0.0
      %2719 = vmatpush1.msra.mxu0 0.0
      %2720 = vmatprep.subr.mxu0 0.0
      %2721 = vmatpush1.msra.mxu0 0.0
      %2722 = vmatprep.subr.mxu0 0.0
      %2723 = vmatpush1.msra.mxu0 0.0
      %2724 = vmatprep.subr.mxu0 0.0
      %2725 = vmatpush1.msra.mxu0 0.0
      %2726 = vmatprep.subr.mxu0 0.0
      %2727 = vmatpush1.msra.mxu0 0.0
      %2728 = vmatprep.subr.mxu0 %v2692
      %2729 = vmatpush1.msra.mxu0 %v2691
      %2730 = vmatprep.subr.mxu0 0.0
      %2731 = vmatpush2.msra.mxu0 0.0
      %2732 = vmatprep.subr.mxu0 0.0
      %2733 = vmatpush2.msra.mxu0 0.0
      %2734 = vmatprep.subr.mxu0 0.0
      %2735 = vmatpush2.msra.mxu0 0.0
      %2736 = vmatprep.subr.mxu0 0.0
      %2737 = vmatpush2.msra.mxu0 0.0
      %2738 = vmatprep.subr.mxu0 0.0
      %2739 = vmatpush2.msra.mxu0 0.0
      %2740 = vmatprep.subr.mxu0 0.0
      %2741 = vmatpush2.msra.mxu0 0.0
      %2742 = vmatprep.subr.mxu0 0.0
      %2743 = vmatpush2.msra.mxu0 0.0
      %2744 = vmatprep.subr.mxu0 0.0
      %2745 = vmatpush2.msra.mxu0 0.0
      %2746 = vmatprep.subr.mxu0 0.0
      %2747 = vmatpush2.msra.mxu0 0.0
      %2748 = vmatprep.subr.mxu0 0.0
      %2749 = vmatpush2.msra.mxu0 0.0
      %2750 = vmatprep.subr.mxu0 0.0
      %2751 = vmatpush2.msra.mxu0 0.0
      %2752 = vmatprep.subr.mxu0 0.0
      %2753 = vmatpush2.msra.mxu0 0.0
      %2754 = vmatprep.subr.mxu0 0.0
      %2755 = vmatpush2.msra.mxu0 0.0
      %2756 = vmatprep.subr.mxu0 0.0
      %2757 = vmatpush2.msra.mxu0 0.0
      %2758 = vmatprep.subr.mxu0 0.0
      %2759 = vmatpush2.msra.mxu0 0.0
      %2760 = vmatprep.subr.mxu0 0.0
      %2761 = vmatpush2.msra.mxu0 0.0
      %2762 = vmatprep.mubr.f32.mxu0 0.0
      %2763 = vmatmul.mubr.f32.gmra.mxu0 %v2696
      %v2764 = vpop.f32.mrf.mxu0
      %v2765 = vadd.f32 0.0, %v2764
      %v2766 = vpop.f32.mrf.mxu0
      %v2767 = vadd.f32 0.0, %v2766
      %2768 = vdwg.mxu0
      %2769 = vrot.lane.b32.xlu0 %v2155, 15
      %v2770 = vpop.permute.xlu0 %2769
      %2771 = vrot.lane.b32.xlu0 %v2156, 15
      %v2772 = vpop.permute.xlu0 %2771
      %2773 = vrot.lane.b32.xlu0 %v2157, 15
      %v2774 = vpop.permute.xlu0 %2773
      %v2775 = vsel %vm1025, %v2770, %v2772
      %v2776 = vsel %vm1025, %v2772, %v2774
      %v2780 = vsel %vm2174, %v2682, 0
      %2782 = vmatprep.subr.mxu0 0.0
      %2783 = vmatpush1.msra.mxu0 0.0
      %2784 = vmatprep.subr.mxu0 0.0
      %2785 = vmatpush1.msra.mxu0 0.0
      %2786 = vmatprep.subr.mxu0 0.0
      %2787 = vmatpush1.msra.mxu0 0.0
      %2788 = vmatprep.subr.mxu0 0.0
      %2789 = vmatpush1.msra.mxu0 0.0
      %2790 = vmatprep.subr.mxu0 0.0
      %2791 = vmatpush1.msra.mxu0 0.0
      %2792 = vmatprep.subr.mxu0 0.0
      %2793 = vmatpush1.msra.mxu0 0.0
      %2794 = vmatprep.subr.mxu0 0.0
      %2795 = vmatpush1.msra.mxu0 0.0
      %2796 = vmatprep.subr.mxu0 0.0
      %2797 = vmatpush1.msra.mxu0 0.0
      %2798 = vmatprep.subr.mxu0 0.0
      %2799 = vmatpush1.msra.mxu0 0.0
      %2800 = vmatprep.subr.mxu0 0.0
      %2801 = vmatpush1.msra.mxu0 0.0
      %2802 = vmatprep.subr.mxu0 0.0
      %2803 = vmatpush1.msra.mxu0 0.0
      %2804 = vmatprep.subr.mxu0 0.0
      %2805 = vmatpush1.msra.mxu0 0.0
      %2806 = vmatprep.subr.mxu0 0.0
      %2807 = vmatpush1.msra.mxu0 0.0
      %2808 = vmatprep.subr.mxu0 0.0
      %2809 = vmatpush1.msra.mxu0 0.0
      %2810 = vmatprep.subr.mxu0 0.0
      %2811 = vmatpush1.msra.mxu0 0.0
      %2812 = vmatprep.subr.mxu0 %v2776
      %2813 = vmatpush1.msra.mxu0 %v2775
      %2814 = vmatprep.subr.mxu0 0.0
      %2815 = vmatpush2.msra.mxu0 0.0
      %2816 = vmatprep.subr.mxu0 0.0
      %2817 = vmatpush2.msra.mxu0 0.0
      %2818 = vmatprep.subr.mxu0 0.0
      %2819 = vmatpush2.msra.mxu0 0.0
      %2820 = vmatprep.subr.mxu0 0.0
      %2821 = vmatpush2.msra.mxu0 0.0
      %2822 = vmatprep.subr.mxu0 0.0
      %2823 = vmatpush2.msra.mxu0 0.0
      %2824 = vmatprep.subr.mxu0 0.0
      %2825 = vmatpush2.msra.mxu0 0.0
      %2826 = vmatprep.subr.mxu0 0.0
      %2827 = vmatpush2.msra.mxu0 0.0
      %2828 = vmatprep.subr.mxu0 0.0
      %2829 = vmatpush2.msra.mxu0 0.0
      %2830 = vmatprep.subr.mxu0 0.0
      %2831 = vmatpush2.msra.mxu0 0.0
      %2832 = vmatprep.subr.mxu0 0.0
      %2833 = vmatpush2.msra.mxu0 0.0
      %2834 = vmatprep.subr.mxu0 0.0
      %2835 = vmatpush2.msra.mxu0 0.0
      %2836 = vmatprep.subr.mxu0 0.0
      %2837 = vmatpush2.msra.mxu0 0.0
      %2838 = vmatprep.subr.mxu0 0.0
      %2839 = vmatpush2.msra.mxu0 0.0
      %2840 = vmatprep.subr.mxu0 0.0
      %2841 = vmatpush2.msra.mxu0 0.0
      %2842 = vmatprep.subr.mxu0 0.0
      %2843 = vmatpush2.msra.mxu0 0.0
      %2844 = vmatprep.subr.mxu0 0.0
      %2845 = vmatpush2.msra.mxu0 0.0
      %2846 = vmatprep.mubr.f32.mxu0 0.0
      %2847 = vmatmul.mubr.f32.gmra.mxu0 %v2780
      %v2848 = vpop.f32.mrf.mxu0
      %v2849 = vadd.f32 %v2765, %v2848
      %v2850 = vpop.f32.mrf.mxu0
      %v2851 = vadd.f32 %v2767, %v2850
      %2852 = vdwg.mxu0
      %s2853 = scalar_lea.vmem %s4, 32
      %v2854 = vld [vmem:[%s2853] sm:$0xf]
      %2855 = vrot.lane.b32.xlu0 %v2333, 111
      %v2856 = vpop.permute.xlu0 %2855
      %2857 = vrot.lane.b32.xlu0 %v2334, 111
      %v2858 = vpop.permute.xlu0 %2857
      %2859 = vrot.lane.b32.xlu0 %v2335, 111
      %v2860 = vpop.permute.xlu0 %2859
      %v2861 = vsel %vm1124, %v2856, %v2858
      %v2862 = vsel %vm1124, %v2858, %v2860
      %v2866 = vsel %vm2174, %v2854, 0
      %2868 = vmatprep.subr.mxu0 0.0
      %2869 = vmatpush1.msra.mxu0 0.0
      %2870 = vmatprep.subr.mxu0 0.0
      %2871 = vmatpush1.msra.mxu0 0.0
      %2872 = vmatprep.subr.mxu0 0.0
      %2873 = vmatpush1.msra.mxu0 0.0
      %2874 = vmatprep.subr.mxu0 0.0
      %2875 = vmatpush1.msra.mxu0 0.0
      %2876 = vmatprep.subr.mxu0 0.0
      %2877 = vmatpush1.msra.mxu0 0.0
      %2878 = vmatprep.subr.mxu0 0.0
      %2879 = vmatpush1.msra.mxu0 0.0
      %2880 = vmatprep.subr.mxu0 0.0
      %2881 = vmatpush1.msra.mxu0 0.0
      %2882 = vmatprep.subr.mxu0 0.0
      %2883 = vmatpush1.msra.mxu0 0.0
      %2884 = vmatprep.subr.mxu0 0.0
      %2885 = vmatpush1.msra.mxu0 0.0
      %2886 = vmatprep.subr.mxu0 0.0
      %2887 = vmatpush1.msra.mxu0 0.0
      %2888 = vmatprep.subr.mxu0 0.0
      %2889 = vmatpush1.msra.mxu0 0.0
      %2890 = vmatprep.subr.mxu0 0.0
      %2891 = vmatpush1.msra.mxu0 0.0
      %2892 = vmatprep.subr.mxu0 0.0
      %2893 = vmatpush1.msra.mxu0 0.0
      %2894 = vmatprep.subr.mxu0 0.0
      %2895 = vmatpush1.msra.mxu0 0.0
      %2896 = vmatprep.subr.mxu0 0.0
      %2897 = vmatpush1.msra.mxu0 0.0
      %2898 = vmatprep.subr.mxu0 %v2862
      %2899 = vmatpush1.msra.mxu0 %v2861
      %2900 = vmatprep.subr.mxu0 0.0
      %2901 = vmatpush2.msra.mxu0 0.0
      %2902 = vmatprep.subr.mxu0 0.0
      %2903 = vmatpush2.msra.mxu0 0.0
      %2904 = vmatprep.subr.mxu0 0.0
      %2905 = vmatpush2.msra.mxu0 0.0
      %2906 = vmatprep.subr.mxu0 0.0
      %2907 = vmatpush2.msra.mxu0 0.0
      %2908 = vmatprep.subr.mxu0 0.0
      %2909 = vmatpush2.msra.mxu0 0.0
      %2910 = vmatprep.subr.mxu0 0.0
      %2911 = vmatpush2.msra.mxu0 0.0
      %2912 = vmatprep.subr.mxu0 0.0
      %2913 = vmatpush2.msra.mxu0 0.0
      %2914 = vmatprep.subr.mxu0 0.0
      %2915 = vmatpush2.msra.mxu0 0.0
      %2916 = vmatprep.subr.mxu0 0.0
      %2917 = vmatpush2.msra.mxu0 0.0
      %2918 = vmatprep.subr.mxu0 0.0
      %2919 = vmatpush2.msra.mxu0 0.0
      %2920 = vmatprep.subr.mxu0 0.0
      %2921 = vmatpush2.msra.mxu0 0.0
      %2922 = vmatprep.subr.mxu0 0.0
      %2923 = vmatpush2.msra.mxu0 0.0
      %2924 = vmatprep.subr.mxu0 0.0
      %2925 = vmatpush2.msra.mxu0 0.0
      %2926 = vmatprep.subr.mxu0 0.0
      %2927 = vmatpush2.msra.mxu0 0.0
      %2928 = vmatprep.subr.mxu0 0.0
      %2929 = vmatpush2.msra.mxu0 0.0
      %2930 = vmatprep.subr.mxu0 0.0
      %2931 = vmatpush2.msra.mxu0 0.0
      %2932 = vmatprep.mubr.f32.mxu0 0.0
      %2933 = vmatmul.mubr.f32.gmra.mxu0 %v2866
      %v2934 = vpop.f32.mrf.mxu0
      %v2935 = vadd.f32 0.0, %v2934
      %v2936 = vpop.f32.mrf.mxu0
      %v2937 = vadd.f32 0.0, %v2936
      %2938 = vdwg.mxu0
      %v2939 = vadd.f32 %v2849, %v2935
      %v2940 = vadd.f32 %v2851, %v2937
      %v2941 = vmul.f32 %v2939, %v1222
      %v2942 = vmul.f32 %v2940, %v1226
      %v2943 = vadd.f32 %v2679, %v2941
      %v2944 = vadd.f32 %v2680, %v2942
      %s2945 = scalar_lea.vmem %s6, 32
      %v2946 = vld [vmem:[%s2945] sm:$0xff]
      %2948 = vset.pattern.permute.xlu0 0
      %2949 = vperm.xlu0 %2948, %v2946
      %v2950 = vpop.permute.xlu0 %2949
      %v2952 = vadd.f32 %v2943, %v2950
      %v2953 = vadd.f32 %v2944, %v2950
      %v2954 = vmax.f32 %v2952, 0.0
      %v2955 = vmax.f32 %v2953, 0.0
      %2956 = vst [vmem:[#allocation2 + $0x8] sm:$0xf] %v2954
      %2957 = vst [vmem:[#allocation2 + $0x10] sm:$0xf] %v2955
      %v2958 = vld [vmem:[#allocation2] sm:$0xf]
      %v2959 = vld [vmem:[#allocation2 + $0x8] sm:$0xf]
      %v2960 = vld [vmem:[#allocation2 + $0x10] sm:$0xf]
      %v2961 = vld [vmem:[%s5] sm:$0xf]
      %s2962 = scalar_lea.vmem %s5, 12
      %v2963 = vld [vmem:[%s2962] sm:$0xf]
      %2967 = vrot.lane.b32.xlu0 %v2958, 1
      %v2968 = vpop.permute.xlu0 %2967
      %2969 = vrot.lane.b32.xlu0 %v2959, 1
      %v2970 = vpop.permute.xlu0 %2969
      %2971 = vrot.lane.b32.xlu0 %v2960, 1
      %v2972 = vpop.permute.xlu0 %2971
      %v2973 = vsel %vm309, %v2968, %v2970
      %v2974 = vsel %vm309, %v2970, %v2972
      %v2976 = vsel %vm312, %v2963, 0
      %v2978 = vsel %vm319, %v2973, 0
      %v2980 = vsel %vm319, %v2974, 0
      %2982 = vmatprep.subr.mxu0 0.0
      %2983 = vmatpush1.msra.mxu0 0.0
      %2984 = vmatprep.subr.mxu0 0.0
      %2985 = vmatpush1.msra.mxu0 0.0
      %2986 = vmatprep.subr.mxu0 0.0
      %2987 = vmatpush1.msra.mxu0 0.0
      %2988 = vmatprep.subr.mxu0 0.0
      %2989 = vmatpush1.msra.mxu0 0.0
      %2990 = vmatprep.subr.mxu0 0.0
      %2991 = vmatpush1.msra.mxu0 0.0
      %2992 = vmatprep.subr.mxu0 0.0
      %2993 = vmatpush1.msra.mxu0 0.0
      %2994 = vmatprep.subr.mxu0 0.0
      %2995 = vmatpush1.msra.mxu0 0.0
      %2996 = vmatprep.subr.mxu0 0.0
      %2997 = vmatpush1.msra.mxu0 0.0
      %2998 = vmatprep.subr.mxu0 0.0
      %2999 = vmatpush1.msra.mxu0 0.0
      %3000 = vmatprep.subr.mxu0 0.0
      %3001 = vmatpush1.msra.mxu0 0.0
      %3002 = vmatprep.subr.mxu0 0.0
      %3003 = vmatpush1.msra.mxu0 0.0
      %3004 = vmatprep.subr.mxu0 0.0
      %3005 = vmatpush1.msra.mxu0 0.0
      %3006 = vmatprep.subr.mxu0 0.0
      %3007 = vmatpush1.msra.mxu0 0.0
      %3008 = vmatprep.subr.mxu0 0.0
      %3009 = vmatpush1.msra.mxu0 0.0
      %3010 = vmatprep.subr.mxu0 0.0
      %3011 = vmatpush1.msra.mxu0 0.0
      %3012 = vmatprep.subr.mxu0 %v2980
      %3013 = vmatpush1.msra.mxu0 %v2978
      %3014 = vmatprep.subr.mxu0 0.0
      %3015 = vmatpush2.msra.mxu0 0.0
      %3016 = vmatprep.subr.mxu0 0.0
      %3017 = vmatpush2.msra.mxu0 0.0
      %3018 = vmatprep.subr.mxu0 0.0
      %3019 = vmatpush2.msra.mxu0 0.0
      %3020 = vmatprep.subr.mxu0 0.0
      %3021 = vmatpush2.msra.mxu0 0.0
      %3022 = vmatprep.subr.mxu0 0.0
      %3023 = vmatpush2.msra.mxu0 0.0
      %3024 = vmatprep.subr.mxu0 0.0
      %3025 = vmatpush2.msra.mxu0 0.0
      %3026 = vmatprep.subr.mxu0 0.0
      %3027 = vmatpush2.msra.mxu0 0.0
      %3028 = vmatprep.subr.mxu0 0.0
      %3029 = vmatpush2.msra.mxu0 0.0
      %3030 = vmatprep.subr.mxu0 0.0
      %3031 = vmatpush2.msra.mxu0 0.0
      %3032 = vmatprep.subr.mxu0 0.0
      %3033 = vmatpush2.msra.mxu0 0.0
      %3034 = vmatprep.subr.mxu0 0.0
      %3035 = vmatpush2.msra.mxu0 0.0
      %3036 = vmatprep.subr.mxu0 0.0
      %3037 = vmatpush2.msra.mxu0 0.0
      %3038 = vmatprep.subr.mxu0 0.0
      %3039 = vmatpush2.msra.mxu0 0.0
      %3040 = vmatprep.subr.mxu0 0.0
      %3041 = vmatpush2.msra.mxu0 0.0
      %3042 = vmatprep.subr.mxu0 0.0
      %3043 = vmatpush2.msra.mxu0 0.0
      %3044 = vmatprep.subr.mxu0 0.0
      %3045 = vmatpush2.msra.mxu0 0.0
      %3046 = vmatprep.mubr.f32.mxu0 0.0
      %3047 = vmatmul.mubr.f32.gmra.mxu0 %v2976
      %v3048 = vpop.f32.mrf.mxu0
      %v3049 = vadd.f32 0.0, %v3048
      %v3050 = vpop.f32.mrf.mxu0
      %v3051 = vadd.f32 0.0, %v3050
      %3052 = vdwg.mxu0
      %3053 = vrot.lane.b32.xlu0 %v2958, 17
      %v3054 = vpop.permute.xlu0 %3053
      %3055 = vrot.lane.b32.xlu0 %v2959, 17
      %v3056 = vpop.permute.xlu0 %3055
      %3057 = vrot.lane.b32.xlu0 %v2960, 17
      %v3058 = vpop.permute.xlu0 %3057
      %v3059 = vsel %vm407, %v3054, %v3056
      %v3060 = vsel %vm407, %v3056, %v3058
      %v3062 = vsel %vm312, %v2961, 0
      %v3064 = vsel %vm319, %v3059, 0
      %v3066 = vsel %vm319, %v3060, 0
      %3068 = vmatprep.subr.mxu0 0.0
      %3069 = vmatpush1.msra.mxu0 0.0
      %3070 = vmatprep.subr.mxu0 0.0
      %3071 = vmatpush1.msra.mxu0 0.0
      %3072 = vmatprep.subr.mxu0 0.0
      %3073 = vmatpush1.msra.mxu0 0.0
      %3074 = vmatprep.subr.mxu0 0.0
      %3075 = vmatpush1.msra.mxu0 0.0
      %3076 = vmatprep.subr.mxu0 0.0
      %3077 = vmatpush1.msra.mxu0 0.0
      %3078 = vmatprep.subr.mxu0 0.0
      %3079 = vmatpush1.msra.mxu0 0.0
      %3080 = vmatprep.subr.mxu0 0.0
      %3081 = vmatpush1.msra.mxu0 0.0
      %3082 = vmatprep.subr.mxu0 0.0
      %3083 = vmatpush1.msra.mxu0 0.0
      %3084 = vmatprep.subr.mxu0 0.0
      %3085 = vmatpush1.msra.mxu0 0.0
      %3086 = vmatprep.subr.mxu0 0.0
      %3087 = vmatpush1.msra.mxu0 0.0
      %3088 = vmatprep.subr.mxu0 0.0
      %3089 = vmatpush1.msra.mxu0 0.0
      %3090 = vmatprep.subr.mxu0 0.0
      %3091 = vmatpush1.msra.mxu0 0.0
      %3092 = vmatprep.subr.mxu0 0.0
      %3093 = vmatpush1.msra.mxu0 0.0
      %3094 = vmatprep.subr.mxu0 0.0
      %3095 = vmatpush1.msra.mxu0 0.0
      %3096 = vmatprep.subr.mxu0 0.0
      %3097 = vmatpush1.msra.mxu0 0.0
      %3098 = vmatprep.subr.mxu0 %v3066
      %3099 = vmatpush1.msra.mxu0 %v3064
      %3100 = vmatprep.subr.mxu0 0.0
      %3101 = vmatpush2.msra.mxu0 0.0
      %3102 = vmatprep.subr.mxu0 0.0
      %3103 = vmatpush2.msra.mxu0 0.0
      %3104 = vmatprep.subr.mxu0 0.0
      %3105 = vmatpush2.msra.mxu0 0.0
      %3106 = vmatprep.subr.mxu0 0.0
      %3107 = vmatpush2.msra.mxu0 0.0
      %3108 = vmatprep.subr.mxu0 0.0
      %3109 = vmatpush2.msra.mxu0 0.0
      %3110 = vmatprep.subr.mxu0 0.0
      %3111 = vmatpush2.msra.mxu0 0.0
      %3112 = vmatprep.subr.mxu0 0.0
      %3113 = vmatpush2.msra.mxu0 0.0
      %3114 = vmatprep.subr.mxu0 0.0
      %3115 = vmatpush2.msra.mxu0 0.0
      %3116 = vmatprep.subr.mxu0 0.0
      %3117 = vmatpush2.msra.mxu0 0.0
      %3118 = vmatprep.subr.mxu0 0.0
      %3119 = vmatpush2.msra.mxu0 0.0
      %3120 = vmatprep.subr.mxu0 0.0
      %3121 = vmatpush2.msra.mxu0 0.0
      %3122 = vmatprep.subr.mxu0 0.0
      %3123 = vmatpush2.msra.mxu0 0.0
      %3124 = vmatprep.subr.mxu0 0.0
      %3125 = vmatpush2.msra.mxu0 0.0
      %3126 = vmatprep.subr.mxu0 0.0
      %3127 = vmatpush2.msra.mxu0 0.0
      %3128 = vmatprep.subr.mxu0 0.0
      %3129 = vmatpush2.msra.mxu0 0.0
      %3130 = vmatprep.subr.mxu0 0.0
      %3131 = vmatpush2.msra.mxu0 0.0
      %3132 = vmatprep.mubr.f32.mxu0 0.0
      %3133 = vmatmul.mubr.f32.gmra.mxu0 %v3062
      %v3134 = vpop.f32.mrf.mxu0
      %v3135 = vadd.f32 %v3049, %v3134
      %v3136 = vpop.f32.mrf.mxu0
      %v3137 = vadd.f32 %v3051, %v3136
      %3138 = vdwg.mxu0
      %v3139 = vld [vmem:[#allocation2 + $0x8] sm:$0xf]
      %v3140 = vld [vmem:[#allocation2 + $0x10] sm:$0xf]
      %v3141 = vld [vmem:[#allocation2 + $0x18] sm:$0xf]
      %s3142 = scalar_lea.vmem %s5, 24
      %v3143 = vld [vmem:[%s3142] sm:$0xf]
      %3147 = vrot.lane.b32.xlu0 %v3139, 113
      %v3148 = vpop.permute.xlu0 %3147
      %3149 = vrot.lane.b32.xlu0 %v3140, 113
      %v3150 = vpop.permute.xlu0 %3149
      %3151 = vrot.lane.b32.xlu0 %v3141, 113
      %v3152 = vpop.permute.xlu0 %3151
      %v3153 = vsel %vm512, %v3148, %v3150
      %v3154 = vsel %vm512, %v3150, %v3152
      %v3156 = vsel %vm312, %v3143, 0
      %v3158 = vsel %vm319, %v3153, 0
      %v3160 = vsel %vm319, %v3154, 0
      %3162 = vmatprep.subr.mxu0 0.0
      %3163 = vmatpush1.msra.mxu0 0.0
      %3164 = vmatprep.subr.mxu0 0.0
      %3165 = vmatpush1.msra.mxu0 0.0
      %3166 = vmatprep.subr.mxu0 0.0
      %3167 = vmatpush1.msra.mxu0 0.0
      %3168 = vmatprep.subr.mxu0 0.0
      %3169 = vmatpush1.msra.mxu0 0.0
      %3170 = vmatprep.subr.mxu0 0.0
      %3171 = vmatpush1.msra.mxu0 0.0
      %3172 = vmatprep.subr.mxu0 0.0
      %3173 = vmatpush1.msra.mxu0 0.0
      %3174 = vmatprep.subr.mxu0 0.0
      %3175 = vmatpush1.msra.mxu0 0.0
      %3176 = vmatprep.subr.mxu0 0.0
      %3177 = vmatpush1.msra.mxu0 0.0
      %3178 = vmatprep.subr.mxu0 0.0
      %3179 = vmatpush1.msra.mxu0 0.0
      %3180 = vmatprep.subr.mxu0 0.0
      %3181 = vmatpush1.msra.mxu0 0.0
      %3182 = vmatprep.subr.mxu0 0.0
      %3183 = vmatpush1.msra.mxu0 0.0
      %3184 = vmatprep.subr.mxu0 0.0
      %3185 = vmatpush1.msra.mxu0 0.0
      %3186 = vmatprep.subr.mxu0 0.0
      %3187 = vmatpush1.msra.mxu0 0.0
      %3188 = vmatprep.subr.mxu0 0.0
      %3189 = vmatpush1.msra.mxu0 0.0
      %3190 = vmatprep.subr.mxu0 0.0
      %3191 = vmatpush1.msra.mxu0 0.0
      %3192 = vmatprep.subr.mxu0 %v3160
      %3193 = vmatpush1.msra.mxu0 %v3158
      %3194 = vmatprep.subr.mxu0 0.0
      %3195 = vmatpush2.msra.mxu0 0.0
      %3196 = vmatprep.subr.mxu0 0.0
      %3197 = vmatpush2.msra.mxu0 0.0
      %3198 = vmatprep.subr.mxu0 0.0
      %3199 = vmatpush2.msra.mxu0 0.0
      %3200 = vmatprep.subr.mxu0 0.0
      %3201 = vmatpush2.msra.mxu0 0.0
      %3202 = vmatprep.subr.mxu0 0.0
      %3203 = vmatpush2.msra.mxu0 0.0
      %3204 = vmatprep.subr.mxu0 0.0
      %3205 = vmatpush2.msra.mxu0 0.0
      %3206 = vmatprep.subr.mxu0 0.0
      %3207 = vmatpush2.msra.mxu0 0.0
      %3208 = vmatprep.subr.mxu0 0.0
      %3209 = vmatpush2.msra.mxu0 0.0
      %3210 = vmatprep.subr.mxu0 0.0
      %3211 = vmatpush2.msra.mxu0 0.0
      %3212 = vmatprep.subr.mxu0 0.0
      %3213 = vmatpush2.msra.mxu0 0.0
      %3214 = vmatprep.subr.mxu0 0.0
      %3215 = vmatpush2.msra.mxu0 0.0
      %3216 = vmatprep.subr.mxu0 0.0
      %3217 = vmatpush2.msra.mxu0 0.0
      %3218 = vmatprep.subr.mxu0 0.0
      %3219 = vmatpush2.msra.mxu0 0.0
      %3220 = vmatprep.subr.mxu0 0.0
      %3221 = vmatpush2.msra.mxu0 0.0
      %3222 = vmatprep.subr.mxu0 0.0
      %3223 = vmatpush2.msra.mxu0 0.0
      %3224 = vmatprep.subr.mxu0 0.0
      %3225 = vmatpush2.msra.mxu0 0.0
      %3226 = vmatprep.mubr.f32.mxu0 0.0
      %3227 = vmatmul.mubr.f32.gmra.mxu0 %v3156
      %v3228 = vpop.f32.mrf.mxu0
      %v3229 = vadd.f32 0.0, %v3228
      %v3230 = vpop.f32.mrf.mxu0
      %v3231 = vadd.f32 0.0, %v3230
      %3232 = vdwg.mxu0
      %v3233 = vadd.f32 %v3135, %v3229
      %v3234 = vadd.f32 %v3137, %v3231
      %v3235 = vmul.f32 %v3233, %v610
      %v3236 = vmul.f32 %v3234, %v614
      %s3237 = scalar_lea.vmem %s5, 4
      %v3238 = vld [vmem:[%s3237] sm:$0xf]
      %s3239 = scalar_lea.vmem %s5, 16
      %v3240 = vld [vmem:[%s3239] sm:$0xf]
      %v3242 = vsel %vm312, %v3240, 0
      %v3244 = vsel %vm319, %v2959, 0
      %v3246 = vsel %vm319, %v2960, 0
      %3248 = vmatprep.subr.mxu0 0.0
      %3249 = vmatpush1.msra.mxu0 0.0
      %3250 = vmatprep.subr.mxu0 0.0
      %3251 = vmatpush1.msra.mxu0 0.0
      %3252 = vmatprep.subr.mxu0 0.0
      %3253 = vmatpush1.msra.mxu0 0.0
      %3254 = vmatprep.subr.mxu0 0.0
      %3255 = vmatpush1.msra.mxu0 0.0
      %3256 = vmatprep.subr.mxu0 0.0
      %3257 = vmatpush1.msra.mxu0 0.0
      %3258 = vmatprep.subr.mxu0 0.0
      %3259 = vmatpush1.msra.mxu0 0.0
      %3260 = vmatprep.subr.mxu0 0.0
      %3261 = vmatpush1.msra.mxu0 0.0
      %3262 = vmatprep.subr.mxu0 0.0
      %3263 = vmatpush1.msra.mxu0 0.0
      %3264 = vmatprep.subr.mxu0 0.0
      %3265 = vmatpush1.msra.mxu0 0.0
      %3266 = vmatprep.subr.mxu0 0.0
      %3267 = vmatpush1.msra.mxu0 0.0
      %3268 = vmatprep.subr.mxu0 0.0
      %3269 = vmatpush1.msra.mxu0 0.0
      %3270 = vmatprep.subr.mxu0 0.0
      %3271 = vmatpush1.msra.mxu0 0.0
      %3272 = vmatprep.subr.mxu0 0.0
      %3273 = vmatpush1.msra.mxu0 0.0
      %3274 = vmatprep.subr.mxu0 0.0
      %3275 = vmatpush1.msra.mxu0 0.0
      %3276 = vmatprep.subr.mxu0 0.0
      %3277 = vmatpush1.msra.mxu0 0.0
      %3278 = vmatprep.subr.mxu0 %v3246
      %3279 = vmatpush1.msra.mxu0 %v3244
      %3280 = vmatprep.subr.mxu0 0.0
      %3281 = vmatpush2.msra.mxu0 0.0
      %3282 = vmatprep.subr.mxu0 0.0
      %3283 = vmatpush2.msra.mxu0 0.0
      %3284 = vmatprep.subr.mxu0 0.0
      %3285 = vmatpush2.msra.mxu0 0.0
      %3286 = vmatprep.subr.mxu0 0.0
      %3287 = vmatpush2.msra.mxu0 0.0
      %3288 = vmatprep.subr.mxu0 0.0
      %3289 = vmatpush2.msra.mxu0 0.0
      %3290 = vmatprep.subr.mxu0 0.0
      %3291 = vmatpush2.msra.mxu0 0.0
      %3292 = vmatprep.subr.mxu0 0.0
      %3293 = vmatpush2.msra.mxu0 0.0
      %3294 = vmatprep.subr.mxu0 0.0
      %3295 = vmatpush2.msra.mxu0 0.0
      %3296 = vmatprep.subr.mxu0 0.0
      %3297 = vmatpush2.msra.mxu0 0.0
      %3298 = vmatprep.subr.mxu0 0.0
      %3299 = vmatpush2.msra.mxu0 0.0
      %3300 = vmatprep.subr.mxu0 0.0
      %3301 = vmatpush2.msra.mxu0 0.0
      %3302 = vmatprep.subr.mxu0 0.0
      %3303 = vmatpush2.msra.mxu0 0.0
      %3304 = vmatprep.subr.mxu0 0.0
      %3305 = vmatpush2.msra.mxu0 0.0
      %3306 = vmatprep.subr.mxu0 0.0
      %3307 = vmatpush2.msra.mxu0 0.0
      %3308 = vmatprep.subr.mxu0 0.0
      %3309 = vmatpush2.msra.mxu0 0.0
      %3310 = vmatprep.subr.mxu0 0.0
      %3311 = vmatpush2.msra.mxu0 0.0
      %3312 = vmatprep.mubr.f32.mxu0 0.0
      %3313 = vmatmul.mubr.f32.gmra.mxu0 %v3242
      %v3314 = vpop.f32.mrf.mxu0
      %v3315 = vadd.f32 0.0, %v3314
      %v3316 = vpop.f32.mrf.mxu0
      %v3317 = vadd.f32 0.0, %v3316
      %3318 = vdwg.mxu0
      %3319 = vrot.lane.b32.xlu0 %v2958, 16
      %v3320 = vpop.permute.xlu0 %3319
      %3321 = vrot.lane.b32.xlu0 %v2959, 16
      %v3322 = vpop.permute.xlu0 %3321
      %3323 = vrot.lane.b32.xlu0 %v2960, 16
      %v3324 = vpop.permute.xlu0 %3323
      %v3325 = vsel %vm720, %v3320, %v3322
      %v3326 = vsel %vm720, %v3322, %v3324
      %v3328 = vsel %vm312, %v3238, 0
      %v3330 = vsel %vm319, %v3325, 0
      %v3332 = vsel %vm319, %v3326, 0
      %3334 = vmatprep.subr.mxu0 0.0
      %3335 = vmatpush1.msra.mxu0 0.0
      %3336 = vmatprep.subr.mxu0 0.0
      %3337 = vmatpush1.msra.mxu0 0.0
      %3338 = vmatprep.subr.mxu0 0.0
      %3339 = vmatpush1.msra.mxu0 0.0
      %3340 = vmatprep.subr.mxu0 0.0
      %3341 = vmatpush1.msra.mxu0 0.0
      %3342 = vmatprep.subr.mxu0 0.0
      %3343 = vmatpush1.msra.mxu0 0.0
      %3344 = vmatprep.subr.mxu0 0.0
      %3345 = vmatpush1.msra.mxu0 0.0
      %3346 = vmatprep.subr.mxu0 0.0
      %3347 = vmatpush1.msra.mxu0 0.0
      %3348 = vmatprep.subr.mxu0 0.0
      %3349 = vmatpush1.msra.mxu0 0.0
      %3350 = vmatprep.subr.mxu0 0.0
      %3351 = vmatpush1.msra.mxu0 0.0
      %3352 = vmatprep.subr.mxu0 0.0
      %3353 = vmatpush1.msra.mxu0 0.0
      %3354 = vmatprep.subr.mxu0 0.0
      %3355 = vmatpush1.msra.mxu0 0.0
      %3356 = vmatprep.subr.mxu0 0.0
      %3357 = vmatpush1.msra.mxu0 0.0
      %3358 = vmatprep.subr.mxu0 0.0
      %3359 = vmatpush1.msra.mxu0 0.0
      %3360 = vmatprep.subr.mxu0 0.0
      %3361 = vmatpush1.msra.mxu0 0.0
      %3362 = vmatprep.subr.mxu0 0.0
      %3363 = vmatpush1.msra.mxu0 0.0
      %3364 = vmatprep.subr.mxu0 %v3332
      %3365 = vmatpush1.msra.mxu0 %v3330
      %3366 = vmatprep.subr.mxu0 0.0
      %3367 = vmatpush2.msra.mxu0 0.0
      %3368 = vmatprep.subr.mxu0 0.0
      %3369 = vmatpush2.msra.mxu0 0.0
      %3370 = vmatprep.subr.mxu0 0.0
      %3371 = vmatpush2.msra.mxu0 0.0
      %3372 = vmatprep.subr.mxu0 0.0
      %3373 = vmatpush2.msra.mxu0 0.0
      %3374 = vmatprep.subr.mxu0 0.0
      %3375 = vmatpush2.msra.mxu0 0.0
      %3376 = vmatprep.subr.mxu0 0.0
      %3377 = vmatpush2.msra.mxu0 0.0
      %3378 = vmatprep.subr.mxu0 0.0
      %3379 = vmatpush2.msra.mxu0 0.0
      %3380 = vmatprep.subr.mxu0 0.0
      %3381 = vmatpush2.msra.mxu0 0.0
      %3382 = vmatprep.subr.mxu0 0.0
      %3383 = vmatpush2.msra.mxu0 0.0
      %3384 = vmatprep.subr.mxu0 0.0
      %3385 = vmatpush2.msra.mxu0 0.0
      %3386 = vmatprep.subr.mxu0 0.0
      %3387 = vmatpush2.msra.mxu0 0.0
      %3388 = vmatprep.subr.mxu0 0.0
      %3389 = vmatpush2.msra.mxu0 0.0
      %3390 = vmatprep.subr.mxu0 0.0
      %3391 = vmatpush2.msra.mxu0 0.0
      %3392 = vmatprep.subr.mxu0 0.0
      %3393 = vmatpush2.msra.mxu0 0.0
      %3394 = vmatprep.subr.mxu0 0.0
      %3395 = vmatpush2.msra.mxu0 0.0
      %3396 = vmatprep.subr.mxu0 0.0
      %3397 = vmatpush2.msra.mxu0 0.0
      %3398 = vmatprep.mubr.f32.mxu0 0.0
      %3399 = vmatmul.mubr.f32.gmra.mxu0 %v3328
      %v3400 = vpop.f32.mrf.mxu0
      %v3401 = vadd.f32 %v3315, %v3400
      %v3402 = vpop.f32.mrf.mxu0
      %v3403 = vadd.f32 %v3317, %v3402
      %3404 = vdwg.mxu0
      %s3405 = scalar_lea.vmem %s5, 28
      %v3406 = vld [vmem:[%s3405] sm:$0xf]
      %3407 = vrot.lane.b32.xlu0 %v3139, 112
      %v3408 = vpop.permute.xlu0 %3407
      %3409 = vrot.lane.b32.xlu0 %v3140, 112
      %v3410 = vpop.permute.xlu0 %3409
      %3411 = vrot.lane.b32.xlu0 %v3141, 112
      %v3412 = vpop.permute.xlu0 %3411
      %v3413 = vsel %vm819, %v3408, %v3410
      %v3414 = vsel %vm819, %v3410, %v3412
      %v3416 = vsel %vm312, %v3406, 0
      %v3418 = vsel %vm319, %v3413, 0
      %v3420 = vsel %vm319, %v3414, 0
      %3422 = vmatprep.subr.mxu0 0.0
      %3423 = vmatpush1.msra.mxu0 0.0
      %3424 = vmatprep.subr.mxu0 0.0
      %3425 = vmatpush1.msra.mxu0 0.0
      %3426 = vmatprep.subr.mxu0 0.0
      %3427 = vmatpush1.msra.mxu0 0.0
      %3428 = vmatprep.subr.mxu0 0.0
      %3429 = vmatpush1.msra.mxu0 0.0
      %3430 = vmatprep.subr.mxu0 0.0
      %3431 = vmatpush1.msra.mxu0 0.0
      %3432 = vmatprep.subr.mxu0 0.0
      %3433 = vmatpush1.msra.mxu0 0.0
      %3434 = vmatprep.subr.mxu0 0.0
      %3435 = vmatpush1.msra.mxu0 0.0
      %3436 = vmatprep.subr.mxu0 0.0
      %3437 = vmatpush1.msra.mxu0 0.0
      %3438 = vmatprep.subr.mxu0 0.0
      %3439 = vmatpush1.msra.mxu0 0.0
      %3440 = vmatprep.subr.mxu0 0.0
      %3441 = vmatpush1.msra.mxu0 0.0
      %3442 = vmatprep.subr.mxu0 0.0
      %3443 = vmatpush1.msra.mxu0 0.0
      %3444 = vmatprep.subr.mxu0 0.0
      %3445 = vmatpush1.msra.mxu0 0.0
      %3446 = vmatprep.subr.mxu0 0.0
      %3447 = vmatpush1.msra.mxu0 0.0
      %3448 = vmatprep.subr.mxu0 0.0
      %3449 = vmatpush1.msra.mxu0 0.0
      %3450 = vmatprep.subr.mxu0 0.0
      %3451 = vmatpush1.msra.mxu0 0.0
      %3452 = vmatprep.subr.mxu0 %v3420
      %3453 = vmatpush1.msra.mxu0 %v3418
      %3454 = vmatprep.subr.mxu0 0.0
      %3455 = vmatpush2.msra.mxu0 0.0
      %3456 = vmatprep.subr.mxu0 0.0
      %3457 = vmatpush2.msra.mxu0 0.0
      %3458 = vmatprep.subr.mxu0 0.0
      %3459 = vmatpush2.msra.mxu0 0.0
      %3460 = vmatprep.subr.mxu0 0.0
      %3461 = vmatpush2.msra.mxu0 0.0
      %3462 = vmatprep.subr.mxu0 0.0
      %3463 = vmatpush2.msra.mxu0 0.0
      %3464 = vmatprep.subr.mxu0 0.0
      %3465 = vmatpush2.msra.mxu0 0.0
      %3466 = vmatprep.subr.mxu0 0.0
      %3467 = vmatpush2.msra.mxu0 0.0
      %3468 = vmatprep.subr.mxu0 0.0
      %3469 = vmatpush2.msra.mxu0 0.0
      %3470 = vmatprep.subr.mxu0 0.0
      %3471 = vmatpush2.msra.mxu0 0.0
      %3472 = vmatprep.subr.mxu0 0.0
      %3473 = vmatpush2.msra.mxu0 0.0
      %3474 = vmatprep.subr.mxu0 0.0
      %3475 = vmatpush2.msra.mxu0 0.0
      %3476 = vmatprep.subr.mxu0 0.0
      %3477 = vmatpush2.msra.mxu0 0.0
      %3478 = vmatprep.subr.mxu0 0.0
      %3479 = vmatpush2.msra.mxu0 0.0
      %3480 = vmatprep.subr.mxu0 0.0
      %3481 = vmatpush2.msra.mxu0 0.0
      %3482 = vmatprep.subr.mxu0 0.0
      %3483 = vmatpush2.msra.mxu0 0.0
      %3484 = vmatprep.subr.mxu0 0.0
      %3485 = vmatpush2.msra.mxu0 0.0
      %3486 = vmatprep.mubr.f32.mxu0 0.0
      %3487 = vmatmul.mubr.f32.gmra.mxu0 %v3416
      %v3488 = vpop.f32.mrf.mxu0
      %v3489 = vadd.f32 0.0, %v3488
      %v3490 = vpop.f32.mrf.mxu0
      %v3491 = vadd.f32 0.0, %v3490
      %3492 = vdwg.mxu0
      %v3493 = vadd.f32 %v3401, %v3489
      %v3494 = vadd.f32 %v3403, %v3491
      %v3495 = vadd.f32 %v3235, %v3493
      %v3496 = vadd.f32 %v3236, %v3494
      %s3497 = scalar_lea.vmem %s5, 8
      %v3498 = vld [vmem:[%s3497] sm:$0xf]
      %s3499 = scalar_lea.vmem %s5, 20
      %v3500 = vld [vmem:[%s3499] sm:$0xf]
      %3501 = vrot.lane.b32.xlu0 %v3139, 127
      %v3502 = vpop.permute.xlu0 %3501
      %3503 = vrot.lane.b32.xlu0 %v3140, 127
      %v3504 = vpop.permute.xlu0 %3503
      %3505 = vrot.lane.b32.xlu0 %v3141, 127
      %v3506 = vpop.permute.xlu0 %3505
      %v3507 = vsel %vm929, %v3502, %v3504
      %v3508 = vsel %vm929, %v3504, %v3506
      %v3510 = vsel %vm312, %v3500, 0
      %v3512 = vsel %vm319, %v3507, 0
      %v3514 = vsel %vm319, %v3508, 0
      %3516 = vmatprep.subr.mxu0 0.0
      %3517 = vmatpush1.msra.mxu0 0.0
      %3518 = vmatprep.subr.mxu0 0.0
      %3519 = vmatpush1.msra.mxu0 0.0
      %3520 = vmatprep.subr.mxu0 0.0
      %3521 = vmatpush1.msra.mxu0 0.0
      %3522 = vmatprep.subr.mxu0 0.0
      %3523 = vmatpush1.msra.mxu0 0.0
      %3524 = vmatprep.subr.mxu0 0.0
      %3525 = vmatpush1.msra.mxu0 0.0
      %3526 = vmatprep.subr.mxu0 0.0
      %3527 = vmatpush1.msra.mxu0 0.0
      %3528 = vmatprep.subr.mxu0 0.0
      %3529 = vmatpush1.msra.mxu0 0.0
      %3530 = vmatprep.subr.mxu0 0.0
      %3531 = vmatpush1.msra.mxu0 0.0
      %3532 = vmatprep.subr.mxu0 0.0
      %3533 = vmatpush1.msra.mxu0 0.0
      %3534 = vmatprep.subr.mxu0 0.0
      %3535 = vmatpush1.msra.mxu0 0.0
      %3536 = vmatprep.subr.mxu0 0.0
      %3537 = vmatpush1.msra.mxu0 0.0
      %3538 = vmatprep.subr.mxu0 0.0
      %3539 = vmatpush1.msra.mxu0 0.0
      %3540 = vmatprep.subr.mxu0 0.0
      %3541 = vmatpush1.msra.mxu0 0.0
      %3542 = vmatprep.subr.mxu0 0.0
      %3543 = vmatpush1.msra.mxu0 0.0
      %3544 = vmatprep.subr.mxu0 0.0
      %3545 = vmatpush1.msra.mxu0 0.0
      %3546 = vmatprep.subr.mxu0 %v3514
      %3547 = vmatpush1.msra.mxu0 %v3512
      %3548 = vmatprep.subr.mxu0 0.0
      %3549 = vmatpush2.msra.mxu0 0.0
      %3550 = vmatprep.subr.mxu0 0.0
      %3551 = vmatpush2.msra.mxu0 0.0
      %3552 = vmatprep.subr.mxu0 0.0
      %3553 = vmatpush2.msra.mxu0 0.0
      %3554 = vmatprep.subr.mxu0 0.0
      %3555 = vmatpush2.msra.mxu0 0.0
      %3556 = vmatprep.subr.mxu0 0.0
      %3557 = vmatpush2.msra.mxu0 0.0
      %3558 = vmatprep.subr.mxu0 0.0
      %3559 = vmatpush2.msra.mxu0 0.0
      %3560 = vmatprep.subr.mxu0 0.0
      %3561 = vmatpush2.msra.mxu0 0.0
      %3562 = vmatprep.subr.mxu0 0.0
      %3563 = vmatpush2.msra.mxu0 0.0
      %3564 = vmatprep.subr.mxu0 0.0
      %3565 = vmatpush2.msra.mxu0 0.0
      %3566 = vmatprep.subr.mxu0 0.0
      %3567 = vmatpush2.msra.mxu0 0.0
      %3568 = vmatprep.subr.mxu0 0.0
      %3569 = vmatpush2.msra.mxu0 0.0
      %3570 = vmatprep.subr.mxu0 0.0
      %3571 = vmatpush2.msra.mxu0 0.0
      %3572 = vmatprep.subr.mxu0 0.0
      %3573 = vmatpush2.msra.mxu0 0.0
      %3574 = vmatprep.subr.mxu0 0.0
      %3575 = vmatpush2.msra.mxu0 0.0
      %3576 = vmatprep.subr.mxu0 0.0
      %3577 = vmatpush2.msra.mxu0 0.0
      %3578 = vmatprep.subr.mxu0 0.0
      %3579 = vmatpush2.msra.mxu0 0.0
      %3580 = vmatprep.mubr.f32.mxu0 0.0
      %3581 = vmatmul.mubr.f32.gmra.mxu0 %v3510
      %v3582 = vpop.f32.mrf.mxu0
      %v3583 = vadd.f32 0.0, %v3582
      %v3584 = vpop.f32.mrf.mxu0
      %v3585 = vadd.f32 0.0, %v3584
      %3586 = vdwg.mxu0
      %3587 = vrot.lane.b32.xlu0 %v2958, 15
      %v3588 = vpop.permute.xlu0 %3587
      %3589 = vrot.lane.b32.xlu0 %v2959, 15
      %v3590 = vpop.permute.xlu0 %3589
      %3591 = vrot.lane.b32.xlu0 %v2960, 15
      %v3592 = vpop.permute.xlu0 %3591
      %v3593 = vsel %vm1025, %v3588, %v3590
      %v3594 = vsel %vm1025, %v3590, %v3592
      %v3596 = vsel %vm312, %v3498, 0
      %v3598 = vsel %vm319, %v3593, 0
      %v3600 = vsel %vm319, %v3594, 0
      %3602 = vmatprep.subr.mxu0 0.0
      %3603 = vmatpush1.msra.mxu0 0.0
      %3604 = vmatprep.subr.mxu0 0.0
      %3605 = vmatpush1.msra.mxu0 0.0
      %3606 = vmatprep.subr.mxu0 0.0
      %3607 = vmatpush1.msra.mxu0 0.0
      %3608 = vmatprep.subr.mxu0 0.0
      %3609 = vmatpush1.msra.mxu0 0.0
      %3610 = vmatprep.subr.mxu0 0.0
      %3611 = vmatpush1.msra.mxu0 0.0
      %3612 = vmatprep.subr.mxu0 0.0
      %3613 = vmatpush1.msra.mxu0 0.0
      %3614 = vmatprep.subr.mxu0 0.0
      %3615 = vmatpush1.msra.mxu0 0.0
      %3616 = vmatprep.subr.mxu0 0.0
      %3617 = vmatpush1.msra.mxu0 0.0
      %3618 = vmatprep.subr.mxu0 0.0
      %3619 = vmatpush1.msra.mxu0 0.0
      %3620 = vmatprep.subr.mxu0 0.0
      %3621 = vmatpush1.msra.mxu0 0.0
      %3622 = vmatprep.subr.mxu0 0.0
      %3623 = vmatpush1.msra.mxu0 0.0
      %3624 = vmatprep.subr.mxu0 0.0
      %3625 = vmatpush1.msra.mxu0 0.0
      %3626 = vmatprep.subr.mxu0 0.0
      %3627 = vmatpush1.msra.mxu0 0.0
      %3628 = vmatprep.subr.mxu0 0.0
      %3629 = vmatpush1.msra.mxu0 0.0
      %3630 = vmatprep.subr.mxu0 0.0
      %3631 = vmatpush1.msra.mxu0 0.0
      %3632 = vmatprep.subr.mxu0 %v3600
      %3633 = vmatpush1.msra.mxu0 %v3598
      %3634 = vmatprep.subr.mxu0 0.0
      %3635 = vmatpush2.msra.mxu0 0.0
      %3636 = vmatprep.subr.mxu0 0.0
      %3637 = vmatpush2.msra.mxu0 0.0
      %3638 = vmatprep.subr.mxu0 0.0
      %3639 = vmatpush2.msra.mxu0 0.0
      %3640 = vmatprep.subr.mxu0 0.0
      %3641 = vmatpush2.msra.mxu0 0.0
      %3642 = vmatprep.subr.mxu0 0.0
      %3643 = vmatpush2.msra.mxu0 0.0
      %3644 = vmatprep.subr.mxu0 0.0
      %3645 = vmatpush2.msra.mxu0 0.0
      %3646 = vmatprep.subr.mxu0 0.0
      %3647 = vmatpush2.msra.mxu0 0.0
      %3648 = vmatprep.subr.mxu0 0.0
      %3649 = vmatpush2.msra.mxu0 0.0
      %3650 = vmatprep.subr.mxu0 0.0
      %3651 = vmatpush2.msra.mxu0 0.0
      %3652 = vmatprep.subr.mxu0 0.0
      %3653 = vmatpush2.msra.mxu0 0.0
      %3654 = vmatprep.subr.mxu0 0.0
      %3655 = vmatpush2.msra.mxu0 0.0
      %3656 = vmatprep.subr.mxu0 0.0
      %3657 = vmatpush2.msra.mxu0 0.0
      %3658 = vmatprep.subr.mxu0 0.0
      %3659 = vmatpush2.msra.mxu0 0.0
      %3660 = vmatprep.subr.mxu0 0.0
      %3661 = vmatpush2.msra.mxu0 0.0
      %3662 = vmatprep.subr.mxu0 0.0
      %3663 = vmatpush2.msra.mxu0 0.0
      %3664 = vmatprep.subr.mxu0 0.0
      %3665 = vmatpush2.msra.mxu0 0.0
      %3666 = vmatprep.mubr.f32.mxu0 0.0
      %3667 = vmatmul.mubr.f32.gmra.mxu0 %v3596
      %v3668 = vpop.f32.mrf.mxu0
      %v3669 = vadd.f32 %v3583, %v3668
      %v3670 = vpop.f32.mrf.mxu0
      %v3671 = vadd.f32 %v3585, %v3670
      %3672 = vdwg.mxu0
      %s3673 = scalar_lea.vmem %s5, 32
      %v3674 = vld [vmem:[%s3673] sm:$0xf]
      %3675 = vrot.lane.b32.xlu0 %v3139, 111
      %v3676 = vpop.permute.xlu0 %3675
      %3677 = vrot.lane.b32.xlu0 %v3140, 111
      %v3678 = vpop.permute.xlu0 %3677
      %3679 = vrot.lane.b32.xlu0 %v3141, 111
      %v3680 = vpop.permute.xlu0 %3679
      %v3681 = vsel %vm1124, %v3676, %v3678
      %v3682 = vsel %vm1124, %v3678, %v3680
      %v3684 = vsel %vm312, %v3674, 0
      %v3686 = vsel %vm319, %v3681, 0
      %v3688 = vsel %vm319, %v3682, 0
      %3690 = vmatprep.subr.mxu0 0.0
      %3691 = vmatpush1.msra.mxu0 0.0
      %3692 = vmatprep.subr.mxu0 0.0
      %3693 = vmatpush1.msra.mxu0 0.0
      %3694 = vmatprep.subr.mxu0 0.0
      %3695 = vmatpush1.msra.mxu0 0.0
      %3696 = vmatprep.subr.mxu0 0.0
      %3697 = vmatpush1.msra.mxu0 0.0
      %3698 = vmatprep.subr.mxu0 0.0
      %3699 = vmatpush1.msra.mxu0 0.0
      %3700 = vmatprep.subr.mxu0 0.0
      %3701 = vmatpush1.msra.mxu0 0.0
      %3702 = vmatprep.subr.mxu0 0.0
      %3703 = vmatpush1.msra.mxu0 0.0
      %3704 = vmatprep.subr.mxu0 0.0
      %3705 = vmatpush1.msra.mxu0 0.0
      %3706 = vmatprep.subr.mxu0 0.0
      %3707 = vmatpush1.msra.mxu0 0.0
      %3708 = vmatprep.subr.mxu0 0.0
      %3709 = vmatpush1.msra.mxu0 0.0
      %3710 = vmatprep.subr.mxu0 0.0
      %3711 = vmatpush1.msra.mxu0 0.0
      %3712 = vmatprep.subr.mxu0 0.0
      %3713 = vmatpush1.msra.mxu0 0.0
      %3714 = vmatprep.subr.mxu0 0.0
      %3715 = vmatpush1.msra.mxu0 0.0
      %3716 = vmatprep.subr.mxu0 0.0
      %3717 = vmatpush1.msra.mxu0 0.0
      %3718 = vmatprep.subr.mxu0 0.0
      %3719 = vmatpush1.msra.mxu0 0.0
      %3720 = vmatprep.subr.mxu0 %v3688
      %3721 = vmatpush1.msra.mxu0 %v3686
      %3722 = vmatprep.subr.mxu0 0.0
      %3723 = vmatpush2.msra.mxu0 0.0
      %3724 = vmatprep.subr.mxu0 0.0
      %3725 = vmatpush2.msra.mxu0 0.0
      %3726 = vmatprep.subr.mxu0 0.0
      %3727 = vmatpush2.msra.mxu0 0.0
      %3728 = vmatprep.subr.mxu0 0.0
      %3729 = vmatpush2.msra.mxu0 0.0
      %3730 = vmatprep.subr.mxu0 0.0
      %3731 = vmatpush2.msra.mxu0 0.0
      %3732 = vmatprep.subr.mxu0 0.0
      %3733 = vmatpush2.msra.mxu0 0.0
      %3734 = vmatprep.subr.mxu0 0.0
      %3735 = vmatpush2.msra.mxu0 0.0
      %3736 = vmatprep.subr.mxu0 0.0
      %3737 = vmatpush2.msra.mxu0 0.0
      %3738 = vmatprep.subr.mxu0 0.0
      %3739 = vmatpush2.msra.mxu0 0.0
      %3740 = vmatprep.subr.mxu0 0.0
      %3741 = vmatpush2.msra.mxu0 0.0
      %3742 = vmatprep.subr.mxu0 0.0
      %3743 = vmatpush2.msra.mxu0 0.0
      %3744 = vmatprep.subr.mxu0 0.0
      %3745 = vmatpush2.msra.mxu0 0.0
      %3746 = vmatprep.subr.mxu0 0.0
      %3747 = vmatpush2.msra.mxu0 0.0
      %3748 = vmatprep.subr.mxu0 0.0
      %3749 = vmatpush2.msra.mxu0 0.0
      %3750 = vmatprep.subr.mxu0 0.0
      %3751 = vmatpush2.msra.mxu0 0.0
      %3752 = vmatprep.subr.mxu0 0.0
      %3753 = vmatpush2.msra.mxu0 0.0
      %3754 = vmatprep.mubr.f32.mxu0 0.0
      %3755 = vmatmul.mubr.f32.gmra.mxu0 %v3684
      %v3756 = vpop.f32.mrf.mxu0
      %v3757 = vadd.f32 0.0, %v3756
      %v3758 = vpop.f32.mrf.mxu0
      %v3759 = vadd.f32 0.0, %v3758
      %3760 = vdwg.mxu0
      %v3761 = vadd.f32 %v3669, %v3757
      %v3762 = vadd.f32 %v3671, %v3759
      %v3763 = vmul.f32 %v3761, %v1222
      %v3764 = vmul.f32 %v3762, %v1226
      %v3765 = vadd.f32 %v3495, %v3763
      %v3766 = vadd.f32 %v3496, %v3764
      %s3767 = scalar_lea.vmem %s6, 48
      %v3768 = vld [vmem:[%s3767] sm:$0xff]
      %3770 = vset.pattern.permute.xlu0 0
      %3771 = vperm.xlu0 %3770, %v3768
      %v3772 = vpop.permute.xlu0 %3771
      %v3774 = vadd.f32 %v3765, %v3772
      %v3775 = vadd.f32 %v3766, %v3772
      %v3776 = vmax.f32 %v3774, 0.0
      %v3777 = vmax.f32 %v3775, 0.0
      %v3780 = vcombine.low %v3776, %v3777
      %3782 = vst [vmem:[%s278] sm:$0xff] %v3780
      %p3783 = scmp.lt.s32.totalorder %s18, 1
      %s3784 = scalar_select %p3783, %s18, 1
      %s3785 = smul.addr %s3784, 2
      %s3786 = smul.addr %s3785, 4
      %s3787 = scalar_lea.vmem %s7, %s3786
      // Predicated region
      $region49: #{up_final_forward.1} parent=47 // pred_check
        %p3788 = pneg %p188
      $region50: #{up_final_forward.1} parent=47 // pred_check_branch
        %3790 = sbr.rel (%p3788) target = $region52
      $region51: #{up_final_forward.1} parent=47 // pred_region
        _
      $region52: #{up_final_forward.1} parent=47 // pred_fallthru
        _
    $region48: #{up_final_forward.1} parent=5 // pred_fallthru
      _
    %p3791 = scmp.le.s32.totalorder 2, %s13
    // Predicated region
    $region53: #{up_final_forward.1} parent=5 // pred_check
      %p3792 = pneg %p3791
    $region54: #{up_final_forward.1} parent=5 // pred_check_branch
      %3794 = sbr.rel (%p3792) target = $region56
    $region55: #{up_final_forward.1} parent=5 // pred_region
      %s3795 = ssub.s32 %s13, 2
      // Predicated region
      $region57: #{up_final_forward.1} parent=55 // pred_check
        %p3796 = pneg %p194
      $region58: #{up_final_forward.1} parent=55 // pred_check_branch
        %3798 = sbr.rel (%p3796) target = $region60
      $region59: #{up_final_forward.1} parent=55 // pred_region
        %p3799 = scmp.lt.s32.totalorder %s19, 1
        %s3800 = scalar_select %p3799, %s19, 1
        %s3801 = smul.addr %s3800, 2
        %s3802 = smul.addr %s3801, 4
        %s3803 = scalar_lea.vmem %s7, %s3802
      $region60: #{up_final_forward.1} parent=55 // pred_fallthru
        _
    $region56: #{up_final_forward.1} parent=5 // pred_fallthru
      _
  $region6: #{up_final_forward.1} parent=0 // loop_footer
    %s17 = sadd.s32 1, %s13
  $region7: #{up_final_forward.1} parent=0 // loop_footer_branch
    %12 = sbr.rel target = $region3
  $region8: #{up_final_forward.1} parent=0 // loop_exit
    _

</llo_original>
